<compile_context>
chip_gen: v5e
topology: v5e:2x2
jax: 0.10.0
libtpu: 0.0.40
codegen_flags: <defaults>
</compile_context>

<pallas_src>
import functools

import jax
import jax.numpy as jnp
from jax import lax
from jax.experimental import pallas as pl
from jax.experimental.pallas import tpu as pltpu

EPS = 1e-12          # F.normalize default eps
_LANE = 128


def _vmem_limit_bytes():
    """Generation-aware scoped-VMEM limit."""
    try:
        cap = int(pltpu.get_tpu_info().vmem_capacity_bytes)
    except Exception:
        cap = 64 * 1024 * 1024
    return max(32 * 1024 * 1024, min(int(cap * 0.85), 100 * 1024 * 1024))


def _pick_tile_h(H, W, c_in):
    """Bigger H tiles when channels are small (amortize ~0.35us/step overhead), smaller
    when C is large (VMEM).  Prefer >=2 tiles so the megacore-sharded axis splits on v7x."""
    target_rows = 2048 if c_in <= 128 else (1024 if c_in <= 256 else 512)
    th = max(1, min(H, target_rows // max(W, 1)))
    while H % th:
        th -= 1
    if H // th < 2 and H > 1:
        th = max(1, H // 2)
        while H % th:
            th -= 1
    return th


# --------------------------------------------------------------------------------------
# time-embedding MLP:  out = SiLU(t) @ W^T + b      (W passed pre-transposed)
# --------------------------------------------------------------------------------------
def _time_mlp_kernel(t_ref, w_ref, b_ref, o_ref):
    t = t_ref[...].astype(jnp.float32)
    t = t * jax.nn.sigmoid(t)                               # SiLU first (nn.Sequential)
    o_ref[...] = jnp.dot(t, w_ref[...], preferred_element_type=jnp.float32) + b_ref[...]


# --------------------------------------------------------------------------------------
# one `Block` (+ optionally the fused residual of the ResnetBlock)
# --------------------------------------------------------------------------------------
def _conv_block_kernel(x_c_ref, x_t_ref, x_b_ref, w_ref, bias_ref, a_ref, s_ref,
                       *rest, tile_h, width, c_out, k_mode, res_mode):
    if res_mode == "conv":
        xo_ref, wres_ref, bres_ref, o_ref = rest
    elif res_mode == "add":
        xo_ref, o_ref = rest
    else:
        (o_ref,) = rest

    h_id = pl.program_id(1)
    n_h = pl.num_programs(1)
    c_in = x_c_ref.shape[-1]
    hw = tile_h * width

    # ---- zero-padded halo tile: (TILE_H + 2, W + 2, C_in) --------------------------------
    top = x_t_ref[0]                                        # (1, W, C_in)
    bot = x_b_ref[0]
    top = jnp.where(h_id > 0, top, jnp.zeros_like(top))     # zero halo at image border
    bot = jnp.where(h_id < n_h - 1, bot, jnp.zeros_like(bot))
    rows = jnp.concatenate([top, x_c_ref[0], bot], axis=0)  # (TH+2, W, C_in)
    zcol = jnp.zeros((tile_h + 2, 1, c_in), rows.dtype)
    rows = jnp.concatenate([zcol, rows, zcol], axis=1)      # (TH+2, W+2, C_in)

    def tap(dh, dw):                                        # x[h0 + h + dh - 1, w + dw - 1]
        return rows[dh:dh + tile_h, dw:dw + width, :].reshape(hw, c_in)

    if k_mode == "dh3":
        # 3 matmuls with K = 3*C_in: concat only the three W-shifts of each row offset.
        acc = jnp.zeros((hw, c_out), jnp.float32)
        for dh in range(3):
            xk = jnp.concatenate([tap(dh, 0), tap(dh, 1), tap(dh, 2)], axis=-1)
            acc = acc + jnp.dot(xk, w_ref[dh], preferred_element_type=jnp.float32)
    else:
        # 9 chained dots: no staging copies (lane-unaligned or large C_in).
        acc = jnp.dot(tap(0, 0), w_ref[0], preferred_element_type=jnp.float32)
        for t in range(1, 9):
            acc = acc + jnp.dot(tap(t // 3, t % 3), w_ref[t],
                                preferred_element_type=jnp.float32)

    acc = acc + bias_ref[0]                                 # conv bias  (1, C_out)

    # RMSNorm over channels: x * rsqrt(max(sum x^2, eps^2)) == F.normalize(x) (EUP rsqrt)
    sumsq = jnp.sum(acc * acc, axis=-1, keepdims=True)
    y = acc * lax.rsqrt(jnp.maximum(sumsq, EPS * EPS))

    # pre-folded affine:  a = g * sqrt(C_out) * (scale + 1),  s = shift
    y = y * a_ref[0] + s_ref[0]
    y = y * jax.nn.sigmoid(y)                               # SiLU
    # TODO(synk): nn.Dropout with p > 0 (training-time RNG) not implemented; p=0 is identity.

    if res_mode == "conv":
        xo = xo_ref[0].reshape(hw, xo_ref.shape[-1])
        y = y + jnp.dot(xo, wres_ref[...], preferred_element_type=jnp.float32) + bres_ref[0]
    elif res_mode == "add":                                 # identity residual: plain f32 add
        y = y + xo_ref[0].reshape(hw, c_out).astype(jnp.float32)

    o_ref[0] = y.reshape(tile_h, width, c_out).astype(o_ref.dtype)


def _conv_block(x_nhwc, w_oihw, bias, affine_a, affine_s, *, tile_h, out_dtype,
                residual=None):
    """SiLU(RMSNorm(conv3x3(x)) * a + s)  [+ residual], NHWC in / NHWC out.

    residual: None | ("add", x_res) | ("conv", x_res, w_res(C_in,C_out), b_res(C_out,))
    """
    B, H, W, C_in = x_nhwc.shape
    C_out = w_oihw.shape[0]
    TH = tile_h
    assert H % TH == 0, "tile_h must divide H"
    n_h = H // TH

    # fold strategy: per-dh fold (K = 3*C_in) only for lane-aligned small/medium C_in,
    # otherwise 9 chained dots (K = C_in >= 256 already fills the MXU depth).
    k_mode = "dh3" if (C_in % _LANE == 0 and C_in <= 256) else "tap9"

    w_khwc = jnp.transpose(w_oihw, (2, 3, 1, 0)).astype(x_nhwc.dtype)   # (3,3,C_in,C_out)
    if k_mode == "dh3":
        w_r = w_khwc.reshape(3, 3 * C_in, C_out)            # host-side reshape (matmul layout)
        w_spec = pl.BlockSpec((3, 3 * C_in, C_out), lambda b, h: (0, 0, 0))
    else:
        w_r = w_khwc.reshape(9, C_in, C_out)
        w_spec = pl.BlockSpec((9, C_in, C_out), lambda b, h: (0, 0, 0))

    bias3 = bias.reshape(1, 1, C_out).astype(jnp.float32)
    a3 = affine_a.reshape(B, 1, C_out).astype(jnp.float32)
    s3 = affine_s.reshape(B, 1, C_out).astype(jnp.float32)

    in_specs = [
        pl.BlockSpec((1, TH, W, C_in), lambda b, h: (b, h, 0, 0)),
        pl.BlockSpec((1, 1, W, C_in),
                     lambda b, h: (b, jnp.maximum(h * TH - 1, 0), 0, 0)),
        pl.BlockSpec((1, 1, W, C_in),
                     lambda b, h: (b, jnp.minimum(h * TH + TH, H - 1), 0, 0)),
        w_spec,                                              # grid-invariant -> VMEM resident
        pl.BlockSpec((1, 1, C_out), lambda b, h: (0, 0, 0)),
        pl.BlockSpec((1, 1, C_out), lambda b, h: (b, 0, 0)),
        pl.BlockSpec((1, 1, C_out), lambda b, h: (b, 0, 0)),
    ]
    args = [x_nhwc, x_nhwc, x_nhwc, w_r, bias3, a3, s3]

    res_mode = None
    if residual is not None:
        res_mode = residual[0]
        xr = residual[1]
        in_specs.append(pl.BlockSpec((1, TH, W, xr.shape[-1]), lambda b, h: (b, h, 0, 0)))
        args.append(xr)
        if res_mode == "conv":
            _, _, wres, bres = residual
            in_specs += [
                pl.BlockSpec((xr.shape[-1], C_out), lambda b, h: (0, 0)),
                pl.BlockSpec((1, 1, C_out), lambda b, h: (0, 0, 0)),
            ]
            args += [wres.astype(x_nhwc.dtype),
                     bres.reshape(1, 1, C_out).astype(jnp.float32)]

    kernel = functools.partial(_conv_block_kernel, tile_h=TH, width=W, c_out=C_out,
                               k_mode=k_mode, res_mode=res_mode)

    return pl.pallas_call(
        kernel,
        out_shape=jax.ShapeDtypeStruct((B, H, W, C_out), out_dtype),
        grid_spec=pltpu.PrefetchScalarGridSpec(
            num_scalar_prefetch=0,
            grid=(B, n_h),
            in_specs=in_specs,
            out_specs=pl.BlockSpec((1, TH, W, C_out), lambda b, h: (b, h, 0, 0)),
        ),
        compiler_params=pltpu.CompilerParams(
            dimension_semantics=("parallel", "parallel"),
            vmem_limit_bytes=_vmem_limit_bytes(),
        ),
    )(*args)


# --------------------------------------------------------------------------------------
# full ResnetBlock forward
# --------------------------------------------------------------------------------------
def resnet_block_forward_nhwc(x_nhwc, params, time_emb=None, *, tile_h=None,
                              compute_dtype=jnp.bfloat16, out_dtype=None):
    """NHWC-in / NHWC-out ResnetBlock forward (keep the UNet NHWC end-to-end so no
    per-layer NCHW<->NHWC HBM transposes are paid)."""
    B, H, W, C_in = x_nhwc.shape
    C_out = params["conv1_w"].shape[0]
    th = tile_h if tile_h is not None else _pick_tile_h(H, W, C_in)
    out_dtype = compute_dtype if out_dtype is None else out_dtype
    rms = float(C_out) ** 0.5

    x_lo = x_nhwc.astype(compute_dtype)                     # bf16 matmul operands

    # ---- time MLP -> pre-folded per-(batch, channel) affine a1, s1 ----
    g1 = params["g1"].reshape(1, C_out).astype(jnp.float32)
    if time_emb is not None:
        ss = pl.pallas_call(
            _time_mlp_kernel,
            out_shape=jax.ShapeDtypeStruct((B, 2 * C_out), jnp.float32),
        )(time_emb.astype(jnp.float32),
          jnp.transpose(params["mlp_w"]).astype(jnp.float32),
          params["mlp_b"].reshape(1, 2 * C_out).astype(jnp.float32))
        scale, shift = ss[:, :C_out], ss[:, C_out:]
        a1 = g1 * rms * (scale + 1.0)
        s1 = shift
    else:
        a1 = jnp.broadcast_to(g1 * rms, (B, C_out))
        s1 = jnp.zeros((B, C_out), jnp.float32)

    # ---- block1 ----
    h = _conv_block(x_lo, params["conv1_w"], params["conv1_b"], a1, s1,
                    tile_h=th, out_dtype=compute_dtype)

    # ---- block2 + fused residual (1x1 conv, or plain f32 add when dim == dim_out) ----
    g2 = params["g2"].reshape(1, C_out).astype(jnp.float32)
    a2 = jnp.broadcast_to(g2 * rms, (B, C_out))
    s2 = jnp.zeros((B, C_out), jnp.float32)

    if params.get("res_w") is not None:
        wres = params["res_w"].reshape(C_out, C_in).T        # (C_in, C_out)
        residual = ("conv", x_lo, wres, params["res_b"])
    else:                                                    # nn.Identity: no eye matmul
        residual = ("add", x_nhwc)

    out = _conv_block(h, params["conv2_w"], params["conv2_b"], a2, s2,
                      tile_h=th, out_dtype=out_dtype, residual=residual)
    return out


def resnet_block_forward(x_nchw, params, time_emb=None, *, tile_h=None,
                         compute_dtype=jnp.bfloat16, out_dtype=None):
    """Drop-in NCHW wrapper matching the PyTorch layout. Prefer the NHWC entry point
    when chaining blocks so the transposes are not paid per layer."""
    x_nhwc = jnp.transpose(x_nchw, (0, 2, 3, 1))
    out = resnet_block_forward_nhwc(x_nhwc, params, time_emb, tile_h=tile_h,
                                    compute_dtype=compute_dtype, out_dtype=out_dtype)
    return jnp.transpose(out, (0, 3, 1, 2))


# --------------------------------------------------------------------------------------
# pure-JAX reference mirroring the PyTorch forward (all f32)
# --------------------------------------------------------------------------------------
def _reference(x, params, time_emb=None):
    f32 = jnp.float32
    x = x.astype(f32)
    C_out = params["conv1_w"].shape[0]

    def conv3(z, w, b):
        y = lax.conv_general_dilated(z, w.astype(f32), (1, 1), ((1, 1), (1, 1)),
                                     dimension_numbers=("NCHW", "OIHW", "NCHW"))
        return y + b.reshape(1, -1, 1, 1).astype(f32)

    def rmsnorm(z, g):
        l2 = jnp.maximum(jnp.sqrt(jnp.sum(z * z, axis=1, keepdims=True)), EPS)
        return z / l2 * g.reshape(1, -1, 1, 1).astype(f32) * (z.shape[1] ** 0.5)

    h = rmsnorm(conv3(x, params["conv1_w"], params["conv1_b"]), params["g1"])
    if time_emb is not None:
        t = time_emb.astype(f32)
        t = t * jax.nn.sigmoid(t)
        ss = t @ params["mlp_w"].astype(f32).T + params["mlp_b"].astype(f32)
        scale, shift = ss[:, :C_out, None, None], ss[:, C_out:, None, None]
        h = h * (scale + 1.0) + shift
    h = jax.nn.silu(h)
    h = jax.nn.silu(rmsnorm(conv3(h, params["conv2_w"], params["conv2_b"]), params["g2"]))

    if params.get("res_w") is not None:
        res = lax.conv_general_dilated(x, params["res_w"].astype(f32), (1, 1),
                                       ((0, 0), (0, 0)),
                                       dimension_numbers=("NCHW", "OIHW", "NCHW"))
        res = res + params["res_b"].reshape(1, -1, 1, 1).astype(f32)
    else:
        res = x
    return h + res


if __name__ == "__main__":
    def make_params(key, dim, dim_out, time_dim):
        ks = jax.random.split(key, 10)
        p = {
            "mlp_w": 0.3 * jax.random.normal(ks[0], (2 * dim_out, time_dim), jnp.float32),
            "mlp_b": 0.1 * jax.random.normal(ks[1], (2 * dim_out,), jnp.float32),
            "conv1_w": 0.1 * jax.random.normal(ks[2], (dim_out, dim, 3, 3), jnp.float32),
            "conv1_b": 0.1 * jax.random.normal(ks[3], (dim_out,), jnp.float32),
            "g1": 1.0 + 0.2 * jax.random.normal(ks[4], (1, dim_out, 1, 1), jnp.float32),
            "conv2_w": 0.1 * jax.random.normal(ks[5], (dim_out, dim_out, 3, 3), jnp.float32),
            "conv2_b": 0.1 * jax.random.normal(ks[6], (dim_out,), jnp.float32),
            "g2": 1.0 + 0.2 * jax.random.normal(ks[7], (1, dim_out, 1, 1), jnp.float32),
            "res_w": None,
            "res_b": None,
        }
        if dim != dim_out:
            p["res_w"] = 0.2 * jax.random.normal(ks[8], (dim_out, dim, 1, 1), jnp.float32)
            p["res_b"] = 0.1 * jax.random.normal(ks[9], (dim_out,), jnp.float32)
        return p

    key = jax.random.PRNGKey(0)
    k = jax.random.split(key, 6)

    # tolerance sized for bf16 matmul operands / bf16 output vs f32 reference
    TOL = dict(atol=5e-2, rtol=5e-2)

    # ---- config 1: small shapes (9-dot path), 1x1-conv residual, 2 H tiles (halo) ----
    B, dim, dim_out, H, W, tdim = 2, 4, 8, 16, 16, 8
    x = jax.random.normal(k[0], (B, dim, H, W), jnp.float32)
    t = jax.random.normal(k[1], (B, tdim), jnp.float32)
    p = make_params(k[2], dim, dim_out, tdim)

    fwd = jax.jit(functools.partial(resnet_block_forward, tile_h=8))
    out = jax.block_until_ready(fwd(x, p, t))
    ref = jax.block_until_ready(_reference(x, p, t))
    assert out.shape == (B, dim_out, H, W)
    assert jnp.allclose(out, ref, **TOL), float(jnp.max(jnp.abs(out - ref)))

    # ---- config 2: lane-aligned channels -> per-dh fold (K=384) + identity residual ----
    B2, dim2, H2, W2, tdim2 = 1, 128, 8, 8, 16
    x2 = jax.random.normal(k[3], (B2, dim2, H2, W2), jnp.float32)
    t2 = jax.random.normal(k[4], (B2, tdim2), jnp.float32)
    p2 = make_params(k[5], dim2, dim2, tdim2)

    fwd2 = jax.jit(functools.partial(resnet_block_forward, tile_h=4))
    out2 = jax.block_until_ready(fwd2(x2, p2, t2))
    ref2 = jax.block_until_ready(_reference(x2, p2, t2))
    assert out2.shape == (B2, dim2, H2, W2)
    assert jnp.allclose(out2, ref2, **TOL), float(jnp.max(jnp.abs(out2 - ref2)))

    print("KERNEL_OK")
</pallas_src>

<mosaic_0001>
module attributes {stable_mosaic.version = 11 : i64} {
  func.func @_time_mlp_kernel(%arg0: memref<2x8xf32, #tpu.memory_space<vmem>>, %arg1: memref<8x16xf32, #tpu.memory_space<vmem>>, %arg2: memref<1x16xf32, #tpu.memory_space<vmem>>, %arg3: memref<2x16xf32, #tpu.memory_space<vmem>>) attributes {dimension_semantics = [], scalar_prefetch = 0 : i64, scratch_operands = 0 : i64, tpu.core_type = #tpu.core_type<tc>} {
    %c0 = arith.constant 0 : index
    %c0_0 = arith.constant 0 : index
    %0 = vector.load %arg0[%c0, %c0_0] : memref<2x8xf32, #tpu.memory_space<vmem>>, vector<2x8xf32>
    %1 = arith.negf %0 : vector<2x8xf32>
    %2 = math.exp %1 : vector<2x8xf32>
    %cst = arith.constant 1.000000e+00 : f32
    %3 = vector.broadcast %cst : f32 to vector<2x8xf32>
    %4 = arith.addf %3, %2 : vector<2x8xf32>
    %5 = arith.divf %3, %4 : vector<2x8xf32>
    %6 = arith.mulf %0, %5 : vector<2x8xf32>
    %c0_1 = arith.constant 0 : index
    %c0_2 = arith.constant 0 : index
    %7 = vector.load %arg1[%c0_1, %c0_2] : memref<8x16xf32, #tpu.memory_space<vmem>>, vector<8x16xf32>
    %cst_3 = arith.constant dense<0.000000e+00> : vector<2x16xf32>
    %8 = tpu.matmul %6, %7, %cst_3 {dimension_numbers = #tpu.dot_dimension_numbers<[1], [0], [0], [1], [0, 0, 1, 1], [], []>} : vector<2x8xf32>, vector<8x16xf32>, vector<2x16xf32> -> vector<2x16xf32>
    %c0_4 = arith.constant 0 : index
    %c0_5 = arith.constant 0 : index
    %9 = vector.load %arg2[%c0_4, %c0_5] : memref<1x16xf32, #tpu.memory_space<vmem>>, vector<1x16xf32>
    %10 = vector.broadcast %9 : vector<1x16xf32> to vector<2x16xf32>
    %11 = arith.addf %8, %10 : vector<2x16xf32>
    %c0_6 = arith.constant 0 : index
    %c0_7 = arith.constant 0 : index
    %12 = vector.load %arg3[%c0_6, %c0_7] : memref<2x16xf32, #tpu.memory_space<vmem>>, vector<2x16xf32>
    tpu.vector_store %arg3[%c0_6, %c0_7], %11 {strides = array<i32>} : memref<2x16xf32, #tpu.memory_space<vmem>>, vector<2x16xf32>,
    return
  }
}

module attributes {stable_mosaic.version = 11 : i64} {
  func.func @_conv_block_kernel(%arg0: i32, %arg1: i32, %arg2: memref<1x8x16x8xbf16, #tpu.memory_space<vmem>>, %arg3: memref<1x1x16x8xbf16, #tpu.memory_space<vmem>>, %arg4: memref<1x1x16x8xbf16, #tpu.memory_space<vmem>>, %arg5: memref<9x8x8xbf16, #tpu.memory_space<vmem>>, %arg6: memref<1x1x8xf32, #tpu.memory_space<vmem>>, %arg7: memref<1x1x8xf32, #tpu.memory_space<vmem>>, %arg8: memref<1x1x8xf32, #tpu.memory_space<vmem>>, %arg9: memref<1x8x16x4xbf16, #tpu.memory_space<vmem>>, %arg10: memref<4x8xbf16, #tpu.memory_space<vmem>>, %arg11: memref<1x1x8xf32, #tpu.memory_space<vmem>>, %arg12: memref<1x8x16x8xbf16, #tpu.memory_space<vmem>>) attributes {dimension_semantics = [#tpu.dimension_semantics<parallel>, #tpu.dimension_semantics<parallel>], iteration_bounds = array<i64: 2, 2>, scalar_prefetch = 0 : i64, scratch_operands = 0 : i64, tpu.core_type = #tpu.core_type<tc>, window_params = [{transform_indices = @transform_0, window_bounds = array<i64: 1, 8, 16, 8>}, {transform_indices = @transform_1, window_bounds = array<i64: 1, 1, 16, 8>}, {transform_indices = @transform_2, window_bounds = array<i64: 1, 1, 16, 8>}, {pipeline_mode = #tpu.pipeline_mode<synchronous>, transform_indices = @transform_3, window_bounds = array<i64: 9, 8, 8>}, {pipeline_mode = #tpu.pipeline_mode<synchronous>, transform_indices = @transform_4, window_bounds = array<i64: 1, 1, 8>}, {transform_indices = @transform_5, window_bounds = array<i64: 1, 1, 8>}, {transform_indices = @transform_6, window_bounds = array<i64: 1, 1, 8>}, {transform_indices = @transform_7, window_bounds = array<i64: 1, 8, 16, 4>}, {pipeline_mode = #tpu.pipeline_mode<synchronous>, transform_indices = @transform_8, window_bounds = array<i64: 4, 8>}, {pipeline_mode = #tpu.pipeline_mode<synchronous>, transform_indices = @transform_9, window_bounds = array<i64: 1, 1, 8>}, {transform_indices = @transform_10, window_bounds = array<i64: 1, 8, 16, 8>}]} {
    %c0 = arith.constant 0 : index
    %c0_0 = arith.constant 0 : index
    %c0_1 = arith.constant 0 : index
    %c0_2 = arith.constant 0 : index
    %0 = vector.load %arg3[%c0, %c0_0, %c0_1, %c0_2] : memref<1x1x16x8xbf16, #tpu.memory_space<vmem>>, vector<1x1x16x8xbf16>
    %1 = vector.shape_cast %0 : vector<1x1x16x8xbf16> to vector<1x16x8xbf16>
    %c0_3 = arith.constant 0 : index
    %c0_4 = arith.constant 0 : index
    %c0_5 = arith.constant 0 : index
    %c0_6 = arith.constant 0 : index
    %2 = vector.load %arg4[%c0_3, %c0_4, %c0_5, %c0_6] : memref<1x1x16x8xbf16, #tpu.memory_space<vmem>>, vector<1x1x16x8xbf16>
    %3 = vector.shape_cast %2 : vector<1x1x16x8xbf16> to vector<1x16x8xbf16>
    %c0_i32 = arith.constant 0 : i32
    %4 = arith.cmpi sgt, %arg1, %c0_i32 : i32
    %cst = arith.constant 0.000000e+00 : bf16
    %5 = vector.broadcast %cst : bf16 to vector<1x16x8xbf16>
    %6 = arith.select %4, %1, %5 : vector<1x16x8xbf16>
    %c1_i32 = arith.constant 1 : i32
    %7 = arith.cmpi slt, %arg1, %c1_i32 : i32
    %cst_7 = arith.constant 0.000000e+00 : bf16
    %8 = vector.broadcast %cst_7 : bf16 to vector<1x16x8xbf16>
    %9 = arith.select %7, %3, %8 : vector<1x16x8xbf16>
    %c0_8 = arith.constant 0 : index
    %c0_9 = arith.constant 0 : index
    %c0_10 = arith.constant 0 : index
    %c0_11 = arith.constant 0 : index
    %10 = vector.load %arg2[%c0_8, %c0_9, %c0_10, %c0_11] : memref<1x8x16x8xbf16, #tpu.memory_space<vmem>>, vector<1x8x16x8xbf16>
    %11 = vector.shape_cast %10 : vector<1x8x16x8xbf16> to vector<8x16x8xbf16>
    %12 = tpu.concatenate %6, %11, %9 in 0 : vector<1x16x8xbf16>, vector<8x16x8xbf16>, vector<1x16x8xbf16> -> vector<10x16x8xbf16>
    %cst_12 = arith.constant 0.000000e+00 : bf16
    %13 = vector.broadcast %cst_12 : bf16 to vector<10x1x8xbf16>
    %14 = tpu.concatenate %13, %12, %13 in 1 : vector<10x1x8xbf16>, vector<10x16x8xbf16>, vector<10x1x8xbf16> -> vector<10x18x8xbf16>
    %15 = vector.extract_strided_slice %14 {offsets = [0, 0, 0], sizes = [8, 16, 8], strides = [1, 1, 1]} : vector<10x18x8xbf16> to vector<8x16x8xbf16>
    %16 = vector.shape_cast %15 : vector<8x16x8xbf16> to vector<128x8xbf16>
    %c0_13 = arith.constant 0 : index
    %c0_14 = arith.constant 0 : index
    %c0_15 = arith.constant 0 : index
    %17 = vector.load %arg5[%c0_13, %c0_14, %c0_15] : memref<9x8x8xbf16, #tpu.memory_space<vmem>>, vector<1x8x8xbf16>
    %18 = vector.shape_cast %17 : vector<1x8x8xbf16> to vector<8x8xbf16>
    %cst_16 = arith.constant dense<0.000000e+00> : vector<128x8xf32>
    %19 = tpu.matmul %16, %18, %cst_16 {dimension_numbers = #tpu.dot_dimension_numbers<[1], [0], [0], [1], [0, 0, 1, 1], [], []>} : vector<128x8xbf16>, vector<8x8xbf16>, vector<128x8xf32> -> vector<128x8xf32>
    %20 = vector.extract_strided_slice %14 {offsets = [0, 1, 0], sizes = [8, 16, 8], strides = [1, 1, 1]} : vector<10x18x8xbf16> to vector<8x16x8xbf16>
    %21 = vector.shape_cast %20 : vector<8x16x8xbf16> to vector<128x8xbf16>
    %c1 = arith.constant 1 : index
    %c0_17 = arith.constant 0 : index
    %c0_18 = arith.constant 0 : index
    %22 = vector.load %arg5[%c1, %c0_17, %c0_18] : memref<9x8x8xbf16, #tpu.memory_space<vmem>>, vector<1x8x8xbf16>
    %23 = vector.shape_cast %22 : vector<1x8x8xbf16> to vector<8x8xbf16>
    %cst_19 = arith.constant dense<0.000000e+00> : vector<128x8xf32>
    %24 = tpu.matmul %21, %23, %cst_19 {dimension_numbers = #tpu.dot_dimension_numbers<[1], [0], [0], [1], [0, 0, 1, 1], [], []>} : vector<128x8xbf16>, vector<8x8xbf16>, vector<128x8xf32> -> vector<128x8xf32>
    %25 = arith.addf %19, %24 : vector<128x8xf32>
    %26 = vector.extract_strided_slice %14 {offsets = [0, 2, 0], sizes = [8, 16, 8], strides = [1, 1, 1]} : vector<10x18x8xbf16> to vector<8x16x8xbf16>
    %27 = vector.shape_cast %26 : vector<8x16x8xbf16> to vector<128x8xbf16>
    %c2 = arith.constant 2 : index
    %c0_20 = arith.constant 0 : index
    %c0_21 = arith.constant 0 : index
    %28 = vector.load %arg5[%c2, %c0_20, %c0_21] : memref<9x8x8xbf16, #tpu.memory_space<vmem>>, vector<1x8x8xbf16>
    %29 = vector.shape_cast %28 : vector<1x8x8xbf16> to vector<8x8xbf16>
    %cst_22 = arith.constant dense<0.000000e+00> : vector<128x8xf32>
    %30 = tpu.matmul %27, %29, %cst_22 {dimension_numbers = #tpu.dot_dimension_numbers<[1], [0], [0], [1], [0, 0, 1, 1], [], []>} : vector<128x8xbf16>, vector<8x8xbf16>, vector<128x8xf32> -> vector<128x8xf32>
    %31 = arith.addf %25, %30 : vector<128x8xf32>
    %32 = vector.extract_strided_slice %14 {offsets = [1, 0, 0], sizes = [8, 16, 8], strides = [1, 1, 1]} : vector<10x18x8xbf16> to vector<8x16x8xbf16>
    %33 = vector.shape_cast %32 : vector<8x16x8xbf16> to vector<128x8xbf16>
    %c3 = arith.constant 3 : index
    %c0_23 = arith.constant 0 : index
    %c0_24 = arith.constant 0 : index
    %34 = vector.load %arg5[%c3, %c0_23, %c0_24] : memref<9x8x8xbf16, #tpu.memory_space<vmem>>, vector<1x8x8xbf16>
    %35 = vector.shape_cast %34 : vector<1x8x8xbf16> to vector<8x8xbf16>
    %cst_25 = arith.constant dense<0.000000e+00> : vector<128x8xf32>
    %36 = tpu.matmul %33, %35, %cst_25 {dimension_numbers = #tpu.dot_dimension_numbers<[1], [0], [0], [1], [0, 0, 1, 1], [], []>} : vector<128x8xbf16>, vector<8x8xbf16>, vector<128x8xf32> -> vector<128x8xf32>
    %37 = arith.addf %31, %36 : vector<128x8xf32>
    %38 = vector.extract_strided_slice %14 {offsets = [1, 1, 0], sizes = [8, 16, 8], strides = [1, 1, 1]} : vector<10x18x8xbf16> to vector<8x16x8xbf16>
    %39 = vector.shape_cast %38 : vector<8x16x8xbf16> to vector<128x8xbf16>
    %c4 = arith.constant 4 : index
    %c0_26 = arith.constant 0 : index
    %c0_27 = arith.constant 0 : index
    %40 = vector.load %arg5[%c4, %c0_26, %c0_27] : memref<9x8x8xbf16, #tpu.memory_space<vmem>>, vector<1x8x8xbf16>
    %41 = vector.shape_cast %40 : vector<1x8x8xbf16> to vector<8x8xbf16>
    %cst_28 = arith.constant dense<0.000000e+00> : vector<128x8xf32>
    %42 = tpu.matmul %39, %41, %cst_28 {dimension_numbers = #tpu.dot_dimension_numbers<[1], [0], [0], [1], [0, 0, 1, 1], [], []>} : vector<128x8xbf16>, vector<8x8xbf16>, vector<128x8xf32> -> vector<128x8xf32>
    %43 = arith.addf %37, %42 : vector<128x8xf32>
    %44 = vector.extract_strided_slice %14 {offsets = [1, 2, 0], sizes = [8, 16, 8], strides = [1, 1, 1]} : vector<10x18x8xbf16> to vector<8x16x8xbf16>
    %45 = vector.shape_cast %44 : vector<8x16x8xbf16> to vector<128x8xbf16>
    %c5 = arith.constant 5 : index
    %c0_29 = arith.constant 0 : index
    %c0_30 = arith.constant 0 : index
    %46 = vector.load %arg5[%c5, %c0_29, %c0_30] : memref<9x8x8xbf16, #tpu.memory_space<vmem>>, vector<1x8x8xbf16>
    %47 = vector.shape_cast %46 : vector<1x8x8xbf16> to vector<8x8xbf16>
    %cst_31 = arith.constant dense<0.000000e+00> : vector<128x8xf32>
    %48 = tpu.matmul %45, %47, %cst_31 {dimension_numbers = #tpu.dot_dimension_numbers<[1], [0], [0], [1], [0, 0, 1, 1], [], []>} : vector<128x8xbf16>, vector<8x8xbf16>, vector<128x8xf32> -> vector<128x8xf32>
    %49 = arith.addf %43, %48 : vector<128x8xf32>
    %50 = vector.extract_strided_slice %14 {offsets = [2, 0, 0], sizes = [8, 16, 8], strides = [1, 1, 1]} : vector<10x18x8xbf16> to vector<8x16x8xbf16>
    %51 = vector.shape_cast %50 : vector<8x16x8xbf16> to vector<128x8xbf16>
    %c6 = arith.constant 6 : index
    %c0_32 = arith.constant 0 : index
    %c0_33 = arith.constant 0 : index
    %52 = vector.load %arg5[%c6, %c0_32, %c0_33] : memref<9x8x8xbf16, #tpu.memory_space<vmem>>, vector<1x8x8xbf16>
    %53 = vector.shape_cast %52 : vector<1x8x8xbf16> to vector<8x8xbf16>
    %cst_34 = arith.constant dense<0.000000e+00> : vector<128x8xf32>
    %54 = tpu.matmul %51, %53, %cst_34 {dimension_numbers = #tpu.dot_dimension_numbers<[1], [0], [0], [1], [0, 0, 1, 1], [], []>} : vector<128x8xbf16>, vector<8x8xbf16>, vector<128x8xf32> -> vector<128x8xf32>
    %55 = arith.addf %49, %54 : vector<128x8xf32>
    %56 = vector.extract_strided_slice %14 {offsets = [2, 1, 0], sizes = [8, 16, 8], strides = [1, 1, 1]} : vector<10x18x8xbf16> to vector<8x16x8xbf16>
    %57 = vector.shape_cast %56 : vector<8x16x8xbf16> to vector<128x8xbf16>
    %c7 = arith.constant 7 : index
    %c0_35 = arith.constant 0 : index
    %c0_36 = arith.constant 0 : index
    %58 = vector.load %arg5[%c7, %c0_35, %c0_36] : memref<9x8x8xbf16, #tpu.memory_space<vmem>>, vector<1x8x8xbf16>
    %59 = vector.shape_cast %58 : vector<1x8x8xbf16> to vector<8x8xbf16>
    %cst_37 = arith.constant dense<0.000000e+00> : vector<128x8xf32>
    %60 = tpu.matmul %57, %59, %cst_37 {dimension_numbers = #tpu.dot_dimension_numbers<[1], [0], [0], [1], [0, 0, 1, 1], [], []>} : vector<128x8xbf16>, vector<8x8xbf16>, vector<128x8xf32> -> vector<128x8xf32>
    %61 = arith.addf %55, %60 : vector<128x8xf32>
    %62 = vector.extract_strided_slice %14 {offsets = [2, 2, 0], sizes = [8, 16, 8], strides = [1, 1, 1]} : vector<10x18x8xbf16> to vector<8x16x8xbf16>
    %63 = vector.shape_cast %62 : vector<8x16x8xbf16> to vector<128x8xbf16>
    %c8 = arith.constant 8 : index
    %c0_38 = arith.constant 0 : index
    %c0_39 = arith.constant 0 : index
    %64 = vector.load %arg5[%c8, %c0_38, %c0_39] : memref<9x8x8xbf16, #tpu.memory_space<vmem>>, vector<1x8x8xbf16>
    %65 = vector.shape_cast %64 : vector<1x8x8xbf16> to vector<8x8xbf16>
    %cst_40 = arith.constant dense<0.000000e+00> : vector<128x8xf32>
    %66 = tpu.matmul %63, %65, %cst_40 {dimension_numbers = #tpu.dot_dimension_numbers<[1], [0], [0], [1], [0, 0, 1, 1], [], []>} : vector<128x8xbf16>, vector<8x8xbf16>, vector<128x8xf32> -> vector<128x8xf32>
    %67 = arith.addf %61, %66 : vector<128x8xf32>
    %c0_41 = arith.constant 0 : index
    %c0_42 = arith.constant 0 : index
    %c0_43 = arith.constant 0 : index
    %68 = vector.load %arg6[%c0_41, %c0_42, %c0_43] : memref<1x1x8xf32, #tpu.memory_space<vmem>>, vector<1x1x8xf32>
    %69 = vector.shape_cast %68 : vector<1x1x8xf32> to vector<1x8xf32>
    %70 = vector.broadcast %69 : vector<1x8xf32> to vector<128x8xf32>
    %71 = arith.addf %67, %70 : vector<128x8xf32>
    %72 = arith.mulf %71, %71 : vector<128x8xf32>
    %cst_44 = arith.constant dense<0.000000e+00> : vector<128xf32>
    %73 = vector.multi_reduction <add>, %72, %cst_44 [1] : vector<128x8xf32> to vector<128xf32>
    %74 = vector.shape_cast %73 : vector<128xf32> to vector<128x1xf32>
    %cst_45 = arith.constant 1.000000e-24 : f32
    %75 = vector.broadcast %cst_45 : f32 to vector<128x1xf32>
    %76 = arith.maximumf %74, %75 : vector<128x1xf32>
    %77 = math.rsqrt %76 : vector<128x1xf32>
    %78 = vector.broadcast %77 : vector<128x1xf32> to vector<128x8xf32>
    %79 = arith.mulf %71, %78 : vector<128x8xf32>
    %c0_46 = arith.constant 0 : index
    %c0_47 = arith.constant 0 : index
    %c0_48 = arith.constant 0 : index
    %80 = vector.load %arg7[%c0_46, %c0_47, %c0_48] : memref<1x1x8xf32, #tpu.memory_space<vmem>>, vector<1x1x8xf32>
    %81 = vector.shape_cast %80 : vector<1x1x8xf32> to vector<1x8xf32>
    %82 = vector.broadcast %81 : vector<1x8xf32> to vector<128x8xf32>
    %83 = arith.mulf %79, %82 : vector<128x8xf32>
    %c0_49 = arith.constant 0 : index
    %c0_50 = arith.constant 0 : index
    %c0_51 = arith.constant 0 : index
    %84 = vector.load %arg8[%c0_49, %c0_50, %c0_51] : memref<1x1x8xf32, #tpu.memory_space<vmem>>, vector<1x1x8xf32>
    %85 = vector.shape_cast %84 : vector<1x1x8xf32> to vector<1x8xf32>
    %86 = vector.broadcast %85 : vector<1x8xf32> to vector<128x8xf32>
    %87 = arith.addf %83, %86 : vector<128x8xf32>
    %88 = arith.negf %87 : vector<128x8xf32>
    %89 = math.exp %88 : vector<128x8xf32>
    %cst_52 = arith.constant 1.000000e+00 : f32
    %90 = vector.broadcast %cst_52 : f32 to vector<128x8xf32>
    %91 = arith.addf %90, %89 : vector<128x8xf32>
    %92 = arith.divf %90, %91 : vector<128x8xf32>
    %93 = arith.mulf %87, %92 : vector<128x8xf32>
    %c0_53 = arith.constant 0 : index
    %c0_54 = arith.constant 0 : index
    %c0_55 = arith.constant 0 : index
    %c0_56 = arith.constant 0 : index
    %94 = vector.load %arg9[%c0_53, %c0_54, %c0_55, %c0_56] : memref<1x8x16x4xbf16, #tpu.memory_space<vmem>>, vector<1x8x16x4xbf16>
    %95 = vector.shape_cast %94 : vector<1x8x16x4xbf16> to vector<8x16x4xbf16>
    %96 = vector.shape_cast %95 : vector<8x16x4xbf16> to vector<128x4xbf16>
    %c0_57 = arith.constant 0 : index
    %c0_58 = arith.constant 0 : index
    %97 = vector.load %arg10[%c0_57, %c0_58] : memref<4x8xbf16, #tpu.memory_space<vmem>>, vector<4x8xbf16>
    %cst_59 = arith.constant dense<0.000000e+00> : vector<128x8xf32>
    %98 = tpu.matmul %96, %97, %cst_59 {dimension_numbers = #tpu.dot_dimension_numbers<[1], [0], [0], [1], [0, 0, 1, 1], [], []>} : vector<128x4xbf16>, vector<4x8xbf16>, vector<128x8xf32> -> vector<128x8xf32>
    %99 = arith.addf %93, %98 : vector<128x8xf32>
    %c0_60 = arith.constant 0 : index
    %c0_61 = arith.constant 0 : index
    %c0_62 = arith.constant 0 : index
    %100 = vector.load %arg11[%c0_60, %c0_61, %c0_62] : memref<1x1x8xf32, #tpu.memory_space<vmem>>, vector<1x1x8xf32>
    %101 = vector.shape_cast %100 : vector<1x1x8xf32> to vector<1x8xf32>
    %102 = vector.broadcast %101 : vector<1x8xf32> to vector<128x8xf32>
    %103 = arith.addf %99, %102 : vector<128x8xf32>
    %104 = vector.shape_cast %103 : vector<128x8xf32> to vector<8x16x8xf32>
    %105 = arith.truncf %104 : vector<8x16x8xf32> to vector<8x16x8xbf16>
    %c0_63 = arith.constant 0 : index
    %c0_64 = arith.constant 0 : index
    %c0_65 = arith.constant 0 : index
    %c0_66 = arith.constant 0 : index
    %106 = vector.load %arg12[%c0_63, %c0_64, %c0_65, %c0_66] : memref<1x8x16x8xbf16, #tpu.memory_space<vmem>>, vector<1x8x16x8xbf16>
    %107 = vector.shape_cast %106 : vector<1x8x16x8xbf16> to vector<8x16x8xbf16>
    %108 = vector.shape_cast %105 : vector<8x16x8xbf16> to vector<1x8x16x8xbf16>
    tpu.vector_store %arg12[%c0_63, %c0_64, %c0_65, %c0_66], %108 {strides = array<i32>} : memref<1x8x16x8xbf16, #tpu.memory_space<vmem>>, vector<1x8x16x8xbf16>,
    return
  }
  func.func @transform_0(%arg0: i32, %arg1: i32) -> (i32, i32, i32, i32) {
    %c0_i32 = arith.constant 0 : i32
    %c0_i32_0 = arith.constant 0 : i32
    %c0_i32_1 = arith.constant 0 : i32
    return %arg0, %arg1, %c0_i32, %c0_i32_0 : i32, i32, i32, i32
  }
  func.func @transform_1(%arg0: i32, %arg1: i32) -> (i32, i32, i32, i32) {
    %c8_i32 = arith.constant 8 : i32
    %0 = arith.muli %arg1, %c8_i32 : i32
    %c1_i32 = arith.constant 1 : i32
    %1 = arith.subi %0, %c1_i32 : i32
    %c0_i32 = arith.constant 0 : i32
    %2 = arith.maxsi %1, %c0_i32 : i32
    %c0_i32_0 = arith.constant 0 : i32
    %c0_i32_1 = arith.constant 0 : i32
    %c0_i32_2 = arith.constant 0 : i32
    return %arg0, %2, %c0_i32_0, %c0_i32_1 : i32, i32, i32, i32
  }
  func.func @transform_2(%arg0: i32, %arg1: i32) -> (i32, i32, i32, i32) {
    %c8_i32 = arith.constant 8 : i32
    %0 = arith.muli %arg1, %c8_i32 : i32
    %c8_i32_0 = arith.constant 8 : i32
    %1 = arith.addi %0, %c8_i32_0 : i32
    %c15_i32 = arith.constant 15 : i32
    %2 = arith.minsi %1, %c15_i32 : i32
    %c0_i32 = arith.constant 0 : i32
    %c0_i32_1 = arith.constant 0 : i32
    %c0_i32_2 = arith.constant 0 : i32
    return %arg0, %2, %c0_i32, %c0_i32_1 : i32, i32, i32, i32
  }
  func.func @transform_3(%arg0: i32, %arg1: i32) -> (i32, i32, i32) {
    %c0_i32 = arith.constant 0 : i32
    %c0_i32_0 = arith.constant 0 : i32
    %c0_i32_1 = arith.constant 0 : i32
    %c0_i32_2 = arith.constant 0 : i32
    return %c0_i32, %c0_i32_0, %c0_i32_1 : i32, i32, i32
  }
  func.func @transform_4(%arg0: i32, %arg1: i32) -> (i32, i32, i32) {
    %c0_i32 = arith.constant 0 : i32
    %c0_i32_0 = arith.constant 0 : i32
    %c0_i32_1 = arith.constant 0 : i32
    %c0_i32_2 = arith.constant 0 : i32
    return %c0_i32, %c0_i32_0, %c0_i32_1 : i32, i32, i32
  }
  func.func @transform_5(%arg0: i32, %arg1: i32) -> (i32, i32, i32) {
    %c0_i32 = arith.constant 0 : i32
    %c0_i32_0 = arith.constant 0 : i32
    %c0_i32_1 = arith.constant 0 : i32
    return %arg0, %c0_i32, %c0_i32_0 : i32, i32, i32
  }
  func.func @transform_6(%arg0: i32, %arg1: i32) -> (i32, i32, i32) {
    %c0_i32 = arith.constant 0 : i32
    %c0_i32_0 = arith.constant 0 : i32
    %c0_i32_1 = arith.constant 0 : i32
    return %arg0, %c0_i32, %c0_i32_0 : i32, i32, i32
  }
  func.func @transform_7(%arg0: i32, %arg1: i32) -> (i32, i32, i32, i32) {
    %c0_i32 = arith.constant 0 : i32
    %c0_i32_0 = arith.constant 0 : i32
    %c0_i32_1 = arith.constant 0 : i32
    return %arg0, %arg1, %c0_i32, %c0_i32_0 : i32, i32, i32, i32
  }
  func.func @transform_8(%arg0: i32, %arg1: i32) -> (i32, i32) {
    %c0_i32 = arith.constant 0 : i32
    %c0_i32_0 = arith.constant 0 : i32
    %c0_i32_1 = arith.constant 0 : i32
    return %c0_i32, %c0_i32_0 : i32, i32
  }
  func.func @transform_9(%arg0: i32, %arg1: i32) -> (i32, i32, i32) {
    %c0_i32 = arith.constant 0 : i32
    %c0_i32_0 = arith.constant 0 : i32
    %c0_i32_1 = arith.constant 0 : i32
    %c0_i32_2 = arith.constant 0 : i32
    return %c0_i32, %c0_i32_0, %c0_i32_1 : i32, i32, i32
  }
  func.func @transform_10(%arg0: i32, %arg1: i32) -> (i32, i32, i32, i32) {
    %c0_i32 = arith.constant 0 : i32
    %c0_i32_0 = arith.constant 0 : i32
    %c0_i32_1 = arith.constant 0 : i32
    return %arg0, %arg1, %c0_i32, %c0_i32_0 : i32, i32, i32, i32
  }
}

module attributes {stable_mosaic.version = 11 : i64} {
  func.func @_conv_block_kernel(%arg0: i32, %arg1: i32, %arg2: memref<1x8x16x4xbf16, #tpu.memory_space<vmem>>, %arg3: memref<1x1x16x4xbf16, #tpu.memory_space<vmem>>, %arg4: memref<1x1x16x4xbf16, #tpu.memory_space<vmem>>, %arg5: memref<9x4x8xbf16, #tpu.memory_space<vmem>>, %arg6: memref<1x1x8xf32, #tpu.memory_space<vmem>>, %arg7: memref<1x1x8xf32, #tpu.memory_space<vmem>>, %arg8: memref<1x1x8xf32, #tpu.memory_space<vmem>>, %arg9: memref<1x8x16x8xbf16, #tpu.memory_space<vmem>>) attributes {dimension_semantics = [#tpu.dimension_semantics<parallel>, #tpu.dimension_semantics<parallel>], iteration_bounds = array<i64: 2, 2>, scalar_prefetch = 0 : i64, scratch_operands = 0 : i64, tpu.core_type = #tpu.core_type<tc>, window_params = [{transform_indices = @transform_0, window_bounds = array<i64: 1, 8, 16, 4>}, {transform_indices = @transform_1, window_bounds = array<i64: 1, 1, 16, 4>}, {transform_indices = @transform_2, window_bounds = array<i64: 1, 1, 16, 4>}, {pipeline_mode = #tpu.pipeline_mode<synchronous>, transform_indices = @transform_3, window_bounds = array<i64: 9, 4, 8>}, {pipeline_mode = #tpu.pipeline_mode<synchronous>, transform_indices = @transform_4, window_bounds = array<i64: 1, 1, 8>}, {transform_indices = @transform_5, window_bounds = array<i64: 1, 1, 8>}, {transform_indices = @transform_6, window_bounds = array<i64: 1, 1, 8>}, {transform_indices = @transform_7, window_bounds = array<i64: 1, 8, 16, 8>}]} {
    %c0 = arith.constant 0 : index
    %c0_0 = arith.constant 0 : index
    %c0_1 = arith.constant 0 : index
    %c0_2 = arith.constant 0 : index
    %0 = vector.load %arg3[%c0, %c0_0, %c0_1, %c0_2] : memref<1x1x16x4xbf16, #tpu.memory_space<vmem>>, vector<1x1x16x4xbf16>
    %1 = vector.shape_cast %0 : vector<1x1x16x4xbf16> to vector<1x16x4xbf16>
    %c0_3 = arith.constant 0 : index
    %c0_4 = arith.constant 0 : index
    %c0_5 = arith.constant 0 : index
    %c0_6 = arith.constant 0 : index
    %2 = vector.load %arg4[%c0_3, %c0_4, %c0_5, %c0_6] : memref<1x1x16x4xbf16, #tpu.memory_space<vmem>>, vector<1x1x16x4xbf16>
    %3 = vector.shape_cast %2 : vector<1x1x16x4xbf16> to vector<1x16x4xbf16>
    %c0_i32 = arith.constant 0 : i32
    %4 = arith.cmpi sgt, %arg1, %c0_i32 : i32
    %cst = arith.constant 0.000000e+00 : bf16
    %5 = vector.broadcast %cst : bf16 to vector<1x16x4xbf16>
    %6 = arith.select %4, %1, %5 : vector<1x16x4xbf16>
    %c1_i32 = arith.constant 1 : i32
    %7 = arith.cmpi slt, %arg1, %c1_i32 : i32
    %cst_7 = arith.constant 0.000000e+00 : bf16
    %8 = vector.broadcast %cst_7 : bf16 to vector<1x16x4xbf16>
    %9 = arith.select %7, %3, %8 : vector<1x16x4xbf16>
    %c0_8 = arith.constant 0 : index
    %c0_9 = arith.constant 0 : index
    %c0_10 = arith.constant 0 : index
    %c0_11 = arith.constant 0 : index
    %10 = vector.load %arg2[%c0_8, %c0_9, %c0_10, %c0_11] : memref<1x8x16x4xbf16, #tpu.memory_space<vmem>>, vector<1x8x16x4xbf16>
    %11 = vector.shape_cast %10 : vector<1x8x16x4xbf16> to vector<8x16x4xbf16>
    %12 = tpu.concatenate %6, %11, %9 in 0 : vector<1x16x4xbf16>, vector<8x16x4xbf16>, vector<1x16x4xbf16> -> vector<10x16x4xbf16>
    %cst_12 = arith.constant 0.000000e+00 : bf16
    %13 = vector.broadcast %cst_12 : bf16 to vector<10x1x4xbf16>
    %14 = tpu.concatenate %13, %12, %13 in 1 : vector<10x1x4xbf16>, vector<10x16x4xbf16>, vector<10x1x4xbf16> -> vector<10x18x4xbf16>
    %15 = vector.extract_strided_slice %14 {offsets = [0, 0, 0], sizes = [8, 16, 4], strides = [1, 1, 1]} : vector<10x18x4xbf16> to vector<8x16x4xbf16>
    %16 = vector.shape_cast %15 : vector<8x16x4xbf16> to vector<128x4xbf16>
    %c0_13 = arith.constant 0 : index
    %c0_14 = arith.constant 0 : index
    %c0_15 = arith.constant 0 : index
    %17 = vector.load %arg5[%c0_13, %c0_14, %c0_15] : memref<9x4x8xbf16, #tpu.memory_space<vmem>>, vector<1x4x8xbf16>
    %18 = vector.shape_cast %17 : vector<1x4x8xbf16> to vector<4x8xbf16>
    %cst_16 = arith.constant dense<0.000000e+00> : vector<128x8xf32>
    %19 = tpu.matmul %16, %18, %cst_16 {dimension_numbers = #tpu.dot_dimension_numbers<[1], [0], [0], [1], [0, 0, 1, 1], [], []>} : vector<128x4xbf16>, vector<4x8xbf16>, vector<128x8xf32> -> vector<128x8xf32>
    %20 = vector.extract_strided_slice %14 {offsets = [0, 1, 0], sizes = [8, 16, 4], strides = [1, 1, 1]} : vector<10x18x4xbf16> to vector<8x16x4xbf16>
    %21 = vector.shape_cast %20 : vector<8x16x4xbf16> to vector<128x4xbf16>
    %c1 = arith.constant 1 : index
    %c0_17 = arith.constant 0 : index
    %c0_18 = arith.constant 0 : index
    %22 = vector.load %arg5[%c1, %c0_17, %c0_18] : memref<9x4x8xbf16, #tpu.memory_space<vmem>>, vector<1x4x8xbf16>
    %23 = vector.shape_cast %22 : vector<1x4x8xbf16> to vector<4x8xbf16>
    %cst_19 = arith.constant dense<0.000000e+00> : vector<128x8xf32>
    %24 = tpu.matmul %21, %23, %cst_19 {dimension_numbers = #tpu.dot_dimension_numbers<[1], [0], [0], [1], [0, 0, 1, 1], [], []>} : vector<128x4xbf16>, vector<4x8xbf16>, vector<128x8xf32> -> vector<128x8xf32>
    %25 = arith.addf %19, %24 : vector<128x8xf32>
    %26 = vector.extract_strided_slice %14 {offsets = [0, 2, 0], sizes = [8, 16, 4], strides = [1, 1, 1]} : vector<10x18x4xbf16> to vector<8x16x4xbf16>
    %27 = vector.shape_cast %26 : vector<8x16x4xbf16> to vector<128x4xbf16>
    %c2 = arith.constant 2 : index
    %c0_20 = arith.constant 0 : index
    %c0_21 = arith.constant 0 : index
    %28 = vector.load %arg5[%c2, %c0_20, %c0_21] : memref<9x4x8xbf16, #tpu.memory_space<vmem>>, vector<1x4x8xbf16>
    %29 = vector.shape_cast %28 : vector<1x4x8xbf16> to vector<4x8xbf16>
    %cst_22 = arith.constant dense<0.000000e+00> : vector<128x8xf32>
    %30 = tpu.matmul %27, %29, %cst_22 {dimension_numbers = #tpu.dot_dimension_numbers<[1], [0], [0], [1], [0, 0, 1, 1], [], []>} : vector<128x4xbf16>, vector<4x8xbf16>, vector<128x8xf32> -> vector<128x8xf32>
    %31 = arith.addf %25, %30 : vector<128x8xf32>
    %32 = vector.extract_strided_slice %14 {offsets = [1, 0, 0], sizes = [8, 16, 4], strides = [1, 1, 1]} : vector<10x18x4xbf16> to vector<8x16x4xbf16>
    %33 = vector.shape_cast %32 : vector<8x16x4xbf16> to vector<128x4xbf16>
    %c3 = arith.constant 3 : index
    %c0_23 = arith.constant 0 : index
    %c0_24 = arith.constant 0 : index
    %34 = vector.load %arg5[%c3, %c0_23, %c0_24] : memref<9x4x8xbf16, #tpu.memory_space<vmem>>, vector<1x4x8xbf16>
    %35 = vector.shape_cast %34 : vector<1x4x8xbf16> to vector<4x8xbf16>
    %cst_25 = arith.constant dense<0.000000e+00> : vector<128x8xf32>
    %36 = tpu.matmul %33, %35, %cst_25 {dimension_numbers = #tpu.dot_dimension_numbers<[1], [0], [0], [1], [0, 0, 1, 1], [], []>} : vector<128x4xbf16>, vector<4x8xbf16>, vector<128x8xf32> -> vector<128x8xf32>
    %37 = arith.addf %31, %36 : vector<128x8xf32>
    %38 = vector.extract_strided_slice %14 {offsets = [1, 1, 0], sizes = [8, 16, 4], strides = [1, 1, 1]} : vector<10x18x4xbf16> to vector<8x16x4xbf16>
    %39 = vector.shape_cast %38 : vector<8x16x4xbf16> to vector<128x4xbf16>
    %c4 = arith.constant 4 : index
    %c0_26 = arith.constant 0 : index
    %c0_27 = arith.constant 0 : index
    %40 = vector.load %arg5[%c4, %c0_26, %c0_27] : memref<9x4x8xbf16, #tpu.memory_space<vmem>>, vector<1x4x8xbf16>
    %41 = vector.shape_cast %40 : vector<1x4x8xbf16> to vector<4x8xbf16>
    %cst_28 = arith.constant dense<0.000000e+00> : vector<128x8xf32>
    %42 = tpu.matmul %39, %41, %cst_28 {dimension_numbers = #tpu.dot_dimension_numbers<[1], [0], [0], [1], [0, 0, 1, 1], [], []>} : vector<128x4xbf16>, vector<4x8xbf16>, vector<128x8xf32> -> vector<128x8xf32>
    %43 = arith.addf %37, %42 : vector<128x8xf32>
    %44 = vector.extract_strided_slice %14 {offsets = [1, 2, 0], sizes = [8, 16, 4], strides = [1, 1, 1]} : vector<10x18x4xbf16> to vector<8x16x4xbf16>
    %45 = vector.shape_cast %44 : vector<8x16x4xbf16> to vector<128x4xbf16>
    %c5 = arith.constant 5 : index
    %c0_29 = arith.constant 0 : index
    %c0_30 = arith.constant 0 : index
    %46 = vector.load %arg5[%c5, %c0_29, %c0_30] : memref<9x4x8xbf16, #tpu.memory_space<vmem>>, vector<1x4x8xbf16>
    %47 = vector.shape_cast %46 : vector<1x4x8xbf16> to vector<4x8xbf16>
    %cst_31 = arith.constant dense<0.000000e+00> : vector<128x8xf32>
    %48 = tpu.matmul %45, %47, %cst_31 {dimension_numbers = #tpu.dot_dimension_numbers<[1], [0], [0], [1], [0, 0, 1, 1], [], []>} : vector<128x4xbf16>, vector<4x8xbf16>, vector<128x8xf32> -> vector<128x8xf32>
    %49 = arith.addf %43, %48 : vector<128x8xf32>
    %50 = vector.extract_strided_slice %14 {offsets = [2, 0, 0], sizes = [8, 16, 4], strides = [1, 1, 1]} : vector<10x18x4xbf16> to vector<8x16x4xbf16>
    %51 = vector.shape_cast %50 : vector<8x16x4xbf16> to vector<128x4xbf16>
    %c6 = arith.constant 6 : index
    %c0_32 = arith.constant 0 : index
    %c0_33 = arith.constant 0 : index
    %52 = vector.load %arg5[%c6, %c0_32, %c0_33] : memref<9x4x8xbf16, #tpu.memory_space<vmem>>, vector<1x4x8xbf16>
    %53 = vector.shape_cast %52 : vector<1x4x8xbf16> to vector<4x8xbf16>
    %cst_34 = arith.constant dense<0.000000e+00> : vector<128x8xf32>
    %54 = tpu.matmul %51, %53, %cst_34 {dimension_numbers = #tpu.dot_dimension_numbers<[1], [0], [0], [1], [0, 0, 1, 1], [], []>} : vector<128x4xbf16>, vector<4x8xbf16>, vector<128x8xf32> -> vector<128x8xf32>
    %55 = arith.addf %49, %54 : vector<128x8xf32>
    %56 = vector.extract_strided_slice %14 {offsets = [2, 1, 0], sizes = [8, 16, 4], strides = [1, 1, 1]} : vector<10x18x4xbf16> to vector<8x16x4xbf16>
    %57 = vector.shape_cast %56 : vector<8x16x4xbf16> to vector<128x4xbf16>
    %c7 = arith.constant 7 : index
    %c0_35 = arith.constant 0 : index
    %c0_36 = arith.constant 0 : index
    %58 = vector.load %arg5[%c7, %c0_35, %c0_36] : memref<9x4x8xbf16, #tpu.memory_space<vmem>>, vector<1x4x8xbf16>
    %59 = vector.shape_cast %58 : vector<1x4x8xbf16> to vector<4x8xbf16>
    %cst_37 = arith.constant dense<0.000000e+00> : vector<128x8xf32>
    %60 = tpu.matmul %57, %59, %cst_37 {dimension_numbers = #tpu.dot_dimension_numbers<[1], [0], [0], [1], [0, 0, 1, 1], [], []>} : vector<128x4xbf16>, vector<4x8xbf16>, vector<128x8xf32> -> vector<128x8xf32>
    %61 = arith.addf %55, %60 : vector<128x8xf32>
    %62 = vector.extract_strided_slice %14 {offsets = [2, 2, 0], sizes = [8, 16, 4], strides = [1, 1, 1]} : vector<10x18x4xbf16> to vector<8x16x4xbf16>
    %63 = vector.shape_cast %62 : vector<8x16x4xbf16> to vector<128x4xbf16>
    %c8 = arith.constant 8 : index
    %c0_38 = arith.constant 0 : index
    %c0_39 = arith.constant 0 : index
    %64 = vector.load %arg5[%c8, %c0_38, %c0_39] : memref<9x4x8xbf16, #tpu.memory_space<vmem>>, vector<1x4x8xbf16>
    %65 = vector.shape_cast %64 : vector<1x4x8xbf16> to vector<4x8xbf16>
    %cst_40 = arith.constant dense<0.000000e+00> : vector<128x8xf32>
    %66 = tpu.matmul %63, %65, %cst_40 {dimension_numbers = #tpu.dot_dimension_numbers<[1], [0], [0], [1], [0, 0, 1, 1], [], []>} : vector<128x4xbf16>, vector<4x8xbf16>, vector<128x8xf32> -> vector<128x8xf32>
    %67 = arith.addf %61, %66 : vector<128x8xf32>
    %c0_41 = arith.constant 0 : index
    %c0_42 = arith.constant 0 : index
    %c0_43 = arith.constant 0 : index
    %68 = vector.load %arg6[%c0_41, %c0_42, %c0_43] : memref<1x1x8xf32, #tpu.memory_space<vmem>>, vector<1x1x8xf32>
    %69 = vector.shape_cast %68 : vector<1x1x8xf32> to vector<1x8xf32>
    %70 = vector.broadcast %69 : vector<1x8xf32> to vector<128x8xf32>
    %71 = arith.addf %67, %70 : vector<128x8xf32>
    %72 = arith.mulf %71, %71 : vector<128x8xf32>
    %cst_44 = arith.constant dense<0.000000e+00> : vector<128xf32>
    %73 = vector.multi_reduction <add>, %72, %cst_44 [1] : vector<128x8xf32> to vector<128xf32>
    %74 = vector.shape_cast %73 : vector<128xf32> to vector<128x1xf32>
    %cst_45 = arith.constant 1.000000e-24 : f32
    %75 = vector.broadcast %cst_45 : f32 to vector<128x1xf32>
    %76 = arith.maximumf %74, %75 : vector<128x1xf32>
    %77 = math.rsqrt %76 : vector<128x1xf32>
    %78 = vector.broadcast %77 : vector<128x1xf32> to vector<128x8xf32>
    %79 = arith.mulf %71, %78 : vector<128x8xf32>
    %c0_46 = arith.constant 0 : index
    %c0_47 = arith.constant 0 : index
    %c0_48 = arith.constant 0 : index
    %80 = vector.load %arg7[%c0_46, %c0_47, %c0_48] : memref<1x1x8xf32, #tpu.memory_space<vmem>>, vector<1x1x8xf32>
    %81 = vector.shape_cast %80 : vector<1x1x8xf32> to vector<1x8xf32>
    %82 = vector.broadcast %81 : vector<1x8xf32> to vector<128x8xf32>
    %83 = arith.mulf %79, %82 : vector<128x8xf32>
    %c0_49 = arith.constant 0 : index
    %c0_50 = arith.constant 0 : index
    %c0_51 = arith.constant 0 : index
    %84 = vector.load %arg8[%c0_49, %c0_50, %c0_51] : memref<1x1x8xf32, #tpu.memory_space<vmem>>, vector<1x1x8xf32>
    %85 = vector.shape_cast %84 : vector<1x1x8xf32> to vector<1x8xf32>
    %86 = vector.broadcast %85 : vector<1x8xf32> to vector<128x8xf32>
    %87 = arith.addf %83, %86 : vector<128x8xf32>
    %88 = arith.negf %87 : vector<128x8xf32>
    %89 = math.exp %88 : vector<128x8xf32>
    %cst_52 = arith.constant 1.000000e+00 : f32
    %90 = vector.broadcast %cst_52 : f32 to vector<128x8xf32>
    %91 = arith.addf %90, %89 : vector<128x8xf32>
    %92 = arith.divf %90, %91 : vector<128x8xf32>
    %93 = arith.mulf %87, %92 : vector<128x8xf32>
    %94 = vector.shape_cast %93 : vector<128x8xf32> to vector<8x16x8xf32>
    %95 = arith.truncf %94 : vector<8x16x8xf32> to vector<8x16x8xbf16>
    %c0_53 = arith.constant 0 : index
    %c0_54 = arith.constant 0 : index
    %c0_55 = arith.constant 0 : index
    %c0_56 = arith.constant 0 : index
    %96 = vector.load %arg9[%c0_53, %c0_54, %c0_55, %c0_56] : memref<1x8x16x8xbf16, #tpu.memory_space<vmem>>, vector<1x8x16x8xbf16>
    %97 = vector.shape_cast %96 : vector<1x8x16x8xbf16> to vector<8x16x8xbf16>
    %98 = vector.shape_cast %95 : vector<8x16x8xbf16> to vector<1x8x16x8xbf16>
    tpu.vector_store %arg9[%c0_53, %c0_54, %c0_55, %c0_56], %98 {strides = array<i32>} : memref<1x8x16x8xbf16, #tpu.memory_space<vmem>>, vector<1x8x16x8xbf16>,
    return
  }
  func.func @transform_0(%arg0: i32, %arg1: i32) -> (i32, i32, i32, i32) {
    %c0_i32 = arith.constant 0 : i32
    %c0_i32_0 = arith.constant 0 : i32
    %c0_i32_1 = arith.constant 0 : i32
    return %arg0, %arg1, %c0_i32, %c0_i32_0 : i32, i32, i32, i32
  }
  func.func @transform_1(%arg0: i32, %arg1: i32) -> (i32, i32, i32, i32) {
    %c8_i32 = arith.constant 8 : i32
    %0 = arith.muli %arg1, %c8_i32 : i32
    %c1_i32 = arith.constant 1 : i32
    %1 = arith.subi %0, %c1_i32 : i32
    %c0_i32 = arith.constant 0 : i32
    %2 = arith.maxsi %1, %c0_i32 : i32
    %c0_i32_0 = arith.constant 0 : i32
    %c0_i32_1 = arith.constant 0 : i32
    %c0_i32_2 = arith.constant 0 : i32
    return %arg0, %2, %c0_i32_0, %c0_i32_1 : i32, i32, i32, i32
  }
  func.func @transform_2(%arg0: i32, %arg1: i32) -> (i32, i32, i32, i32) {
    %c8_i32 = arith.constant 8 : i32
    %0 = arith.muli %arg1, %c8_i32 : i32
    %c8_i32_0 = arith.constant 8 : i32
    %1 = arith.addi %0, %c8_i32_0 : i32
    %c15_i32 = arith.constant 15 : i32
    %2 = arith.minsi %1, %c15_i32 : i32
    %c0_i32 = arith.constant 0 : i32
    %c0_i32_1 = arith.constant 0 : i32
    %c0_i32_2 = arith.constant 0 : i32
    return %arg0, %2, %c0_i32, %c0_i32_1 : i32, i32, i32, i32
  }
  func.func @transform_3(%arg0: i32, %arg1: i32) -> (i32, i32, i32) {
    %c0_i32 = arith.constant 0 : i32
    %c0_i32_0 = arith.constant 0 : i32
    %c0_i32_1 = arith.constant 0 : i32
    %c0_i32_2 = arith.constant 0 : i32
    return %c0_i32, %c0_i32_0, %c0_i32_1 : i32, i32, i32
  }
  func.func @transform_4(%arg0: i32, %arg1: i32) -> (i32, i32, i32) {
    %c0_i32 = arith.constant 0 : i32
    %c0_i32_0 = arith.constant 0 : i32
    %c0_i32_1 = arith.constant 0 : i32
    %c0_i32_2 = arith.constant 0 : i32
    return %c0_i32, %c0_i32_0, %c0_i32_1 : i32, i32, i32
  }
  func.func @transform_5(%arg0: i32, %arg1: i32) -> (i32, i32, i32) {
    %c0_i32 = arith.constant 0 : i32
    %c0_i32_0 = arith.constant 0 : i32
    %c0_i32_1 = arith.constant 0 : i32
    return %arg0, %c0_i32, %c0_i32_0 : i32, i32, i32
  }
  func.func @transform_6(%arg0: i32, %arg1: i32) -> (i32, i32, i32) {
    %c0_i32 = arith.constant 0 : i32
    %c0_i32_0 = arith.constant 0 : i32
    %c0_i32_1 = arith.constant 0 : i32
    return %arg0, %c0_i32, %c0_i32_0 : i32, i32, i32
  }
  func.func @transform_7(%arg0: i32, %arg1: i32) -> (i32, i32, i32, i32) {
    %c0_i32 = arith.constant 0 : i32
    %c0_i32_0 = arith.constant 0 : i32
    %c0_i32_1 = arith.constant 0 : i32
    return %arg0, %arg1, %c0_i32, %c0_i32_0 : i32, i32, i32, i32
  }
}

</mosaic_0001>

<llo_original>
// kernel: resnet_block_forward.3
$region0: #{resnet_block_forward.3}
  #allocation0 [shape = 'u32[]', space=smem, size = 0x4, offset = 0x4, fixed_abs, tag = 'smem constant byte address 0x4 - core index']
  #allocation1 [shape = 'u32[72,128]{1,0:T(1,128)}', space=vmem, size = 0x9000, scoped, tag = 'internal scratch']
  %s0 = inlined_call_operand.vmem [shape: f32[2,8], index: 0, kind: input, shape index: {}]
  %s1 = inlined_call_operand.vmem [shape: f32[8,16], index: 1, kind: input, shape index: {}]
  %s2 = inlined_call_operand.vmem [shape: f32[1,16], index: 2, kind: input, shape index: {}]
  %s3 = inlined_call_operand.vmem [shape: f32[2,16], index: 3, kind: output, shape index: {}]
  %s4 = sld [smem:[#allocation0]]
  $region22: #{resnet_block_forward.3} parent=0
    _
  %s6 = ssub.s32 1, %s4
  %s7 = scalar_select 0, %s6, %s4
  // Predicated region
  $region2: #{resnet_block_forward.3} parent=0 // pred_check
    _
  $region3: #{resnet_block_forward.3} parent=0 // pred_check_branch
    %9 = sbr.rel (0) target = $region5
  $region4: #{resnet_block_forward.3} parent=0 // pred_region
    _
  $region5: #{resnet_block_forward.3} parent=0 // pred_fallthru
    _
  // Predicated region
  $region6: #{resnet_block_forward.3} parent=0 // pred_check
    _
  $region7: #{resnet_block_forward.3} parent=0 // pred_check_branch
    %11 = sbr.rel (0) target = $region9
  $region8: #{resnet_block_forward.3} parent=0 // pred_region
    _
  $region9: #{resnet_block_forward.3} parent=0 // pred_fallthru
    _
  // Predicated region
  $region10: #{resnet_block_forward.3} parent=0 // pred_check
    _
  $region11: #{resnet_block_forward.3} parent=0 // pred_check_branch
    %13 = sbr.rel (0) target = $region13
  $region12: #{resnet_block_forward.3} parent=0 // pred_region
    _
  $region13: #{resnet_block_forward.3} parent=0 // pred_fallthru
    _
  %v14 = vld [vmem:[%s0] sm:$0x3]
  %v15 = vxor.u32 %v14, 2147483648
  %v16 = vmul.f32 %v15, 1.442695
  %v17 = vpow.pop %v16
  %v18 = vadd.f32 %v17, 1.0
  %v19 = vrcp.pop %v18
  %v20 = vmul.f32 %v18, %v19
  %v21 = vsub.f32 1.0, %v20
  %v22 = vmul.f32 %v19, %v21
  %v23 = vadd.f32 %v19, %v22
  %vm24 = vweird.f32 %v18
  %vm25 = vweird.f32 %v19
  %vm26 = vmor %vm24, %vm25
  %v27 = vsel %vm26, %v19, %v23
  %v28 = vand.u32 2147483647, %v18
  %vm29 = vcmp.eq.f32.partialorder %v28, 8.507059e+37
  %v30 = vand.u32 %v18, 2147483648
  %v31 = vor.u32 1.1754944e-38, %v30
  %v32 = vsel %vm29, %v31, %v27
  %v33 = vmul.f32 1.0, %v32
  %v34 = vmul.f32 %v14, %v33
  %v35 = vld [vmem:[%s1] sm:$0xff]
  %v36 = vld [vmem:[%s2] sm:$0x1]
  %v38 = vperm.slane %v36, 0
  %vm40 = vcmask 64512
  %v42 = vsel %vm40, %v34, 0
  %44 = vmatpush.msra.mxu0 0.0
  %45 = vmatpush.msra.mxu0 0.0
  %46 = vmatpush.msra.mxu0 0.0
  %47 = vmatpush.msra.mxu0 0.0
  %48 = vmatpush.msra.mxu0 0.0
  %49 = vmatpush.msra.mxu0 0.0
  %50 = vmatpush.msra.mxu0 0.0
  %51 = vmatpush.msra.mxu0 0.0
  %52 = vmatpush.msra.mxu0 0.0
  %53 = vmatpush.msra.mxu0 0.0
  %54 = vmatpush.msra.mxu0 0.0
  %55 = vmatpush.msra.mxu0 0.0
  %56 = vmatpush.msra.mxu0 0.0
  %57 = vmatpush.msra.mxu0 0.0
  %58 = vmatpush.msra.mxu0 0.0
  %59 = vmatpush.msra.mxu0 %v35
  %60 = vmatmul.f32.gmra.mxu0 %v42
  %v61 = vpop.f32.mrf.mxu0
  %v62 = vadd.f32 %v38, %v61
  %63 = vdwg.mxu0
  %vm64 = vcmask 123904
  %65 = vst.msk [vmem:[%s3] sm:$0x3] %vm64, %v62
  // Predicated region
  $region14: #{resnet_block_forward.3} parent=0 // pred_check
    _
  $region15: #{resnet_block_forward.3} parent=0 // pred_check_branch
    %67 = sbr.rel (0) target = $region17
  $region16: #{resnet_block_forward.3} parent=0 // pred_region
    _
  $region17: #{resnet_block_forward.3} parent=0 // pred_fallthru
    _
  // Predicated region
  $region18: #{resnet_block_forward.3} parent=0 // pred_check
    _
  $region19: #{resnet_block_forward.3} parent=0 // pred_check_branch
    %69 = sbr.rel (0) target = $region21
  $region20: #{resnet_block_forward.3} parent=0 // pred_region
    _
  $region21: #{resnet_block_forward.3} parent=0 // pred_fallthru
    _

// kernel: resnet_block_forward.4
$region0: #{resnet_block_forward.4}
  #allocation0 [shape = 'u32[]', space=smem, size = 0x4, offset = 0x4, fixed_abs, tag = 'smem constant byte address 0x4 - core index']
  #allocation1 [shape = 'u32[72,128]{1,0:T(1,128)}', space=vmem, size = 0x9000, scoped, tag = 'internal scratch']
  %s0 = inlined_call_operand.vmem [shape: bf16[2,16,16,4], index: 0, kind: input, shape index: {}, may-alias: {0,1,2}]
  %s1 = inlined_call_operand.vmem [shape: bf16[2,16,16,4], index: 1, kind: input, shape index: {}, may-alias: {0,1,2}]
  %s2 = inlined_call_operand.vmem [shape: bf16[2,16,16,4], index: 2, kind: input, shape index: {}, may-alias: {0,1,2}]
  %s3 = inlined_call_operand.vmem [shape: bf16[9,4,8], index: 3, kind: input, shape index: {}]
  %s4 = inlined_call_operand.vmem [shape: f32[1,1,8], index: 4, kind: input, shape index: {}]
  %s5 = inlined_call_operand.vmem [shape: f32[2,1,8], index: 5, kind: input, shape index: {}]
  %s6 = inlined_call_operand.vmem [shape: f32[2,1,8], index: 6, kind: input, shape index: {}]
  %s7 = inlined_call_operand.vmem [shape: bf16[2,16,16,8], index: 7, kind: output, shape index: {}]
  %s8 = sld [smem:[#allocation0]]
  $region61: #{resnet_block_forward.4} parent=0
    _
  %s10 = ssub.s32 1, %s8
  %s11 = scalar_select 0, %s10, %s8
  loop: start=0, step=1, limit=6
  $region2: #{resnet_block_forward.4} parent=0 // loop_pre_header
    _
  $region3: #{resnet_block_forward.4} parent=0 // loop_header
    %s13 = sphi 0, %s17
    %p14 = scmp.ge.s32.totalorder %s13, 6
    %s20 = sphi 0, %s32
    %s21 = sphi 0, %s28
    %s22 = sphi 0, %s20
    %s23 = sphi 0, %s21
    %s24 = sphi 0, %s22
    %s25 = sphi 0, %s23
    %s37 = sphi 0, %s39
    %s40 = sphi 0, %s37
    %s41 = sphi 0, %s40
    %s57 = sphi 0, %s41
    %s73 = sphi 0, %s75
    %s76 = sphi 0, %s73
    %s77 = sphi 0, %s76
    %s93 = sphi 0, %s77
    %s109 = sphi 0, %s111
    %s112 = sphi 0, %s109
    %s113 = sphi 0, %s112
    %s129 = sphi 0, %s113
    %s133 = sphi 0, %s133
    %s135 = sphi 0, %s133
    %s136 = sphi 0, %s135
    %s150 = sphi 0, %s136
    %s154 = sphi 0, %s154
    %s156 = sphi 0, %s154
    %s157 = sphi 0, %s156
    %s171 = sphi 0, %s157
    %s177 = sphi 0, %s179
    %s180 = sphi 0, %s177
    %s181 = sphi 0, %s180
    %s197 = sphi 0, %s181
    %s203 = sphi 0, %s205
    %s206 = sphi 0, %s203
    %s207 = sphi 0, %s206
    %s223 = sphi 0, %s207
    %s231 = sphi 0, %s233
    %s234 = sphi 0, %s231
    %s235 = sphi 0, %s234
    %s251 = sphi 0, %s235
  $region4: #{resnet_block_forward.4} parent=0 // loop_header_branch
    %16 = sbr.rel (%p14) target = $region8
  $region5: #{resnet_block_forward.4} parent=0 // loop_body
    %s18 = ssub.s32 %s13, 1
    %s19 = ssub.s32 %s13, 2
    %s26 = sadd.s32 1, %s21
    %p27 = scmp.ge.s32.totalorder %s26, 2
    %s28 = scalar_select %p27, 0, %s26
    %s29 = sadd.s32 1, %s20
    %s30 = scalar_select %p27, %s29, %s20
    %p31 = scmp.ge.s32.totalorder %s30, 2
    %s32 = scalar_select %p31, 0, %s30
    %s33 = ssub.s32 %s20, %s32
    %s34 = ssub.s32 %s21, %s28
    %s35 = sor.u32 %s33, %s34
    %p36 = scmp.eq.s32.totalorder %s35, 0
    %s38 = sadd.s32 %s37, 1
    %s39 = scalar_select %p36, %s37, %s38
    %p42 = pneg %p36
    %p43 = scmp.eq.s32.totalorder %s13, 3
    %p44 = por %p42, %p43
    %p45 = scmp.ne.s32.totalorder %s37, %s40
    %p46 = scmp.eq.s32.totalorder %s13, 0
    %p47 = por %p45, %p46
    %p48 = scmp.ne.s32.totalorder %s37, %s40
    %p49 = scmp.eq.s32.totalorder %s18, 3
    %p50 = por %p48, %p49
    %p51 = scmp.ne.s32.totalorder %s40, %s41
    %p52 = scmp.eq.s32.totalorder %s18, 0
    %p53 = por %p51, %p52
    %p54 = scmp.ne.s32.totalorder %s40, %s41
    %p55 = scmp.eq.s32.totalorder %s19, 3
    %p56 = por %p54, %p55
    %p58 = scmp.ne.s32.totalorder %s41, %s57
    %p59 = scmp.eq.s32.totalorder %s19, 0
    %p60 = por %p58, %p59
    %s61 = smul.u32 %s21, 8
    %s62 = ssub.s32 %s61, 1
    %p63 = scmp.gt.s32.totalorder %s62, 0
    %s64 = scalar_select %p63, %s62, 0
    %s65 = smul.u32 %s28, 8
    %s66 = ssub.s32 %s65, 1
    %p67 = scmp.gt.s32.totalorder %s66, 0
    %s68 = scalar_select %p67, %s66, 0
    %s69 = ssub.s32 %s20, %s32
    %s70 = ssub.s32 %s64, %s68
    %s71 = sor.u32 %s69, %s70
    %p72 = scmp.eq.s32.totalorder %s71, 0
    %s74 = sadd.s32 %s73, 1
    %s75 = scalar_select %p72, %s73, %s74
    %p78 = pneg %p72
    %p79 = scmp.eq.s32.totalorder %s13, 3
    %p80 = por %p78, %p79
    %p81 = scmp.ne.s32.totalorder %s73, %s76
    %p82 = scmp.eq.s32.totalorder %s13, 0
    %p83 = por %p81, %p82
    %p84 = scmp.ne.s32.totalorder %s73, %s76
    %p85 = scmp.eq.s32.totalorder %s18, 3
    %p86 = por %p84, %p85
    %p87 = scmp.ne.s32.totalorder %s76, %s77
    %p88 = scmp.eq.s32.totalorder %s18, 0
    %p89 = por %p87, %p88
    %p90 = scmp.ne.s32.totalorder %s76, %s77
    %p91 = scmp.eq.s32.totalorder %s19, 3
    %p92 = por %p90, %p91
    %p94 = scmp.ne.s32.totalorder %s77, %s93
    %p95 = scmp.eq.s32.totalorder %s19, 0
    %p96 = por %p94, %p95
    %s97 = smul.u32 %s21, 8
    %s98 = sadd.s32 %s97, 8
    %p99 = scmp.lt.s32.totalorder %s98, 15
    %s100 = scalar_select %p99, %s98, 15
    %s101 = smul.u32 %s28, 8
    %s102 = sadd.s32 %s101, 8
    %p103 = scmp.lt.s32.totalorder %s102, 15
    %s104 = scalar_select %p103, %s102, 15
    %s105 = ssub.s32 %s20, %s32
    %s106 = ssub.s32 %s100, %s104
    %s107 = sor.u32 %s105, %s106
    %p108 = scmp.eq.s32.totalorder %s107, 0
    %s110 = sadd.s32 %s109, 1
    %s111 = scalar_select %p108, %s109, %s110
    %p114 = pneg %p108
    %p115 = scmp.eq.s32.totalorder %s13, 3
    %p116 = por %p114, %p115
    %p117 = scmp.ne.s32.totalorder %s109, %s112
    %p118 = scmp.eq.s32.totalorder %s13, 0
    %p119 = por %p117, %p118
    %p120 = scmp.ne.s32.totalorder %s109, %s112
    %p121 = scmp.eq.s32.totalorder %s18, 3
    %p122 = por %p120, %p121
    %p123 = scmp.ne.s32.totalorder %s112, %s113
    %p124 = scmp.eq.s32.totalorder %s18, 0
    %p125 = por %p123, %p124
    %p126 = scmp.ne.s32.totalorder %s112, %s113
    %p127 = scmp.eq.s32.totalorder %s19, 3
    %p128 = por %p126, %p127
    %p130 = scmp.ne.s32.totalorder %s113, %s129
    %p131 = scmp.eq.s32.totalorder %s19, 0
    %p132 = por %p130, %p131
    %s134 = sadd.s32 %s133, 1
    %p137 = scmp.eq.s32.totalorder %s13, 3
    %p138 = scmp.ne.s32.totalorder %s133, %s135
    %p139 = scmp.eq.s32.totalorder %s13, 0
    %p140 = por %p138, %p139
    %p141 = scmp.ne.s32.totalorder %s133, %s135
    %p142 = scmp.eq.s32.totalorder %s18, 3
    %p143 = por %p141, %p142
    %p144 = scmp.ne.s32.totalorder %s135, %s136
    %p145 = scmp.eq.s32.totalorder %s18, 0
    %p146 = por %p144, %p145
    %p147 = scmp.ne.s32.totalorder %s135, %s136
    %p148 = scmp.eq.s32.totalorder %s19, 3
    %p149 = por %p147, %p148
    %p151 = scmp.ne.s32.totalorder %s136, %s150
    %p152 = scmp.eq.s32.totalorder %s19, 0
    %p153 = por %p151, %p152
    %s155 = sadd.s32 %s154, 1
    %p158 = scmp.eq.s32.totalorder %s13, 3
    %p159 = scmp.ne.s32.totalorder %s154, %s156
    %p160 = scmp.eq.s32.totalorder %s13, 0
    %p161 = por %p159, %p160
    %p162 = scmp.ne.s32.totalorder %s154, %s156
    %p163 = scmp.eq.s32.totalorder %s18, 3
    %p164 = por %p162, %p163
    %p165 = scmp.ne.s32.totalorder %s156, %s157
    %p166 = scmp.eq.s32.totalorder %s18, 0
    %p167 = por %p165, %p166
    %p168 = scmp.ne.s32.totalorder %s156, %s157
    %p169 = scmp.eq.s32.totalorder %s19, 3
    %p170 = por %p168, %p169
    %p172 = scmp.ne.s32.totalorder %s157, %s171
    %p173 = scmp.eq.s32.totalorder %s19, 0
    %p174 = por %p172, %p173
    %s175 = ssub.s32 %s20, %s32
    %p176 = scmp.eq.s32.totalorder %s175, 0
    %s178 = sadd.s32 %s177, 1
    %s179 = scalar_select %p176, %s177, %s178
    %p182 = pneg %p176
    %p183 = scmp.eq.s32.totalorder %s13, 3
    %p184 = por %p182, %p183
    %p185 = scmp.ne.s32.totalorder %s177, %s180
    %p186 = scmp.eq.s32.totalorder %s13, 0
    %p187 = por %p185, %p186
    %p188 = scmp.ne.s32.totalorder %s177, %s180
    %p189 = scmp.eq.s32.totalorder %s18, 3
    %p190 = por %p188, %p189
    %p191 = scmp.ne.s32.totalorder %s180, %s181
    %p192 = scmp.eq.s32.totalorder %s18, 0
    %p193 = por %p191, %p192
    %p194 = scmp.ne.s32.totalorder %s180, %s181
    %p195 = scmp.eq.s32.totalorder %s19, 3
    %p196 = por %p194, %p195
    %p198 = scmp.ne.s32.totalorder %s181, %s197
    %p199 = scmp.eq.s32.totalorder %s19, 0
    %p200 = por %p198, %p199
    %s201 = ssub.s32 %s20, %s32
    %p202 = scmp.eq.s32.totalorder %s201, 0
    %s204 = sadd.s32 %s203, 1
    %s205 = scalar_select %p202, %s203, %s204
    %p208 = pneg %p202
    %p209 = scmp.eq.s32.totalorder %s13, 3
    %p210 = por %p208, %p209
    %p211 = scmp.ne.s32.totalorder %s203, %s206
    %p212 = scmp.eq.s32.totalorder %s13, 0
    %p213 = por %p211, %p212
    %p214 = scmp.ne.s32.totalorder %s203, %s206
    %p215 = scmp.eq.s32.totalorder %s18, 3
    %p216 = por %p214, %p215
    %p217 = scmp.ne.s32.totalorder %s206, %s207
    %p218 = scmp.eq.s32.totalorder %s18, 0
    %p219 = por %p217, %p218
    %p220 = scmp.ne.s32.totalorder %s206, %s207
    %p221 = scmp.eq.s32.totalorder %s19, 3
    %p222 = por %p220, %p221
    %p224 = scmp.ne.s32.totalorder %s207, %s223
    %p225 = scmp.eq.s32.totalorder %s19, 0
    %p226 = por %p224, %p225
    %s227 = ssub.s32 %s20, %s32
    %s228 = ssub.s32 %s21, %s28
    %s229 = sor.u32 %s227, %s228
    %p230 = scmp.eq.s32.totalorder %s229, 0
    %s232 = sadd.s32 %s231, 1
    %s233 = scalar_select %p230, %s231, %s232
    %p236 = pneg %p230
    %p237 = scmp.eq.s32.totalorder %s13, 3
    %p238 = por %p236, %p237
    %p239 = scmp.ne.s32.totalorder %s231, %s234
    %p240 = scmp.eq.s32.totalorder %s13, 0
    %p241 = por %p239, %p240
    %p242 = scmp.ne.s32.totalorder %s231, %s234
    %p243 = scmp.eq.s32.totalorder %s18, 3
    %p244 = por %p242, %p243
    %p245 = scmp.ne.s32.totalorder %s234, %s235
    %p246 = scmp.eq.s32.totalorder %s18, 0
    %p247 = por %p245, %p246
    %p248 = scmp.ne.s32.totalorder %s234, %s235
    %p249 = scmp.eq.s32.totalorder %s19, 3
    %p250 = por %p248, %p249
    %p252 = scmp.ne.s32.totalorder %s235, %s251
    %p253 = scmp.eq.s32.totalorder %s19, 0
    %p254 = por %p252, %p253
    %p255 = scmp.le.s32.totalorder 1, %s13
    %p256 = scmp.lt.s32.totalorder %s13, 5
    %p257 = pnand %p255, %p256
    %p258 = pneg %p257
    // Predicated region
    $region9: #{resnet_block_forward.4} parent=5 // pred_check
      _
    $region10: #{resnet_block_forward.4} parent=5 // pred_check_branch
      %260 = sbr.rel (%p257) target = $region12
    $region11: #{resnet_block_forward.4} parent=5 // pred_region
      %s261 = ssub.s32 %s13, 1
      // Predicated region
      $region13: #{resnet_block_forward.4} parent=11 // pred_check
        %p262 = pneg %p146
      $region14: #{resnet_block_forward.4} parent=11 // pred_check_branch
        %264 = sbr.rel (%p262) target = $region16
      $region15: #{resnet_block_forward.4} parent=11 // pred_region
        _
      $region16: #{resnet_block_forward.4} parent=11 // pred_fallthru
        _
      // Predicated region
      $region17: #{resnet_block_forward.4} parent=11 // pred_check
        %p265 = pneg %p167
      $region18: #{resnet_block_forward.4} parent=11 // pred_check_branch
        %267 = sbr.rel (%p265) target = $region20
      $region19: #{resnet_block_forward.4} parent=11 // pred_region
        _
      $region20: #{resnet_block_forward.4} parent=11 // pred_fallthru
        _
    $region12: #{resnet_block_forward.4} parent=5 // pred_fallthru
      _
    %p268 = scmp.lt.s32.totalorder %s13, 4
    // Predicated region
    $region21: #{resnet_block_forward.4} parent=5 // pred_check
      %p269 = pneg %p268
    $region22: #{resnet_block_forward.4} parent=5 // pred_check_branch
      %271 = sbr.rel (%p269) target = $region24
    $region23: #{resnet_block_forward.4} parent=5 // pred_region
      // Predicated region
      $region25: #{resnet_block_forward.4} parent=23 // pred_check
        %p272 = pneg %p47
      $region26: #{resnet_block_forward.4} parent=23 // pred_check_branch
        %274 = sbr.rel (%p272) target = $region28
      $region27: #{resnet_block_forward.4} parent=23 // pred_region
        %s275 = smul.u32 8, %s21
        %p276 = scmp.lt.s32.totalorder %s20, 1
        %s277 = scalar_select %p276, %s20, 1
        %p278 = scmp.lt.s32.totalorder %s275, 15
        %s279 = scalar_select %p278, %s275, 15
        %s280 = smul.addr %s279, 2
        %s281 = smul.addr %s277, 32
        %s282 = sadd.s32 %s280, %s281
        %s283 = smul.addr %s282, 4
        %s284 = scalar_lea.vmem %s0, %s283
        %s285 = smul.u32 8, %s21
      $region28: #{resnet_block_forward.4} parent=23 // pred_fallthru
        _
      // Predicated region
      $region29: #{resnet_block_forward.4} parent=23 // pred_check
        %p286 = pneg %p83
      $region30: #{resnet_block_forward.4} parent=23 // pred_check_branch
        %288 = sbr.rel (%p286) target = $region32
      $region31: #{resnet_block_forward.4} parent=23 // pred_region
        %s289 = smul.u32 %s21, 8
        %s290 = ssub.s32 %s289, 1
        %p291 = scmp.gt.s32.totalorder %s290, 0
        %s292 = scalar_select %p291, %s290, 0
        %p293 = scmp.lt.s32.totalorder %s20, 1
        %s294 = scalar_select %p293, %s20, 1
        %p295 = scmp.lt.s32.totalorder %s292, 15
        %s296 = scalar_select %p295, %s292, 15
        %s297 = smul.addr %s296, 2
        %s298 = smul.addr %s294, 32
        %s299 = sadd.s32 %s297, %s298
        %s300 = smul.addr %s299, 4
        %s301 = scalar_lea.vmem %s1, %s300
        %s302 = smul.u32 %s21, 8
        %s303 = ssub.s32 %s302, 1
        %p304 = scmp.gt.s32.totalorder %s303, 0
        %s305 = scalar_select %p304, %s303, 0
      $region32: #{resnet_block_forward.4} parent=23 // pred_fallthru
        _
      // Predicated region
      $region33: #{resnet_block_forward.4} parent=23 // pred_check
        %p306 = pneg %p119
      $region34: #{resnet_block_forward.4} parent=23 // pred_check_branch
        %308 = sbr.rel (%p306) target = $region36
      $region35: #{resnet_block_forward.4} parent=23 // pred_region
        %s309 = smul.u32 %s21, 8
        %s310 = sadd.s32 %s309, 8
        %p311 = scmp.lt.s32.totalorder %s310, 15
        %s312 = scalar_select %p311, %s310, 15
        %p313 = scmp.lt.s32.totalorder %s20, 1
        %s314 = scalar_select %p313, %s20, 1
        %p315 = scmp.lt.s32.totalorder %s312, 15
        %s316 = scalar_select %p315, %s312, 15
        %s317 = smul.addr %s316, 2
        %s318 = smul.addr %s314, 32
        %s319 = sadd.s32 %s317, %s318
        %s320 = smul.addr %s319, 4
        %s321 = scalar_lea.vmem %s2, %s320
        %s322 = smul.u32 %s21, 8
        %s323 = sadd.s32 %s322, 8
        %p324 = scmp.lt.s32.totalorder %s323, 15
        %s325 = scalar_select %p324, %s323, 15
      $region36: #{resnet_block_forward.4} parent=23 // pred_fallthru
        _
      // Predicated region
      $region37: #{resnet_block_forward.4} parent=23 // pred_check
        %p326 = pneg %p187
      $region38: #{resnet_block_forward.4} parent=23 // pred_check_branch
        %328 = sbr.rel (%p326) target = $region40
      $region39: #{resnet_block_forward.4} parent=23 // pred_region
        %p329 = scmp.lt.s32.totalorder %s20, 1
        %s330 = scalar_select %p329, %s20, 1
        %s331 = scalar_lea.vmem %s5, %s330
      $region40: #{resnet_block_forward.4} parent=23 // pred_fallthru
        _
      // Predicated region
      $region41: #{resnet_block_forward.4} parent=23 // pred_check
        %p332 = pneg %p213
      $region42: #{resnet_block_forward.4} parent=23 // pred_check_branch
        %334 = sbr.rel (%p332) target = $region44
      $region43: #{resnet_block_forward.4} parent=23 // pred_region
        %p335 = scmp.lt.s32.totalorder %s20, 1
        %s336 = scalar_select %p335, %s20, 1
        %s337 = scalar_lea.vmem %s6, %s336
      $region44: #{resnet_block_forward.4} parent=23 // pred_fallthru
        _
    $region24: #{resnet_block_forward.4} parent=5 // pred_fallthru
      _
    %p338 = scmp.le.s32.totalorder 1, %s13
    %p339 = scmp.lt.s32.totalorder %s13, 5
    %p340 = pnand %p338, %p339
    %p341 = pneg %p340
    // Predicated region
    $region45: #{resnet_block_forward.4} parent=5 // pred_check
      _
    $region46: #{resnet_block_forward.4} parent=5 // pred_check_branch
      %343 = sbr.rel (%p340) target = $region48
    $region47: #{resnet_block_forward.4} parent=5 // pred_region
      %s344 = ssub.s32 %s13, 1
      %s345 = smul.u32 8, %s23
      %p346 = scmp.lt.s32.totalorder %s22, 1
      %s347 = scalar_select %p346, %s22, 1
      %p348 = scmp.lt.s32.totalorder %s345, 15
      %s349 = scalar_select %p348, %s345, 15
      %s350 = smul.addr %s349, 2
      %s351 = smul.addr %s347, 32
      %s352 = sadd.s32 %s350, %s351
      %s353 = smul.addr %s352, 4
      %s354 = scalar_lea.vmem %s0, %s353
      %p355 = pneg %p53
      %p356 = pneg %p50
      %s357 = smul.u32 %s23, 8
      %s358 = ssub.s32 %s357, 1
      %p359 = scmp.gt.s32.totalorder %s358, 0
      %s360 = scalar_select %p359, %s358, 0
      %p361 = scmp.lt.s32.totalorder %s22, 1
      %s362 = scalar_select %p361, %s22, 1
      %p363 = scmp.lt.s32.totalorder %s360, 15
      %s364 = scalar_select %p363, %s360, 15
      %s365 = smul.addr %s364, 2
      %s366 = smul.addr %s362, 32
      %s367 = sadd.s32 %s365, %s366
      %s368 = smul.addr %s367, 4
      %s369 = scalar_lea.vmem %s1, %s368
      %p370 = pneg %p89
      %p371 = pneg %p86
      %s372 = smul.u32 %s23, 8
      %s373 = sadd.s32 %s372, 8
      %p374 = scmp.lt.s32.totalorder %s373, 15
      %s375 = scalar_select %p374, %s373, 15
      %p376 = scmp.lt.s32.totalorder %s22, 1
      %s377 = scalar_select %p376, %s22, 1
      %p378 = scmp.lt.s32.totalorder %s375, 15
      %s379 = scalar_select %p378, %s375, 15
      %s380 = smul.addr %s379, 2
      %s381 = smul.addr %s377, 32
      %s382 = sadd.s32 %s380, %s381
      %s383 = smul.addr %s382, 4
      %s384 = scalar_lea.vmem %s2, %s383
      %p385 = pneg %p125
      %p386 = pneg %p122
      %p387 = pneg %p146
      %p388 = pneg %p143
      %p389 = pneg %p167
      %p390 = pneg %p164
      %p391 = scmp.lt.s32.totalorder %s22, 1
      %s392 = scalar_select %p391, %s22, 1
      %s393 = scalar_lea.vmem %s5, %s392
      %p394 = pneg %p193
      %p395 = pneg %p190
      %p396 = scmp.lt.s32.totalorder %s22, 1
      %s397 = scalar_select %p396, %s22, 1
      %s398 = scalar_lea.vmem %s6, %s397
      %p399 = pneg %p219
      %p400 = pneg %p216
      %p401 = pneg %p247
      %p402 = pneg %p244
      %s403 = smul.u32 8, %s23
      %p404 = scmp.lt.s32.totalorder %s22, 1
      %s405 = scalar_select %p404, %s22, 1
      %p406 = scmp.lt.s32.totalorder %s403, 15
      %s407 = scalar_select %p406, %s403, 15
      %s408 = smul.addr %s407, 2
      %s409 = smul.addr %s405, 32
      %s410 = sadd.s32 %s408, %s409
      %s411 = smul.addr %s410, 4
      %s412 = scalar_lea.vmem %s7, %s411
      %s413 = smul.u32 8, %s23
      %p414 = scmp.lt.s32.totalorder %s22, 1
      %s415 = scalar_select %p414, %s22, 1
      %p416 = scmp.lt.s32.totalorder %s413, 15
      %s417 = scalar_select %p416, %s413, 15
      %s418 = smul.addr %s417, 2
      %s419 = smul.addr %s415, 32
      %s420 = sadd.s32 %s418, %s419
      %s421 = smul.addr %s420, 4
      %s422 = scalar_lea.vmem %s0, %s421
      %s423 = smul.u32 8, %s23
      %s424 = smul.u32 %s23, 8
      %s425 = ssub.s32 %s424, 1
      %p426 = scmp.gt.s32.totalorder %s425, 0
      %s427 = scalar_select %p426, %s425, 0
      %p428 = scmp.lt.s32.totalorder %s22, 1
      %s429 = scalar_select %p428, %s22, 1
      %p430 = scmp.lt.s32.totalorder %s427, 15
      %s431 = scalar_select %p430, %s427, 15
      %s432 = smul.addr %s431, 2
      %s433 = smul.addr %s429, 32
      %s434 = sadd.s32 %s432, %s433
      %s435 = smul.addr %s434, 4
      %s436 = scalar_lea.vmem %s1, %s435
      %s437 = smul.u32 %s23, 8
      %s438 = ssub.s32 %s437, 1
      %p439 = scmp.gt.s32.totalorder %s438, 0
      %s440 = scalar_select %p439, %s438, 0
      %s441 = smul.u32 %s23, 8
      %s442 = sadd.s32 %s441, 8
      %p443 = scmp.lt.s32.totalorder %s442, 15
      %s444 = scalar_select %p443, %s442, 15
      %p445 = scmp.lt.s32.totalorder %s22, 1
      %s446 = scalar_select %p445, %s22, 1
      %p447 = scmp.lt.s32.totalorder %s444, 15
      %s448 = scalar_select %p447, %s444, 15
      %s449 = smul.addr %s448, 2
      %s450 = smul.addr %s446, 32
      %s451 = sadd.s32 %s449, %s450
      %s452 = smul.addr %s451, 4
      %s453 = scalar_lea.vmem %s2, %s452
      %s454 = smul.u32 %s23, 8
      %s455 = sadd.s32 %s454, 8
      %p456 = scmp.lt.s32.totalorder %s455, 15
      %s457 = scalar_select %p456, %s455, 15
      %p458 = scmp.lt.s32.totalorder %s22, 1
      %s459 = scalar_select %p458, %s22, 1
      %s460 = scalar_lea.vmem %s5, %s459
      %p461 = scmp.lt.s32.totalorder %s22, 1
      %s462 = scalar_select %p461, %s22, 1
      %s463 = scalar_lea.vmem %s6, %s462
      %s464 = smul.u32 8, %s23
      %p465 = scmp.lt.s32.totalorder %s22, 1
      %s466 = scalar_select %p465, %s22, 1
      %p467 = scmp.lt.s32.totalorder %s464, 15
      %s468 = scalar_select %p467, %s464, 15
      %s469 = smul.addr %s468, 2
      %s470 = smul.addr %s466, 32
      %s471 = sadd.s32 %s469, %s470
      %s472 = smul.addr %s471, 4
      %s473 = scalar_lea.vmem %s7, %s472
      %s474 = smul.u32 8, %s23
      %v476 = vld [vmem:[%s436] sm:$0xf]
      %v477 = vld [vmem:[%s436 + $0x4] sm:$0xf]
      %v478 = vld [vmem:[%s453] sm:$0xf]
      %v479 = vld [vmem:[%s453 + $0x4] sm:$0xf]
      %p480 = scmp.gt.s32.totalorder %s23, 0
      %s481 = scalar_select %p480, 1, 0
      %v482 = vstv %s481
      %vm483 = vcmp.eq.s32.totalorder %v482, 1
      %v484 = vsel %vm483, %v476, 0
      %v485 = vsel %vm483, %v477, 0
      %p486 = scmp.lt.s32.totalorder %s23, 1
      %s487 = scalar_select %p486, 1, 0
      %v488 = vstv %s487
      %vm489 = vcmp.eq.s32.totalorder %v488, 1
      %v490 = vsel %vm489, %v478, 0
      %v491 = vsel %vm489, %v479, 0
      %v492 = vld [vmem:[%s422] sm:$0xf]
      %v493 = vld [vmem:[%s422 + $0x4] sm:$0xf]
      %v494 = vld [vmem:[%s422 + $0x8] sm:$0xf]
      %v495 = vld [vmem:[%s422 + $0xc] sm:$0xf]
      %v496 = vld [vmem:[%s422 + $0x10] sm:$0xf]
      %v497 = vld [vmem:[%s422 + $0x14] sm:$0xf]
      %v498 = vld [vmem:[%s422 + $0x18] sm:$0xf]
      %v499 = vld [vmem:[%s422 + $0x1c] sm:$0xf]
      %v500 = vld [vmem:[%s422 + $0x20] sm:$0xf]
      %v501 = vld [vmem:[%s422 + $0x24] sm:$0xf]
      %v502 = vld [vmem:[%s422 + $0x28] sm:$0xf]
      %v503 = vld [vmem:[%s422 + $0x2c] sm:$0xf]
      %v504 = vld [vmem:[%s422 + $0x30] sm:$0xf]
      %v505 = vld [vmem:[%s422 + $0x34] sm:$0xf]
      %v506 = vld [vmem:[%s422 + $0x38] sm:$0xf]
      %v507 = vld [vmem:[%s422 + $0x3c] sm:$0xf]
      %v528 = vunpack.c.l.b16 %v484
      %v529 = vunpack.c.l.b16 %v485
      %v530 = vunpack.c.l.b16 %v492
      %v531 = vunpack.c.l.b16 %v493
      %v532 = vunpack.c.l.b16 %v494
      %v533 = vunpack.c.l.b16 %v495
      %v534 = vunpack.c.l.b16 %v496
      %v535 = vunpack.c.l.b16 %v497
      %v536 = vunpack.c.l.b16 %v498
      %v537 = vunpack.c.l.b16 %v499
      %v538 = vunpack.c.l.b16 %v500
      %v539 = vunpack.c.l.b16 %v501
      %v540 = vunpack.c.l.b16 %v502
      %v541 = vunpack.c.l.b16 %v503
      %v542 = vunpack.c.l.b16 %v504
      %v543 = vunpack.c.l.b16 %v505
      %v544 = vunpack.c.l.b16 %v506
      %v545 = vunpack.c.l.b16 %v507
      %v546 = vunpack.c.l.b16 %v490
      %v547 = vunpack.c.l.b16 %v491
      %v548 = vpack.c.b16 %v529, %v528
      %v549 = vpack.c.b16 %v531, %v530
      %v550 = vpack.c.b16 %v533, %v532
      %v551 = vpack.c.b16 %v535, %v534
      %v552 = vpack.c.b16 %v537, %v536
      %v553 = vpack.c.b16 %v539, %v538
      %v554 = vpack.c.b16 %v541, %v540
      %v555 = vpack.c.b16 %v543, %v542
      %v556 = vpack.c.b16 %v545, %v544
      %v557 = vpack.c.b16 %v547, %v546
      %v559 = vshrl.u32 %v548, 16
      %v561 = vrot.slane %v559, 7
      %v562 = vshll.u32 %v548, 16
      %v564 = vor.u32 %v561, %v562
      %v566 = vshrl.u32 %v549, 16
      %v568 = vrot.slane %v566, 7
      %v569 = vshll.u32 %v549, 16
      %v571 = vor.u32 %v568, %v569
      %v573 = vshrl.u32 %v550, 16
      %v575 = vrot.slane %v573, 7
      %v576 = vshll.u32 %v550, 16
      %v578 = vor.u32 %v575, %v576
      %v580 = vshrl.u32 %v551, 16
      %v582 = vrot.slane %v580, 7
      %v583 = vshll.u32 %v551, 16
      %v585 = vor.u32 %v582, %v583
      %v587 = vshrl.u32 %v552, 16
      %v589 = vrot.slane %v587, 7
      %v590 = vshll.u32 %v552, 16
      %v592 = vor.u32 %v589, %v590
      %v594 = vshrl.u32 %v553, 16
      %v596 = vrot.slane %v594, 7
      %v597 = vshll.u32 %v553, 16
      %v599 = vor.u32 %v596, %v597
      %v601 = vshrl.u32 %v554, 16
      %v603 = vrot.slane %v601, 7
      %v604 = vshll.u32 %v554, 16
      %v606 = vor.u32 %v603, %v604
      %v608 = vshrl.u32 %v555, 16
      %v610 = vrot.slane %v608, 7
      %v611 = vshll.u32 %v555, 16
      %v613 = vor.u32 %v610, %v611
      %v615 = vshrl.u32 %v556, 16
      %v617 = vrot.slane %v615, 7
      %v618 = vshll.u32 %v556, 16
      %v620 = vor.u32 %v617, %v618
      %v622 = vshrl.u32 %v557, 16
      %v624 = vrot.slane %v622, 7
      %v625 = vshll.u32 %v557, 16
      %v627 = vor.u32 %v624, %v625
      %vm648 = vcmask 1040384
      %vm649 = vsmask.f32 256
      %vm650 = vmand %vm648, %vm649
      %v651 = vsel %vm650, 0, %v564
      %v652 = vsel %vm650, 0, %v571
      %v653 = vsel %vm650, 0, %v578
      %v654 = vsel %vm650, 0, %v585
      %v655 = vsel %vm650, 0, %v592
      %v656 = vsel %vm650, 0, %v599
      %v657 = vsel %vm650, 0, %v606
      %v658 = vsel %vm650, 0, %v613
      %v659 = vsel %vm650, 0, %v620
      %v660 = vsel %vm650, 0, %v627
      %v661 = vsel %vm650, %v561, 0
      %v662 = vsel %vm650, %v568, 0
      %v663 = vsel %vm650, %v575, 0
      %v664 = vsel %vm650, %v582, 0
      %v665 = vsel %vm650, %v589, 0
      %v666 = vsel %vm650, %v596, 0
      %v667 = vsel %vm650, %v603, 0
      %v668 = vsel %vm650, %v610, 0
      %v669 = vsel %vm650, %v617, 0
      %v670 = vsel %vm650, %v624, 0
      %v671 = vld [vmem:[%s3] sm:$0x3]
      %vm672 = vsmask.f32 7424
      %v674 = vshrl.u32 %v651, 16
      %v676 = vshll.u32 %v651, 16
      %v678 = vrot.slane %v676, 1
      %v679 = vor.u32 %v674, %v678
      %v681 = vshll.u32 %v661, 16
      %v683 = vrot.slane %v681, 1
      %v684 = vsel %vm672, %v679, %v683
      %v686 = vshrl.u32 %v652, 16
      %v688 = vshll.u32 %v652, 16
      %v690 = vrot.slane %v688, 1
      %v691 = vor.u32 %v686, %v690
      %v693 = vshll.u32 %v662, 16
      %v695 = vrot.slane %v693, 1
      %v696 = vsel %vm672, %v691, %v695
      %v698 = vshrl.u32 %v653, 16
      %v700 = vshll.u32 %v653, 16
      %v702 = vrot.slane %v700, 1
      %v703 = vor.u32 %v698, %v702
      %v705 = vshll.u32 %v663, 16
      %v707 = vrot.slane %v705, 1
      %v708 = vsel %vm672, %v703, %v707
      %v710 = vshrl.u32 %v654, 16
      %v712 = vshll.u32 %v654, 16
      %v714 = vrot.slane %v712, 1
      %v715 = vor.u32 %v710, %v714
      %v717 = vshll.u32 %v664, 16
      %v719 = vrot.slane %v717, 1
      %v720 = vsel %vm672, %v715, %v719
      %v722 = vshrl.u32 %v655, 16
      %v724 = vshll.u32 %v655, 16
      %v726 = vrot.slane %v724, 1
      %v727 = vor.u32 %v722, %v726
      %v729 = vshll.u32 %v665, 16
      %v731 = vrot.slane %v729, 1
      %v732 = vsel %vm672, %v727, %v731
      %v734 = vshrl.u32 %v656, 16
      %v736 = vshll.u32 %v656, 16
      %v738 = vrot.slane %v736, 1
      %v739 = vor.u32 %v734, %v738
      %v741 = vshll.u32 %v666, 16
      %v743 = vrot.slane %v741, 1
      %v744 = vsel %vm672, %v739, %v743
      %v746 = vshrl.u32 %v657, 16
      %v748 = vshll.u32 %v657, 16
      %v750 = vrot.slane %v748, 1
      %v751 = vor.u32 %v746, %v750
      %v753 = vshll.u32 %v667, 16
      %v755 = vrot.slane %v753, 1
      %v756 = vsel %vm672, %v751, %v755
      %v758 = vshrl.u32 %v658, 16
      %v760 = vshll.u32 %v658, 16
      %v762 = vrot.slane %v760, 1
      %v763 = vor.u32 %v758, %v762
      %v765 = vshll.u32 %v668, 16
      %v767 = vrot.slane %v765, 1
      %v768 = vsel %vm672, %v763, %v767
      %s769 = scalar_lea.vmem %s3, 2
      %v770 = vld [vmem:[%s769] sm:$0x3]
      %vm771 = vcmask 31744
      %v773 = vsel %vm771, %v684, 0
      %v776 = vsel %vm771, %v696, 0
      %v779 = vsel %vm771, %v708, 0
      %v782 = vsel %vm771, %v720, 0
      %v785 = vsel %vm771, %v732, 0
      %v788 = vsel %vm771, %v744, 0
      %v791 = vsel %vm771, %v756, 0
      %v794 = vsel %vm771, %v768, 0
      %vm796 = vcmask 1041408
      %v798 = vsel %vm796, %v770, 0
      %800 = vmatpush.bf16.msra.mxu0 0
      %801 = vmatpush.bf16.msra.mxu0 0
      %802 = vmatpush.bf16.msra.mxu0 0
      %803 = vmatpush.bf16.msra.mxu0 0
      %804 = vmatpush.bf16.msra.mxu0 0
      %805 = vmatpush.bf16.msra.mxu0 0
      %806 = vmatpush.bf16.msra.mxu0 0
      %807 = vmatpush.bf16.msra.mxu0 %v798
      %808 = vmatmul.bf16.gmra.mxu0 %v773
      %v809 = vpop.f32.mrf.mxu0
      %v810 = vadd.f32 0.0, %v809
      %v811 = vpop.f32.mrf.mxu0
      %v812 = vadd.f32 0.0, %v811
      %813 = vmatmul.bf16.gmra.mxu0 %v776
      %v814 = vpop.f32.mrf.mxu0
      %v815 = vadd.f32 0.0, %v814
      %v816 = vpop.f32.mrf.mxu0
      %v817 = vadd.f32 0.0, %v816
      %818 = vmatmul.bf16.gmra.mxu0 %v779
      %v819 = vpop.f32.mrf.mxu0
      %v820 = vadd.f32 0.0, %v819
      %v821 = vpop.f32.mrf.mxu0
      %v822 = vadd.f32 0.0, %v821
      %823 = vmatmul.bf16.gmra.mxu0 %v782
      %v824 = vpop.f32.mrf.mxu0
      %v825 = vadd.f32 0.0, %v824
      %v826 = vpop.f32.mrf.mxu0
      %v827 = vadd.f32 0.0, %v826
      %828 = vmatmul.bf16.gmra.mxu0 %v785
      %v829 = vpop.f32.mrf.mxu0
      %v830 = vadd.f32 0.0, %v829
      %v831 = vpop.f32.mrf.mxu0
      %v832 = vadd.f32 0.0, %v831
      %833 = vmatmul.bf16.gmra.mxu0 %v788
      %v834 = vpop.f32.mrf.mxu0
      %v835 = vadd.f32 0.0, %v834
      %v836 = vpop.f32.mrf.mxu0
      %v837 = vadd.f32 0.0, %v836
      %838 = vmatmul.bf16.gmra.mxu0 %v791
      %v839 = vpop.f32.mrf.mxu0
      %v840 = vadd.f32 0.0, %v839
      %v841 = vpop.f32.mrf.mxu0
      %v842 = vadd.f32 0.0, %v841
      %843 = vmatmul.bf16.gmra.mxu0 %v794
      %v844 = vpop.f32.mrf.mxu0
      %v845 = vadd.f32 0.0, %v844
      %v846 = vpop.f32.mrf.mxu0
      %v847 = vadd.f32 0.0, %v846
      %848 = vdwg.mxu0
      %v849 = vsel %vm771, %v651, 0
      %v851 = vsel %vm771, %v652, 0
      %v853 = vsel %vm771, %v653, 0
      %v855 = vsel %vm771, %v654, 0
      %v857 = vsel %vm771, %v655, 0
      %v859 = vsel %vm771, %v656, 0
      %v861 = vsel %vm771, %v657, 0
      %v863 = vsel %vm771, %v658, 0
      %v866 = vsel %vm796, %v671, 0
      %868 = vmatpush.bf16.msra.mxu0 0
      %869 = vmatpush.bf16.msra.mxu0 0
      %870 = vmatpush.bf16.msra.mxu0 0
      %871 = vmatpush.bf16.msra.mxu0 0
      %872 = vmatpush.bf16.msra.mxu0 0
      %873 = vmatpush.bf16.msra.mxu0 0
      %874 = vmatpush.bf16.msra.mxu0 0
      %875 = vmatpush.bf16.msra.mxu0 %v866
      %876 = vmatmul.bf16.gmra.mxu0 %v849
      %v877 = vpop.f32.mrf.mxu0
      %v878 = vadd.f32 %v810, %v877
      %v879 = vpop.f32.mrf.mxu0
      %v880 = vadd.f32 %v812, %v879
      %881 = vmatmul.bf16.gmra.mxu0 %v851
      %v882 = vpop.f32.mrf.mxu0
      %v883 = vadd.f32 %v815, %v882
      %v884 = vpop.f32.mrf.mxu0
      %v885 = vadd.f32 %v817, %v884
      %886 = vmatmul.bf16.gmra.mxu0 %v853
      %v887 = vpop.f32.mrf.mxu0
      %v888 = vadd.f32 %v820, %v887
      %v889 = vpop.f32.mrf.mxu0
      %v890 = vadd.f32 %v822, %v889
      %891 = vmatmul.bf16.gmra.mxu0 %v855
      %v892 = vpop.f32.mrf.mxu0
      %v893 = vadd.f32 %v825, %v892
      %v894 = vpop.f32.mrf.mxu0
      %v895 = vadd.f32 %v827, %v894
      %896 = vmatmul.bf16.gmra.mxu0 %v857
      %v897 = vpop.f32.mrf.mxu0
      %v898 = vadd.f32 %v830, %v897
      %v899 = vpop.f32.mrf.mxu0
      %v900 = vadd.f32 %v832, %v899
      %901 = vmatmul.bf16.gmra.mxu0 %v859
      %v902 = vpop.f32.mrf.mxu0
      %v903 = vadd.f32 %v835, %v902
      %v904 = vpop.f32.mrf.mxu0
      %v905 = vadd.f32 %v837, %v904
      %906 = vmatmul.bf16.gmra.mxu0 %v861
      %v907 = vpop.f32.mrf.mxu0
      %v908 = vadd.f32 %v840, %v907
      %v909 = vpop.f32.mrf.mxu0
      %v910 = vadd.f32 %v842, %v909
      %911 = vmatmul.bf16.gmra.mxu0 %v863
      %v912 = vpop.f32.mrf.mxu0
      %v913 = vadd.f32 %v845, %v912
      %v914 = vpop.f32.mrf.mxu0
      %v915 = vadd.f32 %v847, %v914
      %916 = vdwg.mxu0
      %vm933 = vcmask 1046528
      %v934 = vrot.slane %v651, 1
      %v935 = vrot.slane %v661, 1
      %v936 = vsel %vm933, %v934, %v935
      %v937 = vrot.slane %v652, 1
      %v938 = vrot.slane %v662, 1
      %v939 = vsel %vm933, %v937, %v938
      %v940 = vrot.slane %v653, 1
      %v941 = vrot.slane %v663, 1
      %v942 = vsel %vm933, %v940, %v941
      %v943 = vrot.slane %v654, 1
      %v944 = vrot.slane %v664, 1
      %v945 = vsel %vm933, %v943, %v944
      %v946 = vrot.slane %v655, 1
      %v947 = vrot.slane %v665, 1
      %v948 = vsel %vm933, %v946, %v947
      %v949 = vrot.slane %v656, 1
      %v950 = vrot.slane %v666, 1
      %v951 = vsel %vm933, %v949, %v950
      %v952 = vrot.slane %v657, 1
      %v953 = vrot.slane %v667, 1
      %v954 = vsel %vm933, %v952, %v953
      %v955 = vrot.slane %v658, 1
      %v956 = vrot.slane %v668, 1
      %v957 = vsel %vm933, %v955, %v956
      %s958 = scalar_lea.vmem %s3, 4
      %v959 = vld [vmem:[%s958] sm:$0x3]
      %v961 = vsel %vm771, %v936, 0
      %v964 = vsel %vm771, %v939, 0
      %v967 = vsel %vm771, %v942, 0
      %v970 = vsel %vm771, %v945, 0
      %v973 = vsel %vm771, %v948, 0
      %v976 = vsel %vm771, %v951, 0
      %v979 = vsel %vm771, %v954, 0
      %v982 = vsel %vm771, %v957, 0
      %v985 = vsel %vm796, %v959, 0
      %987 = vmatpush.bf16.msra.mxu0 0
      %988 = vmatpush.bf16.msra.mxu0 0
      %989 = vmatpush.bf16.msra.mxu0 0
      %990 = vmatpush.bf16.msra.mxu0 0
      %991 = vmatpush.bf16.msra.mxu0 0
      %992 = vmatpush.bf16.msra.mxu0 0
      %993 = vmatpush.bf16.msra.mxu0 0
      %994 = vmatpush.bf16.msra.mxu0 %v985
      %995 = vmatmul.bf16.gmra.mxu0 %v961
      %v996 = vpop.f32.mrf.mxu0
      %v997 = vadd.f32 0.0, %v996
      %v998 = vpop.f32.mrf.mxu0
      %v999 = vadd.f32 0.0, %v998
      %1000 = vmatmul.bf16.gmra.mxu0 %v964
      %v1001 = vpop.f32.mrf.mxu0
      %v1002 = vadd.f32 0.0, %v1001
      %v1003 = vpop.f32.mrf.mxu0
      %v1004 = vadd.f32 0.0, %v1003
      %1005 = vmatmul.bf16.gmra.mxu0 %v967
      %v1006 = vpop.f32.mrf.mxu0
      %v1007 = vadd.f32 0.0, %v1006
      %v1008 = vpop.f32.mrf.mxu0
      %v1009 = vadd.f32 0.0, %v1008
      %1010 = vmatmul.bf16.gmra.mxu0 %v970
      %v1011 = vpop.f32.mrf.mxu0
      %v1012 = vadd.f32 0.0, %v1011
      %v1013 = vpop.f32.mrf.mxu0
      %v1014 = vadd.f32 0.0, %v1013
      %1015 = vmatmul.bf16.gmra.mxu0 %v973
      %v1016 = vpop.f32.mrf.mxu0
      %v1017 = vadd.f32 0.0, %v1016
      %v1018 = vpop.f32.mrf.mxu0
      %v1019 = vadd.f32 0.0, %v1018
      %1020 = vmatmul.bf16.gmra.mxu0 %v976
      %v1021 = vpop.f32.mrf.mxu0
      %v1022 = vadd.f32 0.0, %v1021
      %v1023 = vpop.f32.mrf.mxu0
      %v1024 = vadd.f32 0.0, %v1023
      %1025 = vmatmul.bf16.gmra.mxu0 %v979
      %v1026 = vpop.f32.mrf.mxu0
      %v1027 = vadd.f32 0.0, %v1026
      %v1028 = vpop.f32.mrf.mxu0
      %v1029 = vadd.f32 0.0, %v1028
      %1030 = vmatmul.bf16.gmra.mxu0 %v982
      %v1031 = vpop.f32.mrf.mxu0
      %v1032 = vadd.f32 0.0, %v1031
      %v1033 = vpop.f32.mrf.mxu0
      %v1034 = vadd.f32 0.0, %v1033
      %1035 = vdwg.mxu0
      %v1036 = vadd.f32 %v878, %v997
      %v1037 = vadd.f32 %v880, %v999
      %v1038 = vadd.f32 %v883, %v1002
      %v1039 = vadd.f32 %v885, %v1004
      %v1040 = vadd.f32 %v888, %v1007
      %v1041 = vadd.f32 %v890, %v1009
      %v1042 = vadd.f32 %v893, %v1012
      %v1043 = vadd.f32 %v895, %v1014
      %v1044 = vadd.f32 %v898, %v1017
      %v1045 = vadd.f32 %v900, %v1019
      %v1046 = vadd.f32 %v903, %v1022
      %v1047 = vadd.f32 %v905, %v1024
      %v1048 = vadd.f32 %v908, %v1027
      %v1049 = vadd.f32 %v910, %v1029
      %v1050 = vadd.f32 %v913, %v1032
      %v1051 = vadd.f32 %v915, %v1034
      %s1052 = scalar_lea.vmem %s3, 6
      %v1053 = vld [vmem:[%s1052] sm:$0x3]
      %v1055 = vsel %vm771, %v659, 0
      %v1058 = vsel %vm796, %v1053, 0
      %1060 = vmatpush.bf16.msra.mxu0 0
      %1061 = vmatpush.bf16.msra.mxu0 0
      %1062 = vmatpush.bf16.msra.mxu0 0
      %1063 = vmatpush.bf16.msra.mxu0 0
      %1064 = vmatpush.bf16.msra.mxu0 0
      %1065 = vmatpush.bf16.msra.mxu0 0
      %1066 = vmatpush.bf16.msra.mxu0 0
      %1067 = vmatpush.bf16.msra.mxu0 %v1058
      %1068 = vmatmul.bf16.gmra.mxu0 %v851
      %v1069 = vpop.f32.mrf.mxu0
      %v1070 = vadd.f32 0.0, %v1069
      %v1071 = vpop.f32.mrf.mxu0
      %v1072 = vadd.f32 0.0, %v1071
      %1073 = vmatmul.bf16.gmra.mxu0 %v853
      %v1074 = vpop.f32.mrf.mxu0
      %v1075 = vadd.f32 0.0, %v1074
      %v1076 = vpop.f32.mrf.mxu0
      %v1077 = vadd.f32 0.0, %v1076
      %1078 = vmatmul.bf16.gmra.mxu0 %v855
      %v1079 = vpop.f32.mrf.mxu0
      %v1080 = vadd.f32 0.0, %v1079
      %v1081 = vpop.f32.mrf.mxu0
      %v1082 = vadd.f32 0.0, %v1081
      %1083 = vmatmul.bf16.gmra.mxu0 %v857
      %v1084 = vpop.f32.mrf.mxu0
      %v1085 = vadd.f32 0.0, %v1084
      %v1086 = vpop.f32.mrf.mxu0
      %v1087 = vadd.f32 0.0, %v1086
      %1088 = vmatmul.bf16.gmra.mxu0 %v859
      %v1089 = vpop.f32.mrf.mxu0
      %v1090 = vadd.f32 0.0, %v1089
      %v1091 = vpop.f32.mrf.mxu0
      %v1092 = vadd.f32 0.0, %v1091
      %1093 = vmatmul.bf16.gmra.mxu0 %v861
      %v1094 = vpop.f32.mrf.mxu0
      %v1095 = vadd.f32 0.0, %v1094
      %v1096 = vpop.f32.mrf.mxu0
      %v1097 = vadd.f32 0.0, %v1096
      %1098 = vmatmul.bf16.gmra.mxu0 %v863
      %v1099 = vpop.f32.mrf.mxu0
      %v1100 = vadd.f32 0.0, %v1099
      %v1101 = vpop.f32.mrf.mxu0
      %v1102 = vadd.f32 0.0, %v1101
      %1103 = vmatmul.bf16.gmra.mxu0 %v1055
      %v1104 = vpop.f32.mrf.mxu0
      %v1105 = vadd.f32 0.0, %v1104
      %v1106 = vpop.f32.mrf.mxu0
      %v1107 = vadd.f32 0.0, %v1106
      %1108 = vdwg.mxu0
      %v1109 = vadd.f32 %v1036, %v1070
      %v1110 = vadd.f32 %v1037, %v1072
      %v1111 = vadd.f32 %v1038, %v1075
      %v1112 = vadd.f32 %v1039, %v1077
      %v1113 = vadd.f32 %v1040, %v1080
      %v1114 = vadd.f32 %v1041, %v1082
      %v1115 = vadd.f32 %v1042, %v1085
      %v1116 = vadd.f32 %v1043, %v1087
      %v1117 = vadd.f32 %v1044, %v1090
      %v1118 = vadd.f32 %v1045, %v1092
      %v1119 = vadd.f32 %v1046, %v1095
      %v1120 = vadd.f32 %v1047, %v1097
      %v1121 = vadd.f32 %v1048, %v1100
      %v1122 = vadd.f32 %v1049, %v1102
      %v1123 = vadd.f32 %v1050, %v1105
      %v1124 = vadd.f32 %v1051, %v1107
      %v1125 = vshrl.u32 %v659, 16
      %v1127 = vshll.u32 %v659, 16
      %v1129 = vrot.slane %v1127, 1
      %v1130 = vor.u32 %v1125, %v1129
      %v1132 = vshll.u32 %v669, 16
      %v1134 = vrot.slane %v1132, 1
      %v1135 = vsel %vm672, %v1130, %v1134
      %s1136 = scalar_lea.vmem %s3, 8
      %v1137 = vld [vmem:[%s1136] sm:$0x3]
      %v1139 = vsel %vm771, %v1135, 0
      %v1142 = vsel %vm796, %v1137, 0
      %1144 = vmatpush.bf16.msra.mxu0 0
      %1145 = vmatpush.bf16.msra.mxu0 0
      %1146 = vmatpush.bf16.msra.mxu0 0
      %1147 = vmatpush.bf16.msra.mxu0 0
      %1148 = vmatpush.bf16.msra.mxu0 0
      %1149 = vmatpush.bf16.msra.mxu0 0
      %1150 = vmatpush.bf16.msra.mxu0 0
      %1151 = vmatpush.bf16.msra.mxu0 %v1142
      %1152 = vmatmul.bf16.gmra.mxu0 %v776
      %v1153 = vpop.f32.mrf.mxu0
      %v1154 = vadd.f32 0.0, %v1153
      %v1155 = vpop.f32.mrf.mxu0
      %v1156 = vadd.f32 0.0, %v1155
      %1157 = vmatmul.bf16.gmra.mxu0 %v779
      %v1158 = vpop.f32.mrf.mxu0
      %v1159 = vadd.f32 0.0, %v1158
      %v1160 = vpop.f32.mrf.mxu0
      %v1161 = vadd.f32 0.0, %v1160
      %1162 = vmatmul.bf16.gmra.mxu0 %v782
      %v1163 = vpop.f32.mrf.mxu0
      %v1164 = vadd.f32 0.0, %v1163
      %v1165 = vpop.f32.mrf.mxu0
      %v1166 = vadd.f32 0.0, %v1165
      %1167 = vmatmul.bf16.gmra.mxu0 %v785
      %v1168 = vpop.f32.mrf.mxu0
      %v1169 = vadd.f32 0.0, %v1168
      %v1170 = vpop.f32.mrf.mxu0
      %v1171 = vadd.f32 0.0, %v1170
      %1172 = vmatmul.bf16.gmra.mxu0 %v788
      %v1173 = vpop.f32.mrf.mxu0
      %v1174 = vadd.f32 0.0, %v1173
      %v1175 = vpop.f32.mrf.mxu0
      %v1176 = vadd.f32 0.0, %v1175
      %1177 = vmatmul.bf16.gmra.mxu0 %v791
      %v1178 = vpop.f32.mrf.mxu0
      %v1179 = vadd.f32 0.0, %v1178
      %v1180 = vpop.f32.mrf.mxu0
      %v1181 = vadd.f32 0.0, %v1180
      %1182 = vmatmul.bf16.gmra.mxu0 %v794
      %v1183 = vpop.f32.mrf.mxu0
      %v1184 = vadd.f32 0.0, %v1183
      %v1185 = vpop.f32.mrf.mxu0
      %v1186 = vadd.f32 0.0, %v1185
      %1187 = vmatmul.bf16.gmra.mxu0 %v1139
      %v1188 = vpop.f32.mrf.mxu0
      %v1189 = vadd.f32 0.0, %v1188
      %v1190 = vpop.f32.mrf.mxu0
      %v1191 = vadd.f32 0.0, %v1190
      %1192 = vdwg.mxu0
      %v1193 = vadd.f32 %v1109, %v1154
      %v1194 = vadd.f32 %v1110, %v1156
      %v1195 = vadd.f32 %v1111, %v1159
      %v1196 = vadd.f32 %v1112, %v1161
      %v1197 = vadd.f32 %v1113, %v1164
      %v1198 = vadd.f32 %v1114, %v1166
      %v1199 = vadd.f32 %v1115, %v1169
      %v1200 = vadd.f32 %v1116, %v1171
      %v1201 = vadd.f32 %v1117, %v1174
      %v1202 = vadd.f32 %v1118, %v1176
      %v1203 = vadd.f32 %v1119, %v1179
      %v1204 = vadd.f32 %v1120, %v1181
      %v1205 = vadd.f32 %v1121, %v1184
      %v1206 = vadd.f32 %v1122, %v1186
      %v1207 = vadd.f32 %v1123, %v1189
      %v1208 = vadd.f32 %v1124, %v1191
      %v1211 = vrot.slane %v659, 1
      %v1212 = vrot.slane %v669, 1
      %v1213 = vsel %vm933, %v1211, %v1212
      %s1214 = scalar_lea.vmem %s3, 10
      %v1215 = vld [vmem:[%s1214] sm:$0x3]
      %v1217 = vsel %vm771, %v1213, 0
      %v1220 = vsel %vm796, %v1215, 0
      %1222 = vmatpush.bf16.msra.mxu0 0
      %1223 = vmatpush.bf16.msra.mxu0 0
      %1224 = vmatpush.bf16.msra.mxu0 0
      %1225 = vmatpush.bf16.msra.mxu0 0
      %1226 = vmatpush.bf16.msra.mxu0 0
      %1227 = vmatpush.bf16.msra.mxu0 0
      %1228 = vmatpush.bf16.msra.mxu0 0
      %1229 = vmatpush.bf16.msra.mxu0 %v1220
      %1230 = vmatmul.bf16.gmra.mxu0 %v964
      %v1231 = vpop.f32.mrf.mxu0
      %v1232 = vadd.f32 0.0, %v1231
      %v1233 = vpop.f32.mrf.mxu0
      %v1234 = vadd.f32 0.0, %v1233
      %1235 = vmatmul.bf16.gmra.mxu0 %v967
      %v1236 = vpop.f32.mrf.mxu0
      %v1237 = vadd.f32 0.0, %v1236
      %v1238 = vpop.f32.mrf.mxu0
      %v1239 = vadd.f32 0.0, %v1238
      %1240 = vmatmul.bf16.gmra.mxu0 %v970
      %v1241 = vpop.f32.mrf.mxu0
      %v1242 = vadd.f32 0.0, %v1241
      %v1243 = vpop.f32.mrf.mxu0
      %v1244 = vadd.f32 0.0, %v1243
      %1245 = vmatmul.bf16.gmra.mxu0 %v973
      %v1246 = vpop.f32.mrf.mxu0
      %v1247 = vadd.f32 0.0, %v1246
      %v1248 = vpop.f32.mrf.mxu0
      %v1249 = vadd.f32 0.0, %v1248
      %1250 = vmatmul.bf16.gmra.mxu0 %v976
      %v1251 = vpop.f32.mrf.mxu0
      %v1252 = vadd.f32 0.0, %v1251
      %v1253 = vpop.f32.mrf.mxu0
      %v1254 = vadd.f32 0.0, %v1253
      %1255 = vmatmul.bf16.gmra.mxu0 %v979
      %v1256 = vpop.f32.mrf.mxu0
      %v1257 = vadd.f32 0.0, %v1256
      %v1258 = vpop.f32.mrf.mxu0
      %v1259 = vadd.f32 0.0, %v1258
      %1260 = vmatmul.bf16.gmra.mxu0 %v982
      %v1261 = vpop.f32.mrf.mxu0
      %v1262 = vadd.f32 0.0, %v1261
      %v1263 = vpop.f32.mrf.mxu0
      %v1264 = vadd.f32 0.0, %v1263
      %1265 = vmatmul.bf16.gmra.mxu0 %v1217
      %v1266 = vpop.f32.mrf.mxu0
      %v1267 = vadd.f32 0.0, %v1266
      %v1268 = vpop.f32.mrf.mxu0
      %v1269 = vadd.f32 0.0, %v1268
      %1270 = vdwg.mxu0
      %v1271 = vadd.f32 %v1193, %v1232
      %v1272 = vadd.f32 %v1194, %v1234
      %v1273 = vadd.f32 %v1195, %v1237
      %v1274 = vadd.f32 %v1196, %v1239
      %v1275 = vadd.f32 %v1197, %v1242
      %v1276 = vadd.f32 %v1198, %v1244
      %v1277 = vadd.f32 %v1199, %v1247
      %v1278 = vadd.f32 %v1200, %v1249
      %v1279 = vadd.f32 %v1201, %v1252
      %v1280 = vadd.f32 %v1202, %v1254
      %v1281 = vadd.f32 %v1203, %v1257
      %v1282 = vadd.f32 %v1204, %v1259
      %v1283 = vadd.f32 %v1205, %v1262
      %v1284 = vadd.f32 %v1206, %v1264
      %v1285 = vadd.f32 %v1207, %v1267
      %v1286 = vadd.f32 %v1208, %v1269
      %s1287 = scalar_lea.vmem %s3, 12
      %v1288 = vld [vmem:[%s1287] sm:$0x3]
      %v1290 = vsel %vm771, %v660, 0
      %v1293 = vsel %vm796, %v1288, 0
      %1295 = vmatpush.bf16.msra.mxu0 0
      %1296 = vmatpush.bf16.msra.mxu0 0
      %1297 = vmatpush.bf16.msra.mxu0 0
      %1298 = vmatpush.bf16.msra.mxu0 0
      %1299 = vmatpush.bf16.msra.mxu0 0
      %1300 = vmatpush.bf16.msra.mxu0 0
      %1301 = vmatpush.bf16.msra.mxu0 0
      %1302 = vmatpush.bf16.msra.mxu0 %v1293
      %1303 = vmatmul.bf16.gmra.mxu0 %v853
      %v1304 = vpop.f32.mrf.mxu0
      %v1305 = vadd.f32 0.0, %v1304
      %v1306 = vpop.f32.mrf.mxu0
      %v1307 = vadd.f32 0.0, %v1306
      %1308 = vmatmul.bf16.gmra.mxu0 %v855
      %v1309 = vpop.f32.mrf.mxu0
      %v1310 = vadd.f32 0.0, %v1309
      %v1311 = vpop.f32.mrf.mxu0
      %v1312 = vadd.f32 0.0, %v1311
      %1313 = vmatmul.bf16.gmra.mxu0 %v857
      %v1314 = vpop.f32.mrf.mxu0
      %v1315 = vadd.f32 0.0, %v1314
      %v1316 = vpop.f32.mrf.mxu0
      %v1317 = vadd.f32 0.0, %v1316
      %1318 = vmatmul.bf16.gmra.mxu0 %v859
      %v1319 = vpop.f32.mrf.mxu0
      %v1320 = vadd.f32 0.0, %v1319
      %v1321 = vpop.f32.mrf.mxu0
      %v1322 = vadd.f32 0.0, %v1321
      %1323 = vmatmul.bf16.gmra.mxu0 %v861
      %v1324 = vpop.f32.mrf.mxu0
      %v1325 = vadd.f32 0.0, %v1324
      %v1326 = vpop.f32.mrf.mxu0
      %v1327 = vadd.f32 0.0, %v1326
      %1328 = vmatmul.bf16.gmra.mxu0 %v863
      %v1329 = vpop.f32.mrf.mxu0
      %v1330 = vadd.f32 0.0, %v1329
      %v1331 = vpop.f32.mrf.mxu0
      %v1332 = vadd.f32 0.0, %v1331
      %1333 = vmatmul.bf16.gmra.mxu0 %v1055
      %v1334 = vpop.f32.mrf.mxu0
      %v1335 = vadd.f32 0.0, %v1334
      %v1336 = vpop.f32.mrf.mxu0
      %v1337 = vadd.f32 0.0, %v1336
      %1338 = vmatmul.bf16.gmra.mxu0 %v1290
      %v1339 = vpop.f32.mrf.mxu0
      %v1340 = vadd.f32 0.0, %v1339
      %v1341 = vpop.f32.mrf.mxu0
      %v1342 = vadd.f32 0.0, %v1341
      %1343 = vdwg.mxu0
      %v1344 = vadd.f32 %v1271, %v1305
      %v1345 = vadd.f32 %v1272, %v1307
      %v1346 = vadd.f32 %v1273, %v1310
      %v1347 = vadd.f32 %v1274, %v1312
      %v1348 = vadd.f32 %v1275, %v1315
      %v1349 = vadd.f32 %v1276, %v1317
      %v1350 = vadd.f32 %v1277, %v1320
      %v1351 = vadd.f32 %v1278, %v1322
      %v1352 = vadd.f32 %v1279, %v1325
      %v1353 = vadd.f32 %v1280, %v1327
      %v1354 = vadd.f32 %v1281, %v1330
      %v1355 = vadd.f32 %v1282, %v1332
      %v1356 = vadd.f32 %v1283, %v1335
      %v1357 = vadd.f32 %v1284, %v1337
      %v1358 = vadd.f32 %v1285, %v1340
      %v1359 = vadd.f32 %v1286, %v1342
      %v1360 = vshrl.u32 %v660, 16
      %v1362 = vshll.u32 %v660, 16
      %v1364 = vrot.slane %v1362, 1
      %v1365 = vor.u32 %v1360, %v1364
      %v1367 = vshll.u32 %v670, 16
      %v1369 = vrot.slane %v1367, 1
      %v1370 = vsel %vm672, %v1365, %v1369
      %s1371 = scalar_lea.vmem %s3, 14
      %v1372 = vld [vmem:[%s1371] sm:$0x3]
      %v1374 = vsel %vm771, %v1370, 0
      %v1377 = vsel %vm796, %v1372, 0
      %1379 = vmatpush.bf16.msra.mxu0 0
      %1380 = vmatpush.bf16.msra.mxu0 0
      %1381 = vmatpush.bf16.msra.mxu0 0
      %1382 = vmatpush.bf16.msra.mxu0 0
      %1383 = vmatpush.bf16.msra.mxu0 0
      %1384 = vmatpush.bf16.msra.mxu0 0
      %1385 = vmatpush.bf16.msra.mxu0 0
      %1386 = vmatpush.bf16.msra.mxu0 %v1377
      %1387 = vmatmul.bf16.gmra.mxu0 %v779
      %v1388 = vpop.f32.mrf.mxu0
      %v1389 = vadd.f32 0.0, %v1388
      %v1390 = vpop.f32.mrf.mxu0
      %v1391 = vadd.f32 0.0, %v1390
      %1392 = vmatmul.bf16.gmra.mxu0 %v782
      %v1393 = vpop.f32.mrf.mxu0
      %v1394 = vadd.f32 0.0, %v1393
      %v1395 = vpop.f32.mrf.mxu0
      %v1396 = vadd.f32 0.0, %v1395
      %1397 = vmatmul.bf16.gmra.mxu0 %v785
      %v1398 = vpop.f32.mrf.mxu0
      %v1399 = vadd.f32 0.0, %v1398
      %v1400 = vpop.f32.mrf.mxu0
      %v1401 = vadd.f32 0.0, %v1400
      %1402 = vmatmul.bf16.gmra.mxu0 %v788
      %v1403 = vpop.f32.mrf.mxu0
      %v1404 = vadd.f32 0.0, %v1403
      %v1405 = vpop.f32.mrf.mxu0
      %v1406 = vadd.f32 0.0, %v1405
      %1407 = vmatmul.bf16.gmra.mxu0 %v791
      %v1408 = vpop.f32.mrf.mxu0
      %v1409 = vadd.f32 0.0, %v1408
      %v1410 = vpop.f32.mrf.mxu0
      %v1411 = vadd.f32 0.0, %v1410
      %1412 = vmatmul.bf16.gmra.mxu0 %v794
      %v1413 = vpop.f32.mrf.mxu0
      %v1414 = vadd.f32 0.0, %v1413
      %v1415 = vpop.f32.mrf.mxu0
      %v1416 = vadd.f32 0.0, %v1415
      %1417 = vmatmul.bf16.gmra.mxu0 %v1139
      %v1418 = vpop.f32.mrf.mxu0
      %v1419 = vadd.f32 0.0, %v1418
      %v1420 = vpop.f32.mrf.mxu0
      %v1421 = vadd.f32 0.0, %v1420
      %1422 = vmatmul.bf16.gmra.mxu0 %v1374
      %v1423 = vpop.f32.mrf.mxu0
      %v1424 = vadd.f32 0.0, %v1423
      %v1425 = vpop.f32.mrf.mxu0
      %v1426 = vadd.f32 0.0, %v1425
      %1427 = vdwg.mxu0
      %v1428 = vadd.f32 %v1344, %v1389
      %v1429 = vadd.f32 %v1345, %v1391
      %v1430 = vadd.f32 %v1346, %v1394
      %v1431 = vadd.f32 %v1347, %v1396
      %v1432 = vadd.f32 %v1348, %v1399
      %v1433 = vadd.f32 %v1349, %v1401
      %v1434 = vadd.f32 %v1350, %v1404
      %v1435 = vadd.f32 %v1351, %v1406
      %v1436 = vadd.f32 %v1352, %v1409
      %v1437 = vadd.f32 %v1353, %v1411
      %v1438 = vadd.f32 %v1354, %v1414
      %v1439 = vadd.f32 %v1355, %v1416
      %v1440 = vadd.f32 %v1356, %v1419
      %v1441 = vadd.f32 %v1357, %v1421
      %v1442 = vadd.f32 %v1358, %v1424
      %v1443 = vadd.f32 %v1359, %v1426
      %v1446 = vrot.slane %v660, 1
      %v1447 = vrot.slane %v670, 1
      %v1448 = vsel %vm933, %v1446, %v1447
      %s1449 = scalar_lea.vmem %s3, 16
      %v1450 = vld [vmem:[%s1449] sm:$0x3]
      %v1452 = vsel %vm771, %v1448, 0
      %v1455 = vsel %vm796, %v1450, 0
      %1457 = vmatpush.bf16.msra.mxu0 0
      %1458 = vmatpush.bf16.msra.mxu0 0
      %1459 = vmatpush.bf16.msra.mxu0 0
      %1460 = vmatpush.bf16.msra.mxu0 0
      %1461 = vmatpush.bf16.msra.mxu0 0
      %1462 = vmatpush.bf16.msra.mxu0 0
      %1463 = vmatpush.bf16.msra.mxu0 0
      %1464 = vmatpush.bf16.msra.mxu0 %v1455
      %1465 = vmatmul.bf16.gmra.mxu0 %v967
      %v1466 = vpop.f32.mrf.mxu0
      %v1467 = vadd.f32 0.0, %v1466
      %v1468 = vpop.f32.mrf.mxu0
      %v1469 = vadd.f32 0.0, %v1468
      %1470 = vmatmul.bf16.gmra.mxu0 %v970
      %v1471 = vpop.f32.mrf.mxu0
      %v1472 = vadd.f32 0.0, %v1471
      %v1473 = vpop.f32.mrf.mxu0
      %v1474 = vadd.f32 0.0, %v1473
      %1475 = vmatmul.bf16.gmra.mxu0 %v973
      %v1476 = vpop.f32.mrf.mxu0
      %v1477 = vadd.f32 0.0, %v1476
      %v1478 = vpop.f32.mrf.mxu0
      %v1479 = vadd.f32 0.0, %v1478
      %1480 = vmatmul.bf16.gmra.mxu0 %v976
      %v1481 = vpop.f32.mrf.mxu0
      %v1482 = vadd.f32 0.0, %v1481
      %v1483 = vpop.f32.mrf.mxu0
      %v1484 = vadd.f32 0.0, %v1483
      %1485 = vmatmul.bf16.gmra.mxu0 %v979
      %v1486 = vpop.f32.mrf.mxu0
      %v1487 = vadd.f32 0.0, %v1486
      %v1488 = vpop.f32.mrf.mxu0
      %v1489 = vadd.f32 0.0, %v1488
      %1490 = vmatmul.bf16.gmra.mxu0 %v982
      %v1491 = vpop.f32.mrf.mxu0
      %v1492 = vadd.f32 0.0, %v1491
      %v1493 = vpop.f32.mrf.mxu0
      %v1494 = vadd.f32 0.0, %v1493
      %1495 = vmatmul.bf16.gmra.mxu0 %v1217
      %v1496 = vpop.f32.mrf.mxu0
      %v1497 = vadd.f32 0.0, %v1496
      %v1498 = vpop.f32.mrf.mxu0
      %v1499 = vadd.f32 0.0, %v1498
      %1500 = vmatmul.bf16.gmra.mxu0 %v1452
      %v1501 = vpop.f32.mrf.mxu0
      %v1502 = vadd.f32 0.0, %v1501
      %v1503 = vpop.f32.mrf.mxu0
      %v1504 = vadd.f32 0.0, %v1503
      %1505 = vdwg.mxu0
      %v1506 = vadd.f32 %v1428, %v1467
      %v1507 = vadd.f32 %v1429, %v1469
      %v1508 = vadd.f32 %v1430, %v1472
      %v1509 = vadd.f32 %v1431, %v1474
      %v1510 = vadd.f32 %v1432, %v1477
      %v1511 = vadd.f32 %v1433, %v1479
      %v1512 = vadd.f32 %v1434, %v1482
      %v1513 = vadd.f32 %v1435, %v1484
      %v1514 = vadd.f32 %v1436, %v1487
      %v1515 = vadd.f32 %v1437, %v1489
      %v1516 = vadd.f32 %v1438, %v1492
      %v1517 = vadd.f32 %v1439, %v1494
      %v1518 = vadd.f32 %v1440, %v1497
      %v1519 = vadd.f32 %v1441, %v1499
      %v1520 = vadd.f32 %v1442, %v1502
      %v1521 = vadd.f32 %v1443, %v1504
      %v1522 = vld [vmem:[%s4] sm:$0x1]
      %v1524 = vperm.slane %v1522, 0
      %v1526 = vadd.f32 %v1506, %v1524
      %v1527 = vadd.f32 %v1507, %v1524
      %v1528 = vadd.f32 %v1508, %v1524
      %v1529 = vadd.f32 %v1509, %v1524
      %v1530 = vadd.f32 %v1510, %v1524
      %v1531 = vadd.f32 %v1511, %v1524
      %v1532 = vadd.f32 %v1512, %v1524
      %v1533 = vadd.f32 %v1513, %v1524
      %v1534 = vadd.f32 %v1514, %v1524
      %v1535 = vadd.f32 %v1515, %v1524
      %v1536 = vadd.f32 %v1516, %v1524
      %v1537 = vadd.f32 %v1517, %v1524
      %v1538 = vadd.f32 %v1518, %v1524
      %v1539 = vadd.f32 %v1519, %v1524
      %v1540 = vadd.f32 %v1520, %v1524
      %v1541 = vadd.f32 %v1521, %v1524
      %v1542 = vmul.f32 %v1526, %v1526
      %v1543 = vmul.f32 %v1527, %v1527
      %v1544 = vmul.f32 %v1528, %v1528
      %v1545 = vmul.f32 %v1529, %v1529
      %v1546 = vmul.f32 %v1530, %v1530
      %v1547 = vmul.f32 %v1531, %v1531
      %v1548 = vmul.f32 %v1532, %v1532
      %v1549 = vmul.f32 %v1533, %v1533
      %v1550 = vmul.f32 %v1534, %v1534
      %v1551 = vmul.f32 %v1535, %v1535
      %v1552 = vmul.f32 %v1536, %v1536
      %v1553 = vmul.f32 %v1537, %v1537
      %v1554 = vmul.f32 %v1538, %v1538
      %v1555 = vmul.f32 %v1539, %v1539
      %v1556 = vmul.f32 %v1540, %v1540
      %v1557 = vmul.f32 %v1541, %v1541
      %vm1558 = vcmask 64512
      %v1559 = vsel %vm1558, %v1542, 0.0
      %1560 = vadd.xlane.f32.xlu0 %v1559
      %v1561 = vpop.xlane.xlu0 %1560
      %v1562 = vsel %vm1558, %v1543, 0.0
      %1563 = vadd.xlane.f32.xlu0 %v1562
      %v1564 = vpop.xlane.xlu0 %1563
      %v1565 = vsel %vm1558, %v1544, 0.0
      %1566 = vadd.xlane.f32.xlu0 %v1565
      %v1567 = vpop.xlane.xlu0 %1566
      %v1568 = vsel %vm1558, %v1545, 0.0
      %1569 = vadd.xlane.f32.xlu0 %v1568
      %v1570 = vpop.xlane.xlu0 %1569
      %v1571 = vsel %vm1558, %v1546, 0.0
      %1572 = vadd.xlane.f32.xlu0 %v1571
      %v1573 = vpop.xlane.xlu0 %1572
      %v1574 = vsel %vm1558, %v1547, 0.0
      %1575 = vadd.xlane.f32.xlu0 %v1574
      %v1576 = vpop.xlane.xlu0 %1575
      %v1577 = vsel %vm1558, %v1548, 0.0
      %1578 = vadd.xlane.f32.xlu0 %v1577
      %v1579 = vpop.xlane.xlu0 %1578
      %v1580 = vsel %vm1558, %v1549, 0.0
      %1581 = vadd.xlane.f32.xlu0 %v1580
      %v1582 = vpop.xlane.xlu0 %1581
      %v1583 = vsel %vm1558, %v1550, 0.0
      %1584 = vadd.xlane.f32.xlu0 %v1583
      %v1585 = vpop.xlane.xlu0 %1584
      %v1586 = vsel %vm1558, %v1551, 0.0
      %1587 = vadd.xlane.f32.xlu0 %v1586
      %v1588 = vpop.xlane.xlu0 %1587
      %v1589 = vsel %vm1558, %v1552, 0.0
      %1590 = vadd.xlane.f32.xlu0 %v1589
      %v1591 = vpop.xlane.xlu0 %1590
      %v1592 = vsel %vm1558, %v1553, 0.0
      %1593 = vadd.xlane.f32.xlu0 %v1592
      %v1594 = vpop.xlane.xlu0 %1593
      %v1595 = vsel %vm1558, %v1554, 0.0
      %1596 = vadd.xlane.f32.xlu0 %v1595
      %v1597 = vpop.xlane.xlu0 %1596
      %v1598 = vsel %vm1558, %v1555, 0.0
      %1599 = vadd.xlane.f32.xlu0 %v1598
      %v1600 = vpop.xlane.xlu0 %1599
      %v1601 = vsel %vm1558, %v1556, 0.0
      %1602 = vadd.xlane.f32.xlu0 %v1601
      %v1603 = vpop.xlane.xlu0 %1602
      %v1604 = vsel %vm1558, %v1557, 0.0
      %1605 = vadd.xlane.f32.xlu0 %v1604
      %v1606 = vpop.xlane.xlu0 %1605
      %v1607 = vmax.f32 %v1561, 1e-24
      %v1608 = vmax.f32 %v1564, 1e-24
      %v1609 = vmax.f32 %v1567, 1e-24
      %v1610 = vmax.f32 %v1570, 1e-24
      %v1611 = vmax.f32 %v1573, 1e-24
      %v1612 = vmax.f32 %v1576, 1e-24
      %v1613 = vmax.f32 %v1579, 1e-24
      %v1614 = vmax.f32 %v1582, 1e-24
      %v1615 = vmax.f32 %v1585, 1e-24
      %v1616 = vmax.f32 %v1588, 1e-24
      %v1617 = vmax.f32 %v1591, 1e-24
      %v1618 = vmax.f32 %v1594, 1e-24
      %v1619 = vmax.f32 %v1597, 1e-24
      %v1620 = vmax.f32 %v1600, 1e-24
      %v1621 = vmax.f32 %v1603, 1e-24
      %v1622 = vmax.f32 %v1606, 1e-24
      %v1623 = vrsqrt.pop %v1607
      %v1624 = vmul.f32 %v1623, %v1607
      %v1625 = vmul.f32 %v1624, %v1623
      %v1626 = vmul.f32 0.5, %v1625
      %v1627 = vsub.f32 1.5, %v1626
      %v1628 = vmul.f32 %v1623, %v1627
      %vm1629 = vweird.f32 %v1607
      %vm1630 = vweird.f32 %v1623
      %vm1631 = vmor %vm1629, %vm1630
      %v1632 = vsel %vm1631, %v1623, %v1628
      %v1633 = vrsqrt.pop %v1608
      %v1634 = vmul.f32 %v1633, %v1608
      %v1635 = vmul.f32 %v1634, %v1633
      %v1636 = vmul.f32 0.5, %v1635
      %v1637 = vsub.f32 1.5, %v1636
      %v1638 = vmul.f32 %v1633, %v1637
      %vm1639 = vweird.f32 %v1608
      %vm1640 = vweird.f32 %v1633
      %vm1641 = vmor %vm1639, %vm1640
      %v1642 = vsel %vm1641, %v1633, %v1638
      %v1643 = vrsqrt.pop %v1609
      %v1644 = vmul.f32 %v1643, %v1609
      %v1645 = vmul.f32 %v1644, %v1643
      %v1646 = vmul.f32 0.5, %v1645
      %v1647 = vsub.f32 1.5, %v1646
      %v1648 = vmul.f32 %v1643, %v1647
      %vm1649 = vweird.f32 %v1609
      %vm1650 = vweird.f32 %v1643
      %vm1651 = vmor %vm1649, %vm1650
      %v1652 = vsel %vm1651, %v1643, %v1648
      %v1653 = vrsqrt.pop %v1610
      %v1654 = vmul.f32 %v1653, %v1610
      %v1655 = vmul.f32 %v1654, %v1653
      %v1656 = vmul.f32 0.5, %v1655
      %v1657 = vsub.f32 1.5, %v1656
      %v1658 = vmul.f32 %v1653, %v1657
      %vm1659 = vweird.f32 %v1610
      %vm1660 = vweird.f32 %v1653
      %vm1661 = vmor %vm1659, %vm1660
      %v1662 = vsel %vm1661, %v1653, %v1658
      %v1663 = vrsqrt.pop %v1611
      %v1664 = vmul.f32 %v1663, %v1611
      %v1665 = vmul.f32 %v1664, %v1663
      %v1666 = vmul.f32 0.5, %v1665
      %v1667 = vsub.f32 1.5, %v1666
      %v1668 = vmul.f32 %v1663, %v1667
      %vm1669 = vweird.f32 %v1611
      %vm1670 = vweird.f32 %v1663
      %vm1671 = vmor %vm1669, %vm1670
      %v1672 = vsel %vm1671, %v1663, %v1668
      %v1673 = vrsqrt.pop %v1612
      %v1674 = vmul.f32 %v1673, %v1612
      %v1675 = vmul.f32 %v1674, %v1673
      %v1676 = vmul.f32 0.5, %v1675
      %v1677 = vsub.f32 1.5, %v1676
      %v1678 = vmul.f32 %v1673, %v1677
      %vm1679 = vweird.f32 %v1612
      %vm1680 = vweird.f32 %v1673
      %vm1681 = vmor %vm1679, %vm1680
      %v1682 = vsel %vm1681, %v1673, %v1678
      %v1683 = vrsqrt.pop %v1613
      %v1684 = vmul.f32 %v1683, %v1613
      %v1685 = vmul.f32 %v1684, %v1683
      %v1686 = vmul.f32 0.5, %v1685
      %v1687 = vsub.f32 1.5, %v1686
      %v1688 = vmul.f32 %v1683, %v1687
      %vm1689 = vweird.f32 %v1613
      %vm1690 = vweird.f32 %v1683
      %vm1691 = vmor %vm1689, %vm1690
      %v1692 = vsel %vm1691, %v1683, %v1688
      %v1693 = vrsqrt.pop %v1614
      %v1694 = vmul.f32 %v1693, %v1614
      %v1695 = vmul.f32 %v1694, %v1693
      %v1696 = vmul.f32 0.5, %v1695
      %v1697 = vsub.f32 1.5, %v1696
      %v1698 = vmul.f32 %v1693, %v1697
      %vm1699 = vweird.f32 %v1614
      %vm1700 = vweird.f32 %v1693
      %vm1701 = vmor %vm1699, %vm1700
      %v1702 = vsel %vm1701, %v1693, %v1698
      %v1703 = vrsqrt.pop %v1615
      %v1704 = vmul.f32 %v1703, %v1615
      %v1705 = vmul.f32 %v1704, %v1703
      %v1706 = vmul.f32 0.5, %v1705
      %v1707 = vsub.f32 1.5, %v1706
      %v1708 = vmul.f32 %v1703, %v1707
      %vm1709 = vweird.f32 %v1615
      %vm1710 = vweird.f32 %v1703
      %vm1711 = vmor %vm1709, %vm1710
      %v1712 = vsel %vm1711, %v1703, %v1708
      %v1713 = vrsqrt.pop %v1616
      %v1714 = vmul.f32 %v1713, %v1616
      %v1715 = vmul.f32 %v1714, %v1713
      %v1716 = vmul.f32 0.5, %v1715
      %v1717 = vsub.f32 1.5, %v1716
      %v1718 = vmul.f32 %v1713, %v1717
      %vm1719 = vweird.f32 %v1616
      %vm1720 = vweird.f32 %v1713
      %vm1721 = vmor %vm1719, %vm1720
      %v1722 = vsel %vm1721, %v1713, %v1718
      %v1723 = vrsqrt.pop %v1617
      %v1724 = vmul.f32 %v1723, %v1617
      %v1725 = vmul.f32 %v1724, %v1723
      %v1726 = vmul.f32 0.5, %v1725
      %v1727 = vsub.f32 1.5, %v1726
      %v1728 = vmul.f32 %v1723, %v1727
      %vm1729 = vweird.f32 %v1617
      %vm1730 = vweird.f32 %v1723
      %vm1731 = vmor %vm1729, %vm1730
      %v1732 = vsel %vm1731, %v1723, %v1728
      %v1733 = vrsqrt.pop %v1618
      %v1734 = vmul.f32 %v1733, %v1618
      %v1735 = vmul.f32 %v1734, %v1733
      %v1736 = vmul.f32 0.5, %v1735
      %v1737 = vsub.f32 1.5, %v1736
      %v1738 = vmul.f32 %v1733, %v1737
      %vm1739 = vweird.f32 %v1618
      %vm1740 = vweird.f32 %v1733
      %vm1741 = vmor %vm1739, %vm1740
      %v1742 = vsel %vm1741, %v1733, %v1738
      %v1743 = vrsqrt.pop %v1619
      %v1744 = vmul.f32 %v1743, %v1619
      %v1745 = vmul.f32 %v1744, %v1743
      %v1746 = vmul.f32 0.5, %v1745
      %v1747 = vsub.f32 1.5, %v1746
      %v1748 = vmul.f32 %v1743, %v1747
      %vm1749 = vweird.f32 %v1619
      %vm1750 = vweird.f32 %v1743
      %vm1751 = vmor %vm1749, %vm1750
      %v1752 = vsel %vm1751, %v1743, %v1748
      %v1753 = vrsqrt.pop %v1620
      %v1754 = vmul.f32 %v1753, %v1620
      %v1755 = vmul.f32 %v1754, %v1753
      %v1756 = vmul.f32 0.5, %v1755
      %v1757 = vsub.f32 1.5, %v1756
      %v1758 = vmul.f32 %v1753, %v1757
      %vm1759 = vweird.f32 %v1620
      %vm1760 = vweird.f32 %v1753
      %vm1761 = vmor %vm1759, %vm1760
      %v1762 = vsel %vm1761, %v1753, %v1758
      %v1763 = vrsqrt.pop %v1621
      %v1764 = vmul.f32 %v1763, %v1621
      %v1765 = vmul.f32 %v1764, %v1763
      %v1766 = vmul.f32 0.5, %v1765
      %v1767 = vsub.f32 1.5, %v1766
      %v1768 = vmul.f32 %v1763, %v1767
      %vm1769 = vweird.f32 %v1621
      %vm1770 = vweird.f32 %v1763
      %vm1771 = vmor %vm1769, %vm1770
      %v1772 = vsel %vm1771, %v1763, %v1768
      %v1773 = vrsqrt.pop %v1622
      %v1774 = vmul.f32 %v1773, %v1622
      %v1775 = vmul.f32 %v1774, %v1773
      %v1776 = vmul.f32 0.5, %v1775
      %v1777 = vsub.f32 1.5, %v1776
      %v1778 = vmul.f32 %v1773, %v1777
      %vm1779 = vweird.f32 %v1622
      %vm1780 = vweird.f32 %v1773
      %vm1781 = vmor %vm1779, %vm1780
      %v1782 = vsel %vm1781, %v1773, %v1778
      %v1783 = vmul.f32 %v1526, %v1632
      %v1784 = vmul.f32 %v1527, %v1642
      %v1785 = vmul.f32 %v1528, %v1652
      %v1786 = vmul.f32 %v1529, %v1662
      %v1787 = vmul.f32 %v1530, %v1672
      %v1788 = vmul.f32 %v1531, %v1682
      %v1789 = vmul.f32 %v1532, %v1692
      %v1790 = vmul.f32 %v1533, %v1702
      %v1791 = vmul.f32 %v1534, %v1712
      %v1792 = vmul.f32 %v1535, %v1722
      %v1793 = vmul.f32 %v1536, %v1732
      %v1794 = vmul.f32 %v1537, %v1742
      %v1795 = vmul.f32 %v1538, %v1752
      %v1796 = vmul.f32 %v1539, %v1762
      %v1797 = vmul.f32 %v1540, %v1772
      %v1798 = vmul.f32 %v1541, %v1782
      %v1799 = vld [vmem:[%s460] sm:$0x1]
      %v1801 = vperm.slane %v1799, 0
      %v1803 = vmul.f32 %v1783, %v1801
      %v1804 = vmul.f32 %v1784, %v1801
      %v1805 = vmul.f32 %v1785, %v1801
      %v1806 = vmul.f32 %v1786, %v1801
      %v1807 = vmul.f32 %v1787, %v1801
      %v1808 = vmul.f32 %v1788, %v1801
      %v1809 = vmul.f32 %v1789, %v1801
      %v1810 = vmul.f32 %v1790, %v1801
      %v1811 = vmul.f32 %v1791, %v1801
      %v1812 = vmul.f32 %v1792, %v1801
      %v1813 = vmul.f32 %v1793, %v1801
      %v1814 = vmul.f32 %v1794, %v1801
      %v1815 = vmul.f32 %v1795, %v1801
      %v1816 = vmul.f32 %v1796, %v1801
      %v1817 = vmul.f32 %v1797, %v1801
      %v1818 = vmul.f32 %v1798, %v1801
      %v1819 = vld [vmem:[%s463] sm:$0x1]
      %v1821 = vperm.slane %v1819, 0
      %v1823 = vadd.f32 %v1803, %v1821
      %v1824 = vadd.f32 %v1804, %v1821
      %v1825 = vadd.f32 %v1805, %v1821
      %v1826 = vadd.f32 %v1806, %v1821
      %v1827 = vadd.f32 %v1807, %v1821
      %v1828 = vadd.f32 %v1808, %v1821
      %v1829 = vadd.f32 %v1809, %v1821
      %v1830 = vadd.f32 %v1810, %v1821
      %v1831 = vadd.f32 %v1811, %v1821
      %v1832 = vadd.f32 %v1812, %v1821
      %v1833 = vadd.f32 %v1813, %v1821
      %v1834 = vadd.f32 %v1814, %v1821
      %v1835 = vadd.f32 %v1815, %v1821
      %v1836 = vadd.f32 %v1816, %v1821
      %v1837 = vadd.f32 %v1817, %v1821
      %v1838 = vadd.f32 %v1818, %v1821
      %v1839 = vxor.u32 %v1823, 2147483648
      %v1840 = vxor.u32 %v1824, 2147483648
      %v1841 = vxor.u32 %v1825, 2147483648
      %v1842 = vxor.u32 %v1826, 2147483648
      %v1843 = vxor.u32 %v1827, 2147483648
      %v1844 = vxor.u32 %v1828, 2147483648
      %v1845 = vxor.u32 %v1829, 2147483648
      %v1846 = vxor.u32 %v1830, 2147483648
      %v1847 = vxor.u32 %v1831, 2147483648
      %v1848 = vxor.u32 %v1832, 2147483648
      %v1849 = vxor.u32 %v1833, 2147483648
      %v1850 = vxor.u32 %v1834, 2147483648
      %v1851 = vxor.u32 %v1835, 2147483648
      %v1852 = vxor.u32 %v1836, 2147483648
      %v1853 = vxor.u32 %v1837, 2147483648
      %v1854 = vxor.u32 %v1838, 2147483648
      %v1855 = vmul.f32 %v1839, 1.442695
      %v1856 = vpow.pop %v1855
      %v1857 = vmul.f32 %v1840, 1.442695
      %v1858 = vpow.pop %v1857
      %v1859 = vmul.f32 %v1841, 1.442695
      %v1860 = vpow.pop %v1859
      %v1861 = vmul.f32 %v1842, 1.442695
      %v1862 = vpow.pop %v1861
      %v1863 = vmul.f32 %v1843, 1.442695
      %v1864 = vpow.pop %v1863
      %v1865 = vmul.f32 %v1844, 1.442695
      %v1866 = vpow.pop %v1865
      %v1867 = vmul.f32 %v1845, 1.442695
      %v1868 = vpow.pop %v1867
      %v1869 = vmul.f32 %v1846, 1.442695
      %v1870 = vpow.pop %v1869
      %v1871 = vmul.f32 %v1847, 1.442695
      %v1872 = vpow.pop %v1871
      %v1873 = vmul.f32 %v1848, 1.442695
      %v1874 = vpow.pop %v1873
      %v1875 = vmul.f32 %v1849, 1.442695
      %v1876 = vpow.pop %v1875
      %v1877 = vmul.f32 %v1850, 1.442695
      %v1878 = vpow.pop %v1877
      %v1879 = vmul.f32 %v1851, 1.442695
      %v1880 = vpow.pop %v1879
      %v1881 = vmul.f32 %v1852, 1.442695
      %v1882 = vpow.pop %v1881
      %v1883 = vmul.f32 %v1853, 1.442695
      %v1884 = vpow.pop %v1883
      %v1885 = vmul.f32 %v1854, 1.442695
      %v1886 = vpow.pop %v1885
      %v1887 = vadd.f32 %v1856, 1.0
      %v1888 = vadd.f32 %v1858, 1.0
      %v1889 = vadd.f32 %v1860, 1.0
      %v1890 = vadd.f32 %v1862, 1.0
      %v1891 = vadd.f32 %v1864, 1.0
      %v1892 = vadd.f32 %v1866, 1.0
      %v1893 = vadd.f32 %v1868, 1.0
      %v1894 = vadd.f32 %v1870, 1.0
      %v1895 = vadd.f32 %v1872, 1.0
      %v1896 = vadd.f32 %v1874, 1.0
      %v1897 = vadd.f32 %v1876, 1.0
      %v1898 = vadd.f32 %v1878, 1.0
      %v1899 = vadd.f32 %v1880, 1.0
      %v1900 = vadd.f32 %v1882, 1.0
      %v1901 = vadd.f32 %v1884, 1.0
      %v1902 = vadd.f32 %v1886, 1.0
      %v1903 = vrcp.pop %v1887
      %v1904 = vmul.f32 %v1887, %v1903
      %v1905 = vsub.f32 1.0, %v1904
      %v1906 = vmul.f32 %v1903, %v1905
      %v1907 = vadd.f32 %v1903, %v1906
      %vm1908 = vweird.f32 %v1887
      %vm1909 = vweird.f32 %v1903
      %vm1910 = vmor %vm1908, %vm1909
      %v1911 = vsel %vm1910, %v1903, %v1907
      %v1912 = vand.u32 2147483647, %v1887
      %vm1913 = vcmp.eq.f32.partialorder %v1912, 8.507059e+37
      %v1914 = vand.u32 %v1887, 2147483648
      %v1915 = vor.u32 1.1754944e-38, %v1914
      %v1916 = vsel %vm1913, %v1915, %v1911
      %v1917 = vmul.f32 1.0, %v1916
      %v1918 = vrcp.pop %v1888
      %v1919 = vmul.f32 %v1888, %v1918
      %v1920 = vsub.f32 1.0, %v1919
      %v1921 = vmul.f32 %v1918, %v1920
      %v1922 = vadd.f32 %v1918, %v1921
      %vm1923 = vweird.f32 %v1888
      %vm1924 = vweird.f32 %v1918
      %vm1925 = vmor %vm1923, %vm1924
      %v1926 = vsel %vm1925, %v1918, %v1922
      %v1927 = vand.u32 2147483647, %v1888
      %vm1928 = vcmp.eq.f32.partialorder %v1927, 8.507059e+37
      %v1929 = vand.u32 %v1888, 2147483648
      %v1930 = vor.u32 1.1754944e-38, %v1929
      %v1931 = vsel %vm1928, %v1930, %v1926
      %v1932 = vmul.f32 1.0, %v1931
      %v1933 = vrcp.pop %v1889
      %v1934 = vmul.f32 %v1889, %v1933
      %v1935 = vsub.f32 1.0, %v1934
      %v1936 = vmul.f32 %v1933, %v1935
      %v1937 = vadd.f32 %v1933, %v1936
      %vm1938 = vweird.f32 %v1889
      %vm1939 = vweird.f32 %v1933
      %vm1940 = vmor %vm1938, %vm1939
      %v1941 = vsel %vm1940, %v1933, %v1937
      %v1942 = vand.u32 2147483647, %v1889
      %vm1943 = vcmp.eq.f32.partialorder %v1942, 8.507059e+37
      %v1944 = vand.u32 %v1889, 2147483648
      %v1945 = vor.u32 1.1754944e-38, %v1944
      %v1946 = vsel %vm1943, %v1945, %v1941
      %v1947 = vmul.f32 1.0, %v1946
      %v1948 = vrcp.pop %v1890
      %v1949 = vmul.f32 %v1890, %v1948
      %v1950 = vsub.f32 1.0, %v1949
      %v1951 = vmul.f32 %v1948, %v1950
      %v1952 = vadd.f32 %v1948, %v1951
      %vm1953 = vweird.f32 %v1890
      %vm1954 = vweird.f32 %v1948
      %vm1955 = vmor %vm1953, %vm1954
      %v1956 = vsel %vm1955, %v1948, %v1952
      %v1957 = vand.u32 2147483647, %v1890
      %vm1958 = vcmp.eq.f32.partialorder %v1957, 8.507059e+37
      %v1959 = vand.u32 %v1890, 2147483648
      %v1960 = vor.u32 1.1754944e-38, %v1959
      %v1961 = vsel %vm1958, %v1960, %v1956
      %v1962 = vmul.f32 1.0, %v1961
      %v1963 = vrcp.pop %v1891
      %v1964 = vmul.f32 %v1891, %v1963
      %v1965 = vsub.f32 1.0, %v1964
      %v1966 = vmul.f32 %v1963, %v1965
      %v1967 = vadd.f32 %v1963, %v1966
      %vm1968 = vweird.f32 %v1891
      %vm1969 = vweird.f32 %v1963
      %vm1970 = vmor %vm1968, %vm1969
      %v1971 = vsel %vm1970, %v1963, %v1967
      %v1972 = vand.u32 2147483647, %v1891
      %vm1973 = vcmp.eq.f32.partialorder %v1972, 8.507059e+37
      %v1974 = vand.u32 %v1891, 2147483648
      %v1975 = vor.u32 1.1754944e-38, %v1974
      %v1976 = vsel %vm1973, %v1975, %v1971
      %v1977 = vmul.f32 1.0, %v1976
      %v1978 = vrcp.pop %v1892
      %v1979 = vmul.f32 %v1892, %v1978
      %v1980 = vsub.f32 1.0, %v1979
      %v1981 = vmul.f32 %v1978, %v1980
      %v1982 = vadd.f32 %v1978, %v1981
      %vm1983 = vweird.f32 %v1892
      %vm1984 = vweird.f32 %v1978
      %vm1985 = vmor %vm1983, %vm1984
      %v1986 = vsel %vm1985, %v1978, %v1982
      %v1987 = vand.u32 2147483647, %v1892
      %vm1988 = vcmp.eq.f32.partialorder %v1987, 8.507059e+37
      %v1989 = vand.u32 %v1892, 2147483648
      %v1990 = vor.u32 1.1754944e-38, %v1989
      %v1991 = vsel %vm1988, %v1990, %v1986
      %v1992 = vmul.f32 1.0, %v1991
      %v1993 = vrcp.pop %v1893
      %v1994 = vmul.f32 %v1893, %v1993
      %v1995 = vsub.f32 1.0, %v1994
      %v1996 = vmul.f32 %v1993, %v1995
      %v1997 = vadd.f32 %v1993, %v1996
      %vm1998 = vweird.f32 %v1893
      %vm1999 = vweird.f32 %v1993
      %vm2000 = vmor %vm1998, %vm1999
      %v2001 = vsel %vm2000, %v1993, %v1997
      %v2002 = vand.u32 2147483647, %v1893
      %vm2003 = vcmp.eq.f32.partialorder %v2002, 8.507059e+37
      %v2004 = vand.u32 %v1893, 2147483648
      %v2005 = vor.u32 1.1754944e-38, %v2004
      %v2006 = vsel %vm2003, %v2005, %v2001
      %v2007 = vmul.f32 1.0, %v2006
      %v2008 = vrcp.pop %v1894
      %v2009 = vmul.f32 %v1894, %v2008
      %v2010 = vsub.f32 1.0, %v2009
      %v2011 = vmul.f32 %v2008, %v2010
      %v2012 = vadd.f32 %v2008, %v2011
      %vm2013 = vweird.f32 %v1894
      %vm2014 = vweird.f32 %v2008
      %vm2015 = vmor %vm2013, %vm2014
      %v2016 = vsel %vm2015, %v2008, %v2012
      %v2017 = vand.u32 2147483647, %v1894
      %vm2018 = vcmp.eq.f32.partialorder %v2017, 8.507059e+37
      %v2019 = vand.u32 %v1894, 2147483648
      %v2020 = vor.u32 1.1754944e-38, %v2019
      %v2021 = vsel %vm2018, %v2020, %v2016
      %v2022 = vmul.f32 1.0, %v2021
      %v2023 = vrcp.pop %v1895
      %v2024 = vmul.f32 %v1895, %v2023
      %v2025 = vsub.f32 1.0, %v2024
      %v2026 = vmul.f32 %v2023, %v2025
      %v2027 = vadd.f32 %v2023, %v2026
      %vm2028 = vweird.f32 %v1895
      %vm2029 = vweird.f32 %v2023
      %vm2030 = vmor %vm2028, %vm2029
      %v2031 = vsel %vm2030, %v2023, %v2027
      %v2032 = vand.u32 2147483647, %v1895
      %vm2033 = vcmp.eq.f32.partialorder %v2032, 8.507059e+37
      %v2034 = vand.u32 %v1895, 2147483648
      %v2035 = vor.u32 1.1754944e-38, %v2034
      %v2036 = vsel %vm2033, %v2035, %v2031
      %v2037 = vmul.f32 1.0, %v2036
      %v2038 = vrcp.pop %v1896
      %v2039 = vmul.f32 %v1896, %v2038
      %v2040 = vsub.f32 1.0, %v2039
      %v2041 = vmul.f32 %v2038, %v2040
      %v2042 = vadd.f32 %v2038, %v2041
      %vm2043 = vweird.f32 %v1896
      %vm2044 = vweird.f32 %v2038
      %vm2045 = vmor %vm2043, %vm2044
      %v2046 = vsel %vm2045, %v2038, %v2042
      %v2047 = vand.u32 2147483647, %v1896
      %vm2048 = vcmp.eq.f32.partialorder %v2047, 8.507059e+37
      %v2049 = vand.u32 %v1896, 2147483648
      %v2050 = vor.u32 1.1754944e-38, %v2049
      %v2051 = vsel %vm2048, %v2050, %v2046
      %v2052 = vmul.f32 1.0, %v2051
      %v2053 = vrcp.pop %v1897
      %v2054 = vmul.f32 %v1897, %v2053
      %v2055 = vsub.f32 1.0, %v2054
      %v2056 = vmul.f32 %v2053, %v2055
      %v2057 = vadd.f32 %v2053, %v2056
      %vm2058 = vweird.f32 %v1897
      %vm2059 = vweird.f32 %v2053
      %vm2060 = vmor %vm2058, %vm2059
      %v2061 = vsel %vm2060, %v2053, %v2057
      %v2062 = vand.u32 2147483647, %v1897
      %vm2063 = vcmp.eq.f32.partialorder %v2062, 8.507059e+37
      %v2064 = vand.u32 %v1897, 2147483648
      %v2065 = vor.u32 1.1754944e-38, %v2064
      %v2066 = vsel %vm2063, %v2065, %v2061
      %v2067 = vmul.f32 1.0, %v2066
      %v2068 = vrcp.pop %v1898
      %v2069 = vmul.f32 %v1898, %v2068
      %v2070 = vsub.f32 1.0, %v2069
      %v2071 = vmul.f32 %v2068, %v2070
      %v2072 = vadd.f32 %v2068, %v2071
      %vm2073 = vweird.f32 %v1898
      %vm2074 = vweird.f32 %v2068
      %vm2075 = vmor %vm2073, %vm2074
      %v2076 = vsel %vm2075, %v2068, %v2072
      %v2077 = vand.u32 2147483647, %v1898
      %vm2078 = vcmp.eq.f32.partialorder %v2077, 8.507059e+37
      %v2079 = vand.u32 %v1898, 2147483648
      %v2080 = vor.u32 1.1754944e-38, %v2079
      %v2081 = vsel %vm2078, %v2080, %v2076
      %v2082 = vmul.f32 1.0, %v2081
      %v2083 = vrcp.pop %v1899
      %v2084 = vmul.f32 %v1899, %v2083
      %v2085 = vsub.f32 1.0, %v2084
      %v2086 = vmul.f32 %v2083, %v2085
      %v2087 = vadd.f32 %v2083, %v2086
      %vm2088 = vweird.f32 %v1899
      %vm2089 = vweird.f32 %v2083
      %vm2090 = vmor %vm2088, %vm2089
      %v2091 = vsel %vm2090, %v2083, %v2087
      %v2092 = vand.u32 2147483647, %v1899
      %vm2093 = vcmp.eq.f32.partialorder %v2092, 8.507059e+37
      %v2094 = vand.u32 %v1899, 2147483648
      %v2095 = vor.u32 1.1754944e-38, %v2094
      %v2096 = vsel %vm2093, %v2095, %v2091
      %v2097 = vmul.f32 1.0, %v2096
      %v2098 = vrcp.pop %v1900
      %v2099 = vmul.f32 %v1900, %v2098
      %v2100 = vsub.f32 1.0, %v2099
      %v2101 = vmul.f32 %v2098, %v2100
      %v2102 = vadd.f32 %v2098, %v2101
      %vm2103 = vweird.f32 %v1900
      %vm2104 = vweird.f32 %v2098
      %vm2105 = vmor %vm2103, %vm2104
      %v2106 = vsel %vm2105, %v2098, %v2102
      %v2107 = vand.u32 2147483647, %v1900
      %vm2108 = vcmp.eq.f32.partialorder %v2107, 8.507059e+37
      %v2109 = vand.u32 %v1900, 2147483648
      %v2110 = vor.u32 1.1754944e-38, %v2109
      %v2111 = vsel %vm2108, %v2110, %v2106
      %v2112 = vmul.f32 1.0, %v2111
      %v2113 = vrcp.pop %v1901
      %v2114 = vmul.f32 %v1901, %v2113
      %v2115 = vsub.f32 1.0, %v2114
      %v2116 = vmul.f32 %v2113, %v2115
      %v2117 = vadd.f32 %v2113, %v2116
      %vm2118 = vweird.f32 %v1901
      %vm2119 = vweird.f32 %v2113
      %vm2120 = vmor %vm2118, %vm2119
      %v2121 = vsel %vm2120, %v2113, %v2117
      %v2122 = vand.u32 2147483647, %v1901
      %vm2123 = vcmp.eq.f32.partialorder %v2122, 8.507059e+37
      %v2124 = vand.u32 %v1901, 2147483648
      %v2125 = vor.u32 1.1754944e-38, %v2124
      %v2126 = vsel %vm2123, %v2125, %v2121
      %v2127 = vmul.f32 1.0, %v2126
      %v2128 = vrcp.pop %v1902
      %v2129 = vmul.f32 %v1902, %v2128
      %v2130 = vsub.f32 1.0, %v2129
      %v2131 = vmul.f32 %v2128, %v2130
      %v2132 = vadd.f32 %v2128, %v2131
      %vm2133 = vweird.f32 %v1902
      %vm2134 = vweird.f32 %v2128
      %vm2135 = vmor %vm2133, %vm2134
      %v2136 = vsel %vm2135, %v2128, %v2132
      %v2137 = vand.u32 2147483647, %v1902
      %vm2138 = vcmp.eq.f32.partialorder %v2137, 8.507059e+37
      %v2139 = vand.u32 %v1902, 2147483648
      %v2140 = vor.u32 1.1754944e-38, %v2139
      %v2141 = vsel %vm2138, %v2140, %v2136
      %v2142 = vmul.f32 1.0, %v2141
      %v2143 = vmul.f32 %v1823, %v1917
      %v2144 = vmul.f32 %v1824, %v1932
      %v2145 = vmul.f32 %v1825, %v1947
      %v2146 = vmul.f32 %v1826, %v1962
      %v2147 = vmul.f32 %v1827, %v1977
      %v2148 = vmul.f32 %v1828, %v1992
      %v2149 = vmul.f32 %v1829, %v2007
      %v2150 = vmul.f32 %v1830, %v2022
      %v2151 = vmul.f32 %v1831, %v2037
      %v2152 = vmul.f32 %v1832, %v2052
      %v2153 = vmul.f32 %v1833, %v2067
      %v2154 = vmul.f32 %v1834, %v2082
      %v2155 = vmul.f32 %v1835, %v2097
      %v2156 = vmul.f32 %v1836, %v2112
      %v2157 = vmul.f32 %v1837, %v2127
      %v2158 = vmul.f32 %v1838, %v2142
      %v2159 = vpack.c.bf16 %v2143, %v2143
      %v2160 = vpack.c.bf16 %v2144, %v2144
      %v2161 = vpack.c.bf16 %v2145, %v2145
      %v2162 = vpack.c.bf16 %v2146, %v2146
      %v2163 = vpack.c.bf16 %v2147, %v2147
      %v2164 = vpack.c.bf16 %v2148, %v2148
      %v2165 = vpack.c.bf16 %v2149, %v2149
      %v2166 = vpack.c.bf16 %v2150, %v2150
      %v2167 = vpack.c.bf16 %v2151, %v2151
      %v2168 = vpack.c.bf16 %v2152, %v2152
      %v2169 = vpack.c.bf16 %v2153, %v2153
      %v2170 = vpack.c.bf16 %v2154, %v2154
      %v2171 = vpack.c.bf16 %v2155, %v2155
      %v2172 = vpack.c.bf16 %v2156, %v2156
      %v2173 = vpack.c.bf16 %v2157, %v2157
      %v2174 = vpack.c.bf16 %v2158, %v2158
      %vm2175 = vcmask 60416
      %2176 = vst.msk [vmem:[%s473] sm:$0xf] %vm2175, %v2159
      %2177 = vst.msk [vmem:[%s473 + $0x4] sm:$0xf] %vm2175, %v2160
      %2178 = vst.msk [vmem:[%s473 + $0x8] sm:$0xf] %vm2175, %v2161
      %2179 = vst.msk [vmem:[%s473 + $0xc] sm:$0xf] %vm2175, %v2162
      %2180 = vst.msk [vmem:[%s473 + $0x10] sm:$0xf] %vm2175, %v2163
      %2181 = vst.msk [vmem:[%s473 + $0x14] sm:$0xf] %vm2175, %v2164
      %2182 = vst.msk [vmem:[%s473 + $0x18] sm:$0xf] %vm2175, %v2165
      %2183 = vst.msk [vmem:[%s473 + $0x1c] sm:$0xf] %vm2175, %v2166
      %2184 = vst.msk [vmem:[%s473 + $0x20] sm:$0xf] %vm2175, %v2167
      %2185 = vst.msk [vmem:[%s473 + $0x24] sm:$0xf] %vm2175, %v2168
      %2186 = vst.msk [vmem:[%s473 + $0x28] sm:$0xf] %vm2175, %v2169
      %2187 = vst.msk [vmem:[%s473 + $0x2c] sm:$0xf] %vm2175, %v2170
      %2188 = vst.msk [vmem:[%s473 + $0x30] sm:$0xf] %vm2175, %v2171
      %2189 = vst.msk [vmem:[%s473 + $0x34] sm:$0xf] %vm2175, %v2172
      %2190 = vst.msk [vmem:[%s473 + $0x38] sm:$0xf] %vm2175, %v2173
      %2191 = vst.msk [vmem:[%s473 + $0x3c] sm:$0xf] %vm2175, %v2174
      %s2192 = smul.u32 8, %s23
      %p2193 = scmp.lt.s32.totalorder %s22, 1
      %s2194 = scalar_select %p2193, %s22, 1
      %p2195 = scmp.lt.s32.totalorder %s2192, 15
      %s2196 = scalar_select %p2195, %s2192, 15
      %s2197 = smul.addr %s2196, 2
      %s2198 = smul.addr %s2194, 32
      %s2199 = sadd.s32 %s2197, %s2198
      %s2200 = smul.addr %s2199, 4
      %s2201 = scalar_lea.vmem %s7, %s2200
      // Predicated region
      $region49: #{resnet_block_forward.4} parent=47 // pred_check
        %p2202 = pneg %p244
      $region50: #{resnet_block_forward.4} parent=47 // pred_check_branch
        %2204 = sbr.rel (%p2202) target = $region52
      $region51: #{resnet_block_forward.4} parent=47 // pred_region
        %s2205 = smul.u32 8, %s23
      $region52: #{resnet_block_forward.4} parent=47 // pred_fallthru
        _
    $region48: #{resnet_block_forward.4} parent=5 // pred_fallthru
      _
    %p2206 = scmp.le.s32.totalorder 2, %s13
    // Predicated region
    $region53: #{resnet_block_forward.4} parent=5 // pred_check
      %p2207 = pneg %p2206
    $region54: #{resnet_block_forward.4} parent=5 // pred_check_branch
      %2209 = sbr.rel (%p2207) target = $region56
    $region55: #{resnet_block_forward.4} parent=5 // pred_region
      %s2210 = ssub.s32 %s13, 2
      // Predicated region
      $region57: #{resnet_block_forward.4} parent=55 // pred_check
        %p2211 = pneg %p250
      $region58: #{resnet_block_forward.4} parent=55 // pred_check_branch
        %2213 = sbr.rel (%p2211) target = $region60
      $region59: #{resnet_block_forward.4} parent=55 // pred_region
        %s2214 = smul.u32 8, %s25
        %p2215 = scmp.lt.s32.totalorder %s24, 1
        %s2216 = scalar_select %p2215, %s24, 1
        %p2217 = scmp.lt.s32.totalorder %s2214, 15
        %s2218 = scalar_select %p2217, %s2214, 15
        %s2219 = smul.addr %s2218, 2
        %s2220 = smul.addr %s2216, 32
        %s2221 = sadd.s32 %s2219, %s2220
        %s2222 = smul.addr %s2221, 4
        %s2223 = scalar_lea.vmem %s7, %s2222
      $region60: #{resnet_block_forward.4} parent=55 // pred_fallthru
        _
    $region56: #{resnet_block_forward.4} parent=5 // pred_fallthru
      _
  $region6: #{resnet_block_forward.4} parent=0 // loop_footer
    %s17 = sadd.s32 1, %s13
  $region7: #{resnet_block_forward.4} parent=0 // loop_footer_branch
    %12 = sbr.rel target = $region3
  $region8: #{resnet_block_forward.4} parent=0 // loop_exit
    _

// kernel: resnet_block_forward.5
$region0: #{resnet_block_forward.5}
  #allocation0 [shape = 'u32[]', space=smem, size = 0x4, offset = 0x4, fixed_abs, tag = 'smem constant byte address 0x4 - core index']
  #allocation1 [shape = 'u32[72,128]{1,0:T(1,128)}', space=vmem, size = 0x9000, scoped, tag = 'internal scratch']
  %s0 = inlined_call_operand.vmem [shape: bf16[2,16,16,8], index: 0, kind: input, shape index: {}, may-alias: {0,1,2}]
  %s1 = inlined_call_operand.vmem [shape: bf16[2,16,16,8], index: 1, kind: input, shape index: {}, may-alias: {0,1,2}]
  %s2 = inlined_call_operand.vmem [shape: bf16[2,16,16,8], index: 2, kind: input, shape index: {}, may-alias: {0,1,2}]
  %s3 = inlined_call_operand.vmem [shape: bf16[9,8,8], index: 3, kind: input, shape index: {}]
  %s4 = inlined_call_operand.vmem [shape: f32[1,1,8], index: 4, kind: input, shape index: {}]
  %s5 = inlined_call_operand.vmem [shape: f32[2,1,8], index: 5, kind: input, shape index: {}]
  %s6 = inlined_call_operand.vmem [shape: f32[2,1,8], index: 6, kind: input, shape index: {}]
  %s7 = inlined_call_operand.vmem [shape: bf16[2,16,16,4], index: 7, kind: input, shape index: {}]
  %s8 = inlined_call_operand.vmem [shape: bf16[4,8], index: 8, kind: input, shape index: {}]
  %s9 = inlined_call_operand.vmem [shape: f32[1,1,8], index: 9, kind: input, shape index: {}]
  %s10 = inlined_call_operand.vmem [shape: bf16[2,16,16,8], index: 10, kind: output, shape index: {}]
  %s11 = sld [smem:[#allocation0]]
  $region73: #{resnet_block_forward.5} parent=0
    _
  %s13 = ssub.s32 1, %s11
  %s14 = scalar_select 0, %s13, %s11
  loop: start=0, step=1, limit=6
  $region2: #{resnet_block_forward.5} parent=0 // loop_pre_header
    _
  $region3: #{resnet_block_forward.5} parent=0 // loop_header
    %s16 = sphi 0, %s20
    %p17 = scmp.ge.s32.totalorder %s16, 6
    %s23 = sphi 0, %s35
    %s24 = sphi 0, %s31
    %s25 = sphi 0, %s23
    %s26 = sphi 0, %s24
    %s27 = sphi 0, %s25
    %s28 = sphi 0, %s26
    %s40 = sphi 0, %s42
    %s43 = sphi 0, %s40
    %s44 = sphi 0, %s43
    %s60 = sphi 0, %s44
    %s76 = sphi 0, %s78
    %s79 = sphi 0, %s76
    %s80 = sphi 0, %s79
    %s96 = sphi 0, %s80
    %s112 = sphi 0, %s114
    %s115 = sphi 0, %s112
    %s116 = sphi 0, %s115
    %s132 = sphi 0, %s116
    %s136 = sphi 0, %s136
    %s138 = sphi 0, %s136
    %s139 = sphi 0, %s138
    %s153 = sphi 0, %s139
    %s157 = sphi 0, %s157
    %s159 = sphi 0, %s157
    %s160 = sphi 0, %s159
    %s174 = sphi 0, %s160
    %s180 = sphi 0, %s182
    %s183 = sphi 0, %s180
    %s184 = sphi 0, %s183
    %s200 = sphi 0, %s184
    %s206 = sphi 0, %s208
    %s209 = sphi 0, %s206
    %s210 = sphi 0, %s209
    %s226 = sphi 0, %s210
    %s234 = sphi 0, %s236
    %s237 = sphi 0, %s234
    %s238 = sphi 0, %s237
    %s254 = sphi 0, %s238
    %s258 = sphi 0, %s258
    %s260 = sphi 0, %s258
    %s261 = sphi 0, %s260
    %s275 = sphi 0, %s261
    %s279 = sphi 0, %s279
    %s281 = sphi 0, %s279
    %s282 = sphi 0, %s281
    %s296 = sphi 0, %s282
    %s304 = sphi 0, %s306
    %s307 = sphi 0, %s304
    %s308 = sphi 0, %s307
    %s324 = sphi 0, %s308
  $region4: #{resnet_block_forward.5} parent=0 // loop_header_branch
    %19 = sbr.rel (%p17) target = $region8
  $region5: #{resnet_block_forward.5} parent=0 // loop_body
    %s21 = ssub.s32 %s16, 1
    %s22 = ssub.s32 %s16, 2
    %s29 = sadd.s32 1, %s24
    %p30 = scmp.ge.s32.totalorder %s29, 2
    %s31 = scalar_select %p30, 0, %s29
    %s32 = sadd.s32 1, %s23
    %s33 = scalar_select %p30, %s32, %s23
    %p34 = scmp.ge.s32.totalorder %s33, 2
    %s35 = scalar_select %p34, 0, %s33
    %s36 = ssub.s32 %s23, %s35
    %s37 = ssub.s32 %s24, %s31
    %s38 = sor.u32 %s36, %s37
    %p39 = scmp.eq.s32.totalorder %s38, 0
    %s41 = sadd.s32 %s40, 1
    %s42 = scalar_select %p39, %s40, %s41
    %p45 = pneg %p39
    %p46 = scmp.eq.s32.totalorder %s16, 3
    %p47 = por %p45, %p46
    %p48 = scmp.ne.s32.totalorder %s40, %s43
    %p49 = scmp.eq.s32.totalorder %s16, 0
    %p50 = por %p48, %p49
    %p51 = scmp.ne.s32.totalorder %s40, %s43
    %p52 = scmp.eq.s32.totalorder %s21, 3
    %p53 = por %p51, %p52
    %p54 = scmp.ne.s32.totalorder %s43, %s44
    %p55 = scmp.eq.s32.totalorder %s21, 0
    %p56 = por %p54, %p55
    %p57 = scmp.ne.s32.totalorder %s43, %s44
    %p58 = scmp.eq.s32.totalorder %s22, 3
    %p59 = por %p57, %p58
    %p61 = scmp.ne.s32.totalorder %s44, %s60
    %p62 = scmp.eq.s32.totalorder %s22, 0
    %p63 = por %p61, %p62
    %s64 = smul.u32 %s24, 8
    %s65 = ssub.s32 %s64, 1
    %p66 = scmp.gt.s32.totalorder %s65, 0
    %s67 = scalar_select %p66, %s65, 0
    %s68 = smul.u32 %s31, 8
    %s69 = ssub.s32 %s68, 1
    %p70 = scmp.gt.s32.totalorder %s69, 0
    %s71 = scalar_select %p70, %s69, 0
    %s72 = ssub.s32 %s23, %s35
    %s73 = ssub.s32 %s67, %s71
    %s74 = sor.u32 %s72, %s73
    %p75 = scmp.eq.s32.totalorder %s74, 0
    %s77 = sadd.s32 %s76, 1
    %s78 = scalar_select %p75, %s76, %s77
    %p81 = pneg %p75
    %p82 = scmp.eq.s32.totalorder %s16, 3
    %p83 = por %p81, %p82
    %p84 = scmp.ne.s32.totalorder %s76, %s79
    %p85 = scmp.eq.s32.totalorder %s16, 0
    %p86 = por %p84, %p85
    %p87 = scmp.ne.s32.totalorder %s76, %s79
    %p88 = scmp.eq.s32.totalorder %s21, 3
    %p89 = por %p87, %p88
    %p90 = scmp.ne.s32.totalorder %s79, %s80
    %p91 = scmp.eq.s32.totalorder %s21, 0
    %p92 = por %p90, %p91
    %p93 = scmp.ne.s32.totalorder %s79, %s80
    %p94 = scmp.eq.s32.totalorder %s22, 3
    %p95 = por %p93, %p94
    %p97 = scmp.ne.s32.totalorder %s80, %s96
    %p98 = scmp.eq.s32.totalorder %s22, 0
    %p99 = por %p97, %p98
    %s100 = smul.u32 %s24, 8
    %s101 = sadd.s32 %s100, 8
    %p102 = scmp.lt.s32.totalorder %s101, 15
    %s103 = scalar_select %p102, %s101, 15
    %s104 = smul.u32 %s31, 8
    %s105 = sadd.s32 %s104, 8
    %p106 = scmp.lt.s32.totalorder %s105, 15
    %s107 = scalar_select %p106, %s105, 15
    %s108 = ssub.s32 %s23, %s35
    %s109 = ssub.s32 %s103, %s107
    %s110 = sor.u32 %s108, %s109
    %p111 = scmp.eq.s32.totalorder %s110, 0
    %s113 = sadd.s32 %s112, 1
    %s114 = scalar_select %p111, %s112, %s113
    %p117 = pneg %p111
    %p118 = scmp.eq.s32.totalorder %s16, 3
    %p119 = por %p117, %p118
    %p120 = scmp.ne.s32.totalorder %s112, %s115
    %p121 = scmp.eq.s32.totalorder %s16, 0
    %p122 = por %p120, %p121
    %p123 = scmp.ne.s32.totalorder %s112, %s115
    %p124 = scmp.eq.s32.totalorder %s21, 3
    %p125 = por %p123, %p124
    %p126 = scmp.ne.s32.totalorder %s115, %s116
    %p127 = scmp.eq.s32.totalorder %s21, 0
    %p128 = por %p126, %p127
    %p129 = scmp.ne.s32.totalorder %s115, %s116
    %p130 = scmp.eq.s32.totalorder %s22, 3
    %p131 = por %p129, %p130
    %p133 = scmp.ne.s32.totalorder %s116, %s132
    %p134 = scmp.eq.s32.totalorder %s22, 0
    %p135 = por %p133, %p134
    %s137 = sadd.s32 %s136, 1
    %p140 = scmp.eq.s32.totalorder %s16, 3
    %p141 = scmp.ne.s32.totalorder %s136, %s138
    %p142 = scmp.eq.s32.totalorder %s16, 0
    %p143 = por %p141, %p142
    %p144 = scmp.ne.s32.totalorder %s136, %s138
    %p145 = scmp.eq.s32.totalorder %s21, 3
    %p146 = por %p144, %p145
    %p147 = scmp.ne.s32.totalorder %s138, %s139
    %p148 = scmp.eq.s32.totalorder %s21, 0
    %p149 = por %p147, %p148
    %p150 = scmp.ne.s32.totalorder %s138, %s139
    %p151 = scmp.eq.s32.totalorder %s22, 3
    %p152 = por %p150, %p151
    %p154 = scmp.ne.s32.totalorder %s139, %s153
    %p155 = scmp.eq.s32.totalorder %s22, 0
    %p156 = por %p154, %p155
    %s158 = sadd.s32 %s157, 1
    %p161 = scmp.eq.s32.totalorder %s16, 3
    %p162 = scmp.ne.s32.totalorder %s157, %s159
    %p163 = scmp.eq.s32.totalorder %s16, 0
    %p164 = por %p162, %p163
    %p165 = scmp.ne.s32.totalorder %s157, %s159
    %p166 = scmp.eq.s32.totalorder %s21, 3
    %p167 = por %p165, %p166
    %p168 = scmp.ne.s32.totalorder %s159, %s160
    %p169 = scmp.eq.s32.totalorder %s21, 0
    %p170 = por %p168, %p169
    %p171 = scmp.ne.s32.totalorder %s159, %s160
    %p172 = scmp.eq.s32.totalorder %s22, 3
    %p173 = por %p171, %p172
    %p175 = scmp.ne.s32.totalorder %s160, %s174
    %p176 = scmp.eq.s32.totalorder %s22, 0
    %p177 = por %p175, %p176
    %s178 = ssub.s32 %s23, %s35
    %p179 = scmp.eq.s32.totalorder %s178, 0
    %s181 = sadd.s32 %s180, 1
    %s182 = scalar_select %p179, %s180, %s181
    %p185 = pneg %p179
    %p186 = scmp.eq.s32.totalorder %s16, 3
    %p187 = por %p185, %p186
    %p188 = scmp.ne.s32.totalorder %s180, %s183
    %p189 = scmp.eq.s32.totalorder %s16, 0
    %p190 = por %p188, %p189
    %p191 = scmp.ne.s32.totalorder %s180, %s183
    %p192 = scmp.eq.s32.totalorder %s21, 3
    %p193 = por %p191, %p192
    %p194 = scmp.ne.s32.totalorder %s183, %s184
    %p195 = scmp.eq.s32.totalorder %s21, 0
    %p196 = por %p194, %p195
    %p197 = scmp.ne.s32.totalorder %s183, %s184
    %p198 = scmp.eq.s32.totalorder %s22, 3
    %p199 = por %p197, %p198
    %p201 = scmp.ne.s32.totalorder %s184, %s200
    %p202 = scmp.eq.s32.totalorder %s22, 0
    %p203 = por %p201, %p202
    %s204 = ssub.s32 %s23, %s35
    %p205 = scmp.eq.s32.totalorder %s204, 0
    %s207 = sadd.s32 %s206, 1
    %s208 = scalar_select %p205, %s206, %s207
    %p211 = pneg %p205
    %p212 = scmp.eq.s32.totalorder %s16, 3
    %p213 = por %p211, %p212
    %p214 = scmp.ne.s32.totalorder %s206, %s209
    %p215 = scmp.eq.s32.totalorder %s16, 0
    %p216 = por %p214, %p215
    %p217 = scmp.ne.s32.totalorder %s206, %s209
    %p218 = scmp.eq.s32.totalorder %s21, 3
    %p219 = por %p217, %p218
    %p220 = scmp.ne.s32.totalorder %s209, %s210
    %p221 = scmp.eq.s32.totalorder %s21, 0
    %p222 = por %p220, %p221
    %p223 = scmp.ne.s32.totalorder %s209, %s210
    %p224 = scmp.eq.s32.totalorder %s22, 3
    %p225 = por %p223, %p224
    %p227 = scmp.ne.s32.totalorder %s210, %s226
    %p228 = scmp.eq.s32.totalorder %s22, 0
    %p229 = por %p227, %p228
    %s230 = ssub.s32 %s23, %s35
    %s231 = ssub.s32 %s24, %s31
    %s232 = sor.u32 %s230, %s231
    %p233 = scmp.eq.s32.totalorder %s232, 0
    %s235 = sadd.s32 %s234, 1
    %s236 = scalar_select %p233, %s234, %s235
    %p239 = pneg %p233
    %p240 = scmp.eq.s32.totalorder %s16, 3
    %p241 = por %p239, %p240
    %p242 = scmp.ne.s32.totalorder %s234, %s237
    %p243 = scmp.eq.s32.totalorder %s16, 0
    %p244 = por %p242, %p243
    %p245 = scmp.ne.s32.totalorder %s234, %s237
    %p246 = scmp.eq.s32.totalorder %s21, 3
    %p247 = por %p245, %p246
    %p248 = scmp.ne.s32.totalorder %s237, %s238
    %p249 = scmp.eq.s32.totalorder %s21, 0
    %p250 = por %p248, %p249
    %p251 = scmp.ne.s32.totalorder %s237, %s238
    %p252 = scmp.eq.s32.totalorder %s22, 3
    %p253 = por %p251, %p252
    %p255 = scmp.ne.s32.totalorder %s238, %s254
    %p256 = scmp.eq.s32.totalorder %s22, 0
    %p257 = por %p255, %p256
    %s259 = sadd.s32 %s258, 1
    %p262 = scmp.eq.s32.totalorder %s16, 3
    %p263 = scmp.ne.s32.totalorder %s258, %s260
    %p264 = scmp.eq.s32.totalorder %s16, 0
    %p265 = por %p263, %p264
    %p266 = scmp.ne.s32.totalorder %s258, %s260
    %p267 = scmp.eq.s32.totalorder %s21, 3
    %p268 = por %p266, %p267
    %p269 = scmp.ne.s32.totalorder %s260, %s261
    %p270 = scmp.eq.s32.totalorder %s21, 0
    %p271 = por %p269, %p270
    %p272 = scmp.ne.s32.totalorder %s260, %s261
    %p273 = scmp.eq.s32.totalorder %s22, 3
    %p274 = por %p272, %p273
    %p276 = scmp.ne.s32.totalorder %s261, %s275
    %p277 = scmp.eq.s32.totalorder %s22, 0
    %p278 = por %p276, %p277
    %s280 = sadd.s32 %s279, 1
    %p283 = scmp.eq.s32.totalorder %s16, 3
    %p284 = scmp.ne.s32.totalorder %s279, %s281
    %p285 = scmp.eq.s32.totalorder %s16, 0
    %p286 = por %p284, %p285
    %p287 = scmp.ne.s32.totalorder %s279, %s281
    %p288 = scmp.eq.s32.totalorder %s21, 3
    %p289 = por %p287, %p288
    %p290 = scmp.ne.s32.totalorder %s281, %s282
    %p291 = scmp.eq.s32.totalorder %s21, 0
    %p292 = por %p290, %p291
    %p293 = scmp.ne.s32.totalorder %s281, %s282
    %p294 = scmp.eq.s32.totalorder %s22, 3
    %p295 = por %p293, %p294
    %p297 = scmp.ne.s32.totalorder %s282, %s296
    %p298 = scmp.eq.s32.totalorder %s22, 0
    %p299 = por %p297, %p298
    %s300 = ssub.s32 %s23, %s35
    %s301 = ssub.s32 %s24, %s31
    %s302 = sor.u32 %s300, %s301
    %p303 = scmp.eq.s32.totalorder %s302, 0
    %s305 = sadd.s32 %s304, 1
    %s306 = scalar_select %p303, %s304, %s305
    %p309 = pneg %p303
    %p310 = scmp.eq.s32.totalorder %s16, 3
    %p311 = por %p309, %p310
    %p312 = scmp.ne.s32.totalorder %s304, %s307
    %p313 = scmp.eq.s32.totalorder %s16, 0
    %p314 = por %p312, %p313
    %p315 = scmp.ne.s32.totalorder %s304, %s307
    %p316 = scmp.eq.s32.totalorder %s21, 3
    %p317 = por %p315, %p316
    %p318 = scmp.ne.s32.totalorder %s307, %s308
    %p319 = scmp.eq.s32.totalorder %s21, 0
    %p320 = por %p318, %p319
    %p321 = scmp.ne.s32.totalorder %s307, %s308
    %p322 = scmp.eq.s32.totalorder %s22, 3
    %p323 = por %p321, %p322
    %p325 = scmp.ne.s32.totalorder %s308, %s324
    %p326 = scmp.eq.s32.totalorder %s22, 0
    %p327 = por %p325, %p326
    %p328 = scmp.le.s32.totalorder 1, %s16
    %p329 = scmp.lt.s32.totalorder %s16, 5
    %p330 = pnand %p328, %p329
    %p331 = pneg %p330
    // Predicated region
    $region9: #{resnet_block_forward.5} parent=5 // pred_check
      _
    $region10: #{resnet_block_forward.5} parent=5 // pred_check_branch
      %333 = sbr.rel (%p330) target = $region12
    $region11: #{resnet_block_forward.5} parent=5 // pred_region
      %s334 = ssub.s32 %s16, 1
      // Predicated region
      $region13: #{resnet_block_forward.5} parent=11 // pred_check
        %p335 = pneg %p149
      $region14: #{resnet_block_forward.5} parent=11 // pred_check_branch
        %337 = sbr.rel (%p335) target = $region16
      $region15: #{resnet_block_forward.5} parent=11 // pred_region
        _
      $region16: #{resnet_block_forward.5} parent=11 // pred_fallthru
        _
      // Predicated region
      $region17: #{resnet_block_forward.5} parent=11 // pred_check
        %p338 = pneg %p170
      $region18: #{resnet_block_forward.5} parent=11 // pred_check_branch
        %340 = sbr.rel (%p338) target = $region20
      $region19: #{resnet_block_forward.5} parent=11 // pred_region
        _
      $region20: #{resnet_block_forward.5} parent=11 // pred_fallthru
        _
      // Predicated region
      $region21: #{resnet_block_forward.5} parent=11 // pred_check
        %p341 = pneg %p271
      $region22: #{resnet_block_forward.5} parent=11 // pred_check_branch
        %343 = sbr.rel (%p341) target = $region24
      $region23: #{resnet_block_forward.5} parent=11 // pred_region
        _
      $region24: #{resnet_block_forward.5} parent=11 // pred_fallthru
        _
      // Predicated region
      $region25: #{resnet_block_forward.5} parent=11 // pred_check
        %p344 = pneg %p292
      $region26: #{resnet_block_forward.5} parent=11 // pred_check_branch
        %346 = sbr.rel (%p344) target = $region28
      $region27: #{resnet_block_forward.5} parent=11 // pred_region
        _
      $region28: #{resnet_block_forward.5} parent=11 // pred_fallthru
        _
    $region12: #{resnet_block_forward.5} parent=5 // pred_fallthru
      _
    %p347 = scmp.lt.s32.totalorder %s16, 4
    // Predicated region
    $region29: #{resnet_block_forward.5} parent=5 // pred_check
      %p348 = pneg %p347
    $region30: #{resnet_block_forward.5} parent=5 // pred_check_branch
      %350 = sbr.rel (%p348) target = $region32
    $region31: #{resnet_block_forward.5} parent=5 // pred_region
      // Predicated region
      $region33: #{resnet_block_forward.5} parent=31 // pred_check
        %p351 = pneg %p50
      $region34: #{resnet_block_forward.5} parent=31 // pred_check_branch
        %353 = sbr.rel (%p351) target = $region36
      $region35: #{resnet_block_forward.5} parent=31 // pred_region
        %s354 = smul.u32 8, %s24
        %p355 = scmp.lt.s32.totalorder %s23, 1
        %s356 = scalar_select %p355, %s23, 1
        %p357 = scmp.lt.s32.totalorder %s354, 15
        %s358 = scalar_select %p357, %s354, 15
        %s359 = smul.addr %s358, 2
        %s360 = smul.addr %s356, 32
        %s361 = sadd.s32 %s359, %s360
        %s362 = smul.addr %s361, 4
        %s363 = scalar_lea.vmem %s0, %s362
        %s364 = smul.u32 8, %s24
      $region36: #{resnet_block_forward.5} parent=31 // pred_fallthru
        _
      // Predicated region
      $region37: #{resnet_block_forward.5} parent=31 // pred_check
        %p365 = pneg %p86
      $region38: #{resnet_block_forward.5} parent=31 // pred_check_branch
        %367 = sbr.rel (%p365) target = $region40
      $region39: #{resnet_block_forward.5} parent=31 // pred_region
        %s368 = smul.u32 %s24, 8
        %s369 = ssub.s32 %s368, 1
        %p370 = scmp.gt.s32.totalorder %s369, 0
        %s371 = scalar_select %p370, %s369, 0
        %p372 = scmp.lt.s32.totalorder %s23, 1
        %s373 = scalar_select %p372, %s23, 1
        %p374 = scmp.lt.s32.totalorder %s371, 15
        %s375 = scalar_select %p374, %s371, 15
        %s376 = smul.addr %s375, 2
        %s377 = smul.addr %s373, 32
        %s378 = sadd.s32 %s376, %s377
        %s379 = smul.addr %s378, 4
        %s380 = scalar_lea.vmem %s1, %s379
        %s381 = smul.u32 %s24, 8
        %s382 = ssub.s32 %s381, 1
        %p383 = scmp.gt.s32.totalorder %s382, 0
        %s384 = scalar_select %p383, %s382, 0
      $region40: #{resnet_block_forward.5} parent=31 // pred_fallthru
        _
      // Predicated region
      $region41: #{resnet_block_forward.5} parent=31 // pred_check
        %p385 = pneg %p122
      $region42: #{resnet_block_forward.5} parent=31 // pred_check_branch
        %387 = sbr.rel (%p385) target = $region44
      $region43: #{resnet_block_forward.5} parent=31 // pred_region
        %s388 = smul.u32 %s24, 8
        %s389 = sadd.s32 %s388, 8
        %p390 = scmp.lt.s32.totalorder %s389, 15
        %s391 = scalar_select %p390, %s389, 15
        %p392 = scmp.lt.s32.totalorder %s23, 1
        %s393 = scalar_select %p392, %s23, 1
        %p394 = scmp.lt.s32.totalorder %s391, 15
        %s395 = scalar_select %p394, %s391, 15
        %s396 = smul.addr %s395, 2
        %s397 = smul.addr %s393, 32
        %s398 = sadd.s32 %s396, %s397
        %s399 = smul.addr %s398, 4
        %s400 = scalar_lea.vmem %s2, %s399
        %s401 = smul.u32 %s24, 8
        %s402 = sadd.s32 %s401, 8
        %p403 = scmp.lt.s32.totalorder %s402, 15
        %s404 = scalar_select %p403, %s402, 15
      $region44: #{resnet_block_forward.5} parent=31 // pred_fallthru
        _
      // Predicated region
      $region45: #{resnet_block_forward.5} parent=31 // pred_check
        %p405 = pneg %p190
      $region46: #{resnet_block_forward.5} parent=31 // pred_check_branch
        %407 = sbr.rel (%p405) target = $region48
      $region47: #{resnet_block_forward.5} parent=31 // pred_region
        %p408 = scmp.lt.s32.totalorder %s23, 1
        %s409 = scalar_select %p408, %s23, 1
        %s410 = scalar_lea.vmem %s5, %s409
      $region48: #{resnet_block_forward.5} parent=31 // pred_fallthru
        _
      // Predicated region
      $region49: #{resnet_block_forward.5} parent=31 // pred_check
        %p411 = pneg %p216
      $region50: #{resnet_block_forward.5} parent=31 // pred_check_branch
        %413 = sbr.rel (%p411) target = $region52
      $region51: #{resnet_block_forward.5} parent=31 // pred_region
        %p414 = scmp.lt.s32.totalorder %s23, 1
        %s415 = scalar_select %p414, %s23, 1
        %s416 = scalar_lea.vmem %s6, %s415
      $region52: #{resnet_block_forward.5} parent=31 // pred_fallthru
        _
      // Predicated region
      $region53: #{resnet_block_forward.5} parent=31 // pred_check
        %p417 = pneg %p244
      $region54: #{resnet_block_forward.5} parent=31 // pred_check_branch
        %419 = sbr.rel (%p417) target = $region56
      $region55: #{resnet_block_forward.5} parent=31 // pred_region
        %s420 = smul.u32 8, %s24
        %p421 = scmp.lt.s32.totalorder %s23, 1
        %s422 = scalar_select %p421, %s23, 1
        %p423 = scmp.lt.s32.totalorder %s420, 15
        %s424 = scalar_select %p423, %s420, 15
        %s425 = smul.addr %s424, 2
        %s426 = smul.addr %s422, 32
        %s427 = sadd.s32 %s425, %s426
        %s428 = smul.addr %s427, 4
        %s429 = scalar_lea.vmem %s7, %s428
        %s430 = smul.u32 8, %s24
      $region56: #{resnet_block_forward.5} parent=31 // pred_fallthru
        _
    $region32: #{resnet_block_forward.5} parent=5 // pred_fallthru
      _
    %p431 = scmp.le.s32.totalorder 1, %s16
    %p432 = scmp.lt.s32.totalorder %s16, 5
    %p433 = pnand %p431, %p432
    %p434 = pneg %p433
    // Predicated region
    $region57: #{resnet_block_forward.5} parent=5 // pred_check
      _
    $region58: #{resnet_block_forward.5} parent=5 // pred_check_branch
      %436 = sbr.rel (%p433) target = $region60
    $region59: #{resnet_block_forward.5} parent=5 // pred_region
      %s437 = ssub.s32 %s16, 1
      %s438 = smul.u32 8, %s26
      %p439 = scmp.lt.s32.totalorder %s25, 1
      %s440 = scalar_select %p439, %s25, 1
      %p441 = scmp.lt.s32.totalorder %s438, 15
      %s442 = scalar_select %p441, %s438, 15
      %s443 = smul.addr %s442, 2
      %s444 = smul.addr %s440, 32
      %s445 = sadd.s32 %s443, %s444
      %s446 = smul.addr %s445, 4
      %s447 = scalar_lea.vmem %s0, %s446
      %p448 = pneg %p56
      %p449 = pneg %p53
      %s450 = smul.u32 %s26, 8
      %s451 = ssub.s32 %s450, 1
      %p452 = scmp.gt.s32.totalorder %s451, 0
      %s453 = scalar_select %p452, %s451, 0
      %p454 = scmp.lt.s32.totalorder %s25, 1
      %s455 = scalar_select %p454, %s25, 1
      %p456 = scmp.lt.s32.totalorder %s453, 15
      %s457 = scalar_select %p456, %s453, 15
      %s458 = smul.addr %s457, 2
      %s459 = smul.addr %s455, 32
      %s460 = sadd.s32 %s458, %s459
      %s461 = smul.addr %s460, 4
      %s462 = scalar_lea.vmem %s1, %s461
      %p463 = pneg %p92
      %p464 = pneg %p89
      %s465 = smul.u32 %s26, 8
      %s466 = sadd.s32 %s465, 8
      %p467 = scmp.lt.s32.totalorder %s466, 15
      %s468 = scalar_select %p467, %s466, 15
      %p469 = scmp.lt.s32.totalorder %s25, 1
      %s470 = scalar_select %p469, %s25, 1
      %p471 = scmp.lt.s32.totalorder %s468, 15
      %s472 = scalar_select %p471, %s468, 15
      %s473 = smul.addr %s472, 2
      %s474 = smul.addr %s470, 32
      %s475 = sadd.s32 %s473, %s474
      %s476 = smul.addr %s475, 4
      %s477 = scalar_lea.vmem %s2, %s476
      %p478 = pneg %p128
      %p479 = pneg %p125
      %p480 = pneg %p149
      %p481 = pneg %p146
      %p482 = pneg %p170
      %p483 = pneg %p167
      %p484 = scmp.lt.s32.totalorder %s25, 1
      %s485 = scalar_select %p484, %s25, 1
      %s486 = scalar_lea.vmem %s5, %s485
      %p487 = pneg %p196
      %p488 = pneg %p193
      %p489 = scmp.lt.s32.totalorder %s25, 1
      %s490 = scalar_select %p489, %s25, 1
      %s491 = scalar_lea.vmem %s6, %s490
      %p492 = pneg %p222
      %p493 = pneg %p219
      %s494 = smul.u32 8, %s26
      %p495 = scmp.lt.s32.totalorder %s25, 1
      %s496 = scalar_select %p495, %s25, 1
      %p497 = scmp.lt.s32.totalorder %s494, 15
      %s498 = scalar_select %p497, %s494, 15
      %s499 = smul.addr %s498, 2
      %s500 = smul.addr %s496, 32
      %s501 = sadd.s32 %s499, %s500
      %s502 = smul.addr %s501, 4
      %s503 = scalar_lea.vmem %s7, %s502
      %p504 = pneg %p250
      %p505 = pneg %p247
      %p506 = pneg %p271
      %p507 = pneg %p268
      %p508 = pneg %p292
      %p509 = pneg %p289
      %p510 = pneg %p320
      %p511 = pneg %p317
      %s512 = smul.u32 8, %s26
      %p513 = scmp.lt.s32.totalorder %s25, 1
      %s514 = scalar_select %p513, %s25, 1
      %p515 = scmp.lt.s32.totalorder %s512, 15
      %s516 = scalar_select %p515, %s512, 15
      %s517 = smul.addr %s516, 2
      %s518 = smul.addr %s514, 32
      %s519 = sadd.s32 %s517, %s518
      %s520 = smul.addr %s519, 4
      %s521 = scalar_lea.vmem %s10, %s520
      %s522 = smul.u32 8, %s26
      %p523 = scmp.lt.s32.totalorder %s25, 1
      %s524 = scalar_select %p523, %s25, 1
      %p525 = scmp.lt.s32.totalorder %s522, 15
      %s526 = scalar_select %p525, %s522, 15
      %s527 = smul.addr %s526, 2
      %s528 = smul.addr %s524, 32
      %s529 = sadd.s32 %s527, %s528
      %s530 = smul.addr %s529, 4
      %s531 = scalar_lea.vmem %s0, %s530
      %s532 = smul.u32 8, %s26
      %s533 = smul.u32 %s26, 8
      %s534 = ssub.s32 %s533, 1
      %p535 = scmp.gt.s32.totalorder %s534, 0
      %s536 = scalar_select %p535, %s534, 0
      %p537 = scmp.lt.s32.totalorder %s25, 1
      %s538 = scalar_select %p537, %s25, 1
      %p539 = scmp.lt.s32.totalorder %s536, 15
      %s540 = scalar_select %p539, %s536, 15
      %s541 = smul.addr %s540, 2
      %s542 = smul.addr %s538, 32
      %s543 = sadd.s32 %s541, %s542
      %s544 = smul.addr %s543, 4
      %s545 = scalar_lea.vmem %s1, %s544
      %s546 = smul.u32 %s26, 8
      %s547 = ssub.s32 %s546, 1
      %p548 = scmp.gt.s32.totalorder %s547, 0
      %s549 = scalar_select %p548, %s547, 0
      %s550 = smul.u32 %s26, 8
      %s551 = sadd.s32 %s550, 8
      %p552 = scmp.lt.s32.totalorder %s551, 15
      %s553 = scalar_select %p552, %s551, 15
      %p554 = scmp.lt.s32.totalorder %s25, 1
      %s555 = scalar_select %p554, %s25, 1
      %p556 = scmp.lt.s32.totalorder %s553, 15
      %s557 = scalar_select %p556, %s553, 15
      %s558 = smul.addr %s557, 2
      %s559 = smul.addr %s555, 32
      %s560 = sadd.s32 %s558, %s559
      %s561 = smul.addr %s560, 4
      %s562 = scalar_lea.vmem %s2, %s561
      %s563 = smul.u32 %s26, 8
      %s564 = sadd.s32 %s563, 8
      %p565 = scmp.lt.s32.totalorder %s564, 15
      %s566 = scalar_select %p565, %s564, 15
      %p567 = scmp.lt.s32.totalorder %s25, 1
      %s568 = scalar_select %p567, %s25, 1
      %s569 = scalar_lea.vmem %s5, %s568
      %p570 = scmp.lt.s32.totalorder %s25, 1
      %s571 = scalar_select %p570, %s25, 1
      %s572 = scalar_lea.vmem %s6, %s571
      %s573 = smul.u32 8, %s26
      %p574 = scmp.lt.s32.totalorder %s25, 1
      %s575 = scalar_select %p574, %s25, 1
      %p576 = scmp.lt.s32.totalorder %s573, 15
      %s577 = scalar_select %p576, %s573, 15
      %s578 = smul.addr %s577, 2
      %s579 = smul.addr %s575, 32
      %s580 = sadd.s32 %s578, %s579
      %s581 = smul.addr %s580, 4
      %s582 = scalar_lea.vmem %s7, %s581
      %s583 = smul.u32 8, %s26
      %s584 = smul.u32 8, %s26
      %p585 = scmp.lt.s32.totalorder %s25, 1
      %s586 = scalar_select %p585, %s25, 1
      %p587 = scmp.lt.s32.totalorder %s584, 15
      %s588 = scalar_select %p587, %s584, 15
      %s589 = smul.addr %s588, 2
      %s590 = smul.addr %s586, 32
      %s591 = sadd.s32 %s589, %s590
      %s592 = smul.addr %s591, 4
      %s593 = scalar_lea.vmem %s10, %s592
      %s594 = smul.u32 8, %s26
      %v596 = vld [vmem:[%s545] sm:$0xf]
      %v597 = vld [vmem:[%s545 + $0x4] sm:$0xf]
      %v598 = vld [vmem:[%s562] sm:$0xf]
      %v599 = vld [vmem:[%s562 + $0x4] sm:$0xf]
      %p600 = scmp.gt.s32.totalorder %s26, 0
      %s601 = scalar_select %p600, 1, 0
      %v602 = vstv %s601
      %vm603 = vcmp.eq.s32.totalorder %v602, 1
      %v604 = vsel %vm603, %v596, 0
      %v605 = vsel %vm603, %v597, 0
      %p606 = scmp.lt.s32.totalorder %s26, 1
      %s607 = scalar_select %p606, 1, 0
      %v608 = vstv %s607
      %vm609 = vcmp.eq.s32.totalorder %v608, 1
      %v610 = vsel %vm609, %v598, 0
      %v611 = vsel %vm609, %v599, 0
      %v612 = vld [vmem:[%s531] sm:$0xf]
      %v613 = vld [vmem:[%s531 + $0x4] sm:$0xf]
      %v614 = vld [vmem:[%s531 + $0x8] sm:$0xf]
      %v615 = vld [vmem:[%s531 + $0xc] sm:$0xf]
      %v616 = vld [vmem:[%s531 + $0x10] sm:$0xf]
      %v617 = vld [vmem:[%s531 + $0x14] sm:$0xf]
      %v618 = vld [vmem:[%s531 + $0x18] sm:$0xf]
      %v619 = vld [vmem:[%s531 + $0x1c] sm:$0xf]
      %v620 = vld [vmem:[%s531 + $0x20] sm:$0xf]
      %v621 = vld [vmem:[%s531 + $0x24] sm:$0xf]
      %v622 = vld [vmem:[%s531 + $0x28] sm:$0xf]
      %v623 = vld [vmem:[%s531 + $0x2c] sm:$0xf]
      %v624 = vld [vmem:[%s531 + $0x30] sm:$0xf]
      %v625 = vld [vmem:[%s531 + $0x34] sm:$0xf]
      %v626 = vld [vmem:[%s531 + $0x38] sm:$0xf]
      %v627 = vld [vmem:[%s531 + $0x3c] sm:$0xf]
      %v648 = vunpack.c.l.b16 %v604
      %v649 = vunpack.c.l.b16 %v605
      %v650 = vunpack.c.l.b16 %v612
      %v651 = vunpack.c.l.b16 %v613
      %v652 = vunpack.c.l.b16 %v614
      %v653 = vunpack.c.l.b16 %v615
      %v654 = vunpack.c.l.b16 %v616
      %v655 = vunpack.c.l.b16 %v617
      %v656 = vunpack.c.l.b16 %v618
      %v657 = vunpack.c.l.b16 %v619
      %v658 = vunpack.c.l.b16 %v620
      %v659 = vunpack.c.l.b16 %v621
      %v660 = vunpack.c.l.b16 %v622
      %v661 = vunpack.c.l.b16 %v623
      %v662 = vunpack.c.l.b16 %v624
      %v663 = vunpack.c.l.b16 %v625
      %v664 = vunpack.c.l.b16 %v626
      %v665 = vunpack.c.l.b16 %v627
      %v666 = vunpack.c.l.b16 %v610
      %v667 = vunpack.c.l.b16 %v611
      %v668 = vpack.c.b16 %v649, %v648
      %v669 = vpack.c.b16 %v651, %v650
      %v670 = vpack.c.b16 %v653, %v652
      %v671 = vpack.c.b16 %v655, %v654
      %v672 = vpack.c.b16 %v657, %v656
      %v673 = vpack.c.b16 %v659, %v658
      %v674 = vpack.c.b16 %v661, %v660
      %v675 = vpack.c.b16 %v663, %v662
      %v676 = vpack.c.b16 %v665, %v664
      %v677 = vpack.c.b16 %v667, %v666
      %v679 = vshrl.u32 %v668, 16
      %v681 = vrot.slane %v679, 7
      %v682 = vshll.u32 %v668, 16
      %v684 = vor.u32 %v681, %v682
      %v686 = vshrl.u32 %v669, 16
      %v688 = vrot.slane %v686, 7
      %v689 = vshll.u32 %v669, 16
      %v691 = vor.u32 %v688, %v689
      %v693 = vshrl.u32 %v670, 16
      %v695 = vrot.slane %v693, 7
      %v696 = vshll.u32 %v670, 16
      %v698 = vor.u32 %v695, %v696
      %v700 = vshrl.u32 %v671, 16
      %v702 = vrot.slane %v700, 7
      %v703 = vshll.u32 %v671, 16
      %v705 = vor.u32 %v702, %v703
      %v707 = vshrl.u32 %v672, 16
      %v709 = vrot.slane %v707, 7
      %v710 = vshll.u32 %v672, 16
      %v712 = vor.u32 %v709, %v710
      %v714 = vshrl.u32 %v673, 16
      %v716 = vrot.slane %v714, 7
      %v717 = vshll.u32 %v673, 16
      %v719 = vor.u32 %v716, %v717
      %v721 = vshrl.u32 %v674, 16
      %v723 = vrot.slane %v721, 7
      %v724 = vshll.u32 %v674, 16
      %v726 = vor.u32 %v723, %v724
      %v728 = vshrl.u32 %v675, 16
      %v730 = vrot.slane %v728, 7
      %v731 = vshll.u32 %v675, 16
      %v733 = vor.u32 %v730, %v731
      %v735 = vshrl.u32 %v676, 16
      %v737 = vrot.slane %v735, 7
      %v738 = vshll.u32 %v676, 16
      %v740 = vor.u32 %v737, %v738
      %v742 = vshrl.u32 %v677, 16
      %v744 = vrot.slane %v742, 7
      %v745 = vshll.u32 %v677, 16
      %v747 = vor.u32 %v744, %v745
      %vm768 = vcmask 1040384
      %vm769 = vsmask.f32 256
      %vm770 = vmand %vm768, %vm769
      %v771 = vsel %vm770, 0, %v684
      %v772 = vsel %vm770, 0, %v691
      %v773 = vsel %vm770, 0, %v698
      %v774 = vsel %vm770, 0, %v705
      %v775 = vsel %vm770, 0, %v712
      %v776 = vsel %vm770, 0, %v719
      %v777 = vsel %vm770, 0, %v726
      %v778 = vsel %vm770, 0, %v733
      %v779 = vsel %vm770, 0, %v740
      %v780 = vsel %vm770, 0, %v747
      %v781 = vsel %vm770, %v681, 0
      %v782 = vsel %vm770, %v688, 0
      %v783 = vsel %vm770, %v695, 0
      %v784 = vsel %vm770, %v702, 0
      %v785 = vsel %vm770, %v709, 0
      %v786 = vsel %vm770, %v716, 0
      %v787 = vsel %vm770, %v723, 0
      %v788 = vsel %vm770, %v730, 0
      %v789 = vsel %vm770, %v737, 0
      %v790 = vsel %vm770, %v744, 0
      %v791 = vld [vmem:[%s3] sm:$0xf]
      %vm792 = vsmask.f32 7424
      %v794 = vshrl.u32 %v771, 16
      %v796 = vshll.u32 %v771, 16
      %v798 = vrot.slane %v796, 1
      %v799 = vor.u32 %v794, %v798
      %v801 = vshll.u32 %v781, 16
      %v803 = vrot.slane %v801, 1
      %v804 = vsel %vm792, %v799, %v803
      %v806 = vshrl.u32 %v772, 16
      %v808 = vshll.u32 %v772, 16
      %v810 = vrot.slane %v808, 1
      %v811 = vor.u32 %v806, %v810
      %v813 = vshll.u32 %v782, 16
      %v815 = vrot.slane %v813, 1
      %v816 = vsel %vm792, %v811, %v815
      %v818 = vshrl.u32 %v773, 16
      %v820 = vshll.u32 %v773, 16
      %v822 = vrot.slane %v820, 1
      %v823 = vor.u32 %v818, %v822
      %v825 = vshll.u32 %v783, 16
      %v827 = vrot.slane %v825, 1
      %v828 = vsel %vm792, %v823, %v827
      %v830 = vshrl.u32 %v774, 16
      %v832 = vshll.u32 %v774, 16
      %v834 = vrot.slane %v832, 1
      %v835 = vor.u32 %v830, %v834
      %v837 = vshll.u32 %v784, 16
      %v839 = vrot.slane %v837, 1
      %v840 = vsel %vm792, %v835, %v839
      %v842 = vshrl.u32 %v775, 16
      %v844 = vshll.u32 %v775, 16
      %v846 = vrot.slane %v844, 1
      %v847 = vor.u32 %v842, %v846
      %v849 = vshll.u32 %v785, 16
      %v851 = vrot.slane %v849, 1
      %v852 = vsel %vm792, %v847, %v851
      %v854 = vshrl.u32 %v776, 16
      %v856 = vshll.u32 %v776, 16
      %v858 = vrot.slane %v856, 1
      %v859 = vor.u32 %v854, %v858
      %v861 = vshll.u32 %v786, 16
      %v863 = vrot.slane %v861, 1
      %v864 = vsel %vm792, %v859, %v863
      %v866 = vshrl.u32 %v777, 16
      %v868 = vshll.u32 %v777, 16
      %v870 = vrot.slane %v868, 1
      %v871 = vor.u32 %v866, %v870
      %v873 = vshll.u32 %v787, 16
      %v875 = vrot.slane %v873, 1
      %v876 = vsel %vm792, %v871, %v875
      %v878 = vshrl.u32 %v778, 16
      %v880 = vshll.u32 %v778, 16
      %v882 = vrot.slane %v880, 1
      %v883 = vor.u32 %v878, %v882
      %v885 = vshll.u32 %v788, 16
      %v887 = vrot.slane %v885, 1
      %v888 = vsel %vm792, %v883, %v887
      %s889 = scalar_lea.vmem %s3, 4
      %v890 = vld [vmem:[%s889] sm:$0xf]
      %vm891 = vcmask 64512
      %v893 = vsel %vm891, %v804, 0
      %v896 = vsel %vm891, %v816, 0
      %v899 = vsel %vm891, %v828, 0
      %v902 = vsel %vm891, %v840, 0
      %v905 = vsel %vm891, %v852, 0
      %v908 = vsel %vm891, %v864, 0
      %v911 = vsel %vm891, %v876, 0
      %v914 = vsel %vm891, %v888, 0
      %vm916 = vcmask 1043456
      %v918 = vsel %vm916, %v890, 0
      %920 = vmatpush.bf16.msra.mxu0 0
      %921 = vmatpush.bf16.msra.mxu0 0
      %922 = vmatpush.bf16.msra.mxu0 0
      %923 = vmatpush.bf16.msra.mxu0 0
      %924 = vmatpush.bf16.msra.mxu0 0
      %925 = vmatpush.bf16.msra.mxu0 0
      %926 = vmatpush.bf16.msra.mxu0 0
      %927 = vmatpush.bf16.msra.mxu0 %v918
      %928 = vmatmul.bf16.gmra.mxu0 %v893
      %v929 = vpop.f32.mrf.mxu0
      %v930 = vadd.f32 0.0, %v929
      %v931 = vpop.f32.mrf.mxu0
      %v932 = vadd.f32 0.0, %v931
      %933 = vmatmul.bf16.gmra.mxu0 %v896
      %v934 = vpop.f32.mrf.mxu0
      %v935 = vadd.f32 0.0, %v934
      %v936 = vpop.f32.mrf.mxu0
      %v937 = vadd.f32 0.0, %v936
      %938 = vmatmul.bf16.gmra.mxu0 %v899
      %v939 = vpop.f32.mrf.mxu0
      %v940 = vadd.f32 0.0, %v939
      %v941 = vpop.f32.mrf.mxu0
      %v942 = vadd.f32 0.0, %v941
      %943 = vmatmul.bf16.gmra.mxu0 %v902
      %v944 = vpop.f32.mrf.mxu0
      %v945 = vadd.f32 0.0, %v944
      %v946 = vpop.f32.mrf.mxu0
      %v947 = vadd.f32 0.0, %v946
      %948 = vmatmul.bf16.gmra.mxu0 %v905
      %v949 = vpop.f32.mrf.mxu0
      %v950 = vadd.f32 0.0, %v949
      %v951 = vpop.f32.mrf.mxu0
      %v952 = vadd.f32 0.0, %v951
      %953 = vmatmul.bf16.gmra.mxu0 %v908
      %v954 = vpop.f32.mrf.mxu0
      %v955 = vadd.f32 0.0, %v954
      %v956 = vpop.f32.mrf.mxu0
      %v957 = vadd.f32 0.0, %v956
      %958 = vmatmul.bf16.gmra.mxu0 %v911
      %v959 = vpop.f32.mrf.mxu0
      %v960 = vadd.f32 0.0, %v959
      %v961 = vpop.f32.mrf.mxu0
      %v962 = vadd.f32 0.0, %v961
      %963 = vmatmul.bf16.gmra.mxu0 %v914
      %v964 = vpop.f32.mrf.mxu0
      %v965 = vadd.f32 0.0, %v964
      %v966 = vpop.f32.mrf.mxu0
      %v967 = vadd.f32 0.0, %v966
      %968 = vdwg.mxu0
      %v969 = vsel %vm891, %v771, 0
      %v971 = vsel %vm891, %v772, 0
      %v973 = vsel %vm891, %v773, 0
      %v975 = vsel %vm891, %v774, 0
      %v977 = vsel %vm891, %v775, 0
      %v979 = vsel %vm891, %v776, 0
      %v981 = vsel %vm891, %v777, 0
      %v983 = vsel %vm891, %v778, 0
      %v986 = vsel %vm916, %v791, 0
      %988 = vmatpush.bf16.msra.mxu0 0
      %989 = vmatpush.bf16.msra.mxu0 0
      %990 = vmatpush.bf16.msra.mxu0 0
      %991 = vmatpush.bf16.msra.mxu0 0
      %992 = vmatpush.bf16.msra.mxu0 0
      %993 = vmatpush.bf16.msra.mxu0 0
      %994 = vmatpush.bf16.msra.mxu0 0
      %995 = vmatpush.bf16.msra.mxu0 %v986
      %996 = vmatmul.bf16.gmra.mxu0 %v969
      %v997 = vpop.f32.mrf.mxu0
      %v998 = vadd.f32 %v930, %v997
      %v999 = vpop.f32.mrf.mxu0
      %v1000 = vadd.f32 %v932, %v999
      %1001 = vmatmul.bf16.gmra.mxu0 %v971
      %v1002 = vpop.f32.mrf.mxu0
      %v1003 = vadd.f32 %v935, %v1002
      %v1004 = vpop.f32.mrf.mxu0
      %v1005 = vadd.f32 %v937, %v1004
      %1006 = vmatmul.bf16.gmra.mxu0 %v973
      %v1007 = vpop.f32.mrf.mxu0
      %v1008 = vadd.f32 %v940, %v1007
      %v1009 = vpop.f32.mrf.mxu0
      %v1010 = vadd.f32 %v942, %v1009
      %1011 = vmatmul.bf16.gmra.mxu0 %v975
      %v1012 = vpop.f32.mrf.mxu0
      %v1013 = vadd.f32 %v945, %v1012
      %v1014 = vpop.f32.mrf.mxu0
      %v1015 = vadd.f32 %v947, %v1014
      %1016 = vmatmul.bf16.gmra.mxu0 %v977
      %v1017 = vpop.f32.mrf.mxu0
      %v1018 = vadd.f32 %v950, %v1017
      %v1019 = vpop.f32.mrf.mxu0
      %v1020 = vadd.f32 %v952, %v1019
      %1021 = vmatmul.bf16.gmra.mxu0 %v979
      %v1022 = vpop.f32.mrf.mxu0
      %v1023 = vadd.f32 %v955, %v1022
      %v1024 = vpop.f32.mrf.mxu0
      %v1025 = vadd.f32 %v957, %v1024
      %1026 = vmatmul.bf16.gmra.mxu0 %v981
      %v1027 = vpop.f32.mrf.mxu0
      %v1028 = vadd.f32 %v960, %v1027
      %v1029 = vpop.f32.mrf.mxu0
      %v1030 = vadd.f32 %v962, %v1029
      %1031 = vmatmul.bf16.gmra.mxu0 %v983
      %v1032 = vpop.f32.mrf.mxu0
      %v1033 = vadd.f32 %v965, %v1032
      %v1034 = vpop.f32.mrf.mxu0
      %v1035 = vadd.f32 %v967, %v1034
      %1036 = vdwg.mxu0
      %vm1053 = vcmask 1046528
      %v1054 = vrot.slane %v771, 1
      %v1055 = vrot.slane %v781, 1
      %v1056 = vsel %vm1053, %v1054, %v1055
      %v1057 = vrot.slane %v772, 1
      %v1058 = vrot.slane %v782, 1
      %v1059 = vsel %vm1053, %v1057, %v1058
      %v1060 = vrot.slane %v773, 1
      %v1061 = vrot.slane %v783, 1
      %v1062 = vsel %vm1053, %v1060, %v1061
      %v1063 = vrot.slane %v774, 1
      %v1064 = vrot.slane %v784, 1
      %v1065 = vsel %vm1053, %v1063, %v1064
      %v1066 = vrot.slane %v775, 1
      %v1067 = vrot.slane %v785, 1
      %v1068 = vsel %vm1053, %v1066, %v1067
      %v1069 = vrot.slane %v776, 1
      %v1070 = vrot.slane %v786, 1
      %v1071 = vsel %vm1053, %v1069, %v1070
      %v1072 = vrot.slane %v777, 1
      %v1073 = vrot.slane %v787, 1
      %v1074 = vsel %vm1053, %v1072, %v1073
      %v1075 = vrot.slane %v778, 1
      %v1076 = vrot.slane %v788, 1
      %v1077 = vsel %vm1053, %v1075, %v1076
      %s1078 = scalar_lea.vmem %s3, 8
      %v1079 = vld [vmem:[%s1078] sm:$0xf]
      %v1081 = vsel %vm891, %v1056, 0
      %v1084 = vsel %vm891, %v1059, 0
      %v1087 = vsel %vm891, %v1062, 0
      %v1090 = vsel %vm891, %v1065, 0
      %v1093 = vsel %vm891, %v1068, 0
      %v1096 = vsel %vm891, %v1071, 0
      %v1099 = vsel %vm891, %v1074, 0
      %v1102 = vsel %vm891, %v1077, 0
      %v1105 = vsel %vm916, %v1079, 0
      %1107 = vmatpush.bf16.msra.mxu0 0
      %1108 = vmatpush.bf16.msra.mxu0 0
      %1109 = vmatpush.bf16.msra.mxu0 0
      %1110 = vmatpush.bf16.msra.mxu0 0
      %1111 = vmatpush.bf16.msra.mxu0 0
      %1112 = vmatpush.bf16.msra.mxu0 0
      %1113 = vmatpush.bf16.msra.mxu0 0
      %1114 = vmatpush.bf16.msra.mxu0 %v1105
      %1115 = vmatmul.bf16.gmra.mxu0 %v1081
      %v1116 = vpop.f32.mrf.mxu0
      %v1117 = vadd.f32 0.0, %v1116
      %v1118 = vpop.f32.mrf.mxu0
      %v1119 = vadd.f32 0.0, %v1118
      %1120 = vmatmul.bf16.gmra.mxu0 %v1084
      %v1121 = vpop.f32.mrf.mxu0
      %v1122 = vadd.f32 0.0, %v1121
      %v1123 = vpop.f32.mrf.mxu0
      %v1124 = vadd.f32 0.0, %v1123
      %1125 = vmatmul.bf16.gmra.mxu0 %v1087
      %v1126 = vpop.f32.mrf.mxu0
      %v1127 = vadd.f32 0.0, %v1126
      %v1128 = vpop.f32.mrf.mxu0
      %v1129 = vadd.f32 0.0, %v1128
      %1130 = vmatmul.bf16.gmra.mxu0 %v1090
      %v1131 = vpop.f32.mrf.mxu0
      %v1132 = vadd.f32 0.0, %v1131
      %v1133 = vpop.f32.mrf.mxu0
      %v1134 = vadd.f32 0.0, %v1133
      %1135 = vmatmul.bf16.gmra.mxu0 %v1093
      %v1136 = vpop.f32.mrf.mxu0
      %v1137 = vadd.f32 0.0, %v1136
      %v1138 = vpop.f32.mrf.mxu0
      %v1139 = vadd.f32 0.0, %v1138
      %1140 = vmatmul.bf16.gmra.mxu0 %v1096
      %v1141 = vpop.f32.mrf.mxu0
      %v1142 = vadd.f32 0.0, %v1141
      %v1143 = vpop.f32.mrf.mxu0
      %v1144 = vadd.f32 0.0, %v1143
      %1145 = vmatmul.bf16.gmra.mxu0 %v1099
      %v1146 = vpop.f32.mrf.mxu0
      %v1147 = vadd.f32 0.0, %v1146
      %v1148 = vpop.f32.mrf.mxu0
      %v1149 = vadd.f32 0.0, %v1148
      %1150 = vmatmul.bf16.gmra.mxu0 %v1102
      %v1151 = vpop.f32.mrf.mxu0
      %v1152 = vadd.f32 0.0, %v1151
      %v1153 = vpop.f32.mrf.mxu0
      %v1154 = vadd.f32 0.0, %v1153
      %1155 = vdwg.mxu0
      %v1156 = vadd.f32 %v998, %v1117
      %v1157 = vadd.f32 %v1000, %v1119
      %v1158 = vadd.f32 %v1003, %v1122
      %v1159 = vadd.f32 %v1005, %v1124
      %v1160 = vadd.f32 %v1008, %v1127
      %v1161 = vadd.f32 %v1010, %v1129
      %v1162 = vadd.f32 %v1013, %v1132
      %v1163 = vadd.f32 %v1015, %v1134
      %v1164 = vadd.f32 %v1018, %v1137
      %v1165 = vadd.f32 %v1020, %v1139
      %v1166 = vadd.f32 %v1023, %v1142
      %v1167 = vadd.f32 %v1025, %v1144
      %v1168 = vadd.f32 %v1028, %v1147
      %v1169 = vadd.f32 %v1030, %v1149
      %v1170 = vadd.f32 %v1033, %v1152
      %v1171 = vadd.f32 %v1035, %v1154
      %s1172 = scalar_lea.vmem %s3, 12
      %v1173 = vld [vmem:[%s1172] sm:$0xf]
      %v1175 = vsel %vm891, %v779, 0
      %v1178 = vsel %vm916, %v1173, 0
      %1180 = vmatpush.bf16.msra.mxu0 0
      %1181 = vmatpush.bf16.msra.mxu0 0
      %1182 = vmatpush.bf16.msra.mxu0 0
      %1183 = vmatpush.bf16.msra.mxu0 0
      %1184 = vmatpush.bf16.msra.mxu0 0
      %1185 = vmatpush.bf16.msra.mxu0 0
      %1186 = vmatpush.bf16.msra.mxu0 0
      %1187 = vmatpush.bf16.msra.mxu0 %v1178
      %1188 = vmatmul.bf16.gmra.mxu0 %v971
      %v1189 = vpop.f32.mrf.mxu0
      %v1190 = vadd.f32 0.0, %v1189
      %v1191 = vpop.f32.mrf.mxu0
      %v1192 = vadd.f32 0.0, %v1191
      %1193 = vmatmul.bf16.gmra.mxu0 %v973
      %v1194 = vpop.f32.mrf.mxu0
      %v1195 = vadd.f32 0.0, %v1194
      %v1196 = vpop.f32.mrf.mxu0
      %v1197 = vadd.f32 0.0, %v1196
      %1198 = vmatmul.bf16.gmra.mxu0 %v975
      %v1199 = vpop.f32.mrf.mxu0
      %v1200 = vadd.f32 0.0, %v1199
      %v1201 = vpop.f32.mrf.mxu0
      %v1202 = vadd.f32 0.0, %v1201
      %1203 = vmatmul.bf16.gmra.mxu0 %v977
      %v1204 = vpop.f32.mrf.mxu0
      %v1205 = vadd.f32 0.0, %v1204
      %v1206 = vpop.f32.mrf.mxu0
      %v1207 = vadd.f32 0.0, %v1206
      %1208 = vmatmul.bf16.gmra.mxu0 %v979
      %v1209 = vpop.f32.mrf.mxu0
      %v1210 = vadd.f32 0.0, %v1209
      %v1211 = vpop.f32.mrf.mxu0
      %v1212 = vadd.f32 0.0, %v1211
      %1213 = vmatmul.bf16.gmra.mxu0 %v981
      %v1214 = vpop.f32.mrf.mxu0
      %v1215 = vadd.f32 0.0, %v1214
      %v1216 = vpop.f32.mrf.mxu0
      %v1217 = vadd.f32 0.0, %v1216
      %1218 = vmatmul.bf16.gmra.mxu0 %v983
      %v1219 = vpop.f32.mrf.mxu0
      %v1220 = vadd.f32 0.0, %v1219
      %v1221 = vpop.f32.mrf.mxu0
      %v1222 = vadd.f32 0.0, %v1221
      %1223 = vmatmul.bf16.gmra.mxu0 %v1175
      %v1224 = vpop.f32.mrf.mxu0
      %v1225 = vadd.f32 0.0, %v1224
      %v1226 = vpop.f32.mrf.mxu0
      %v1227 = vadd.f32 0.0, %v1226
      %1228 = vdwg.mxu0
      %v1229 = vadd.f32 %v1156, %v1190
      %v1230 = vadd.f32 %v1157, %v1192
      %v1231 = vadd.f32 %v1158, %v1195
      %v1232 = vadd.f32 %v1159, %v1197
      %v1233 = vadd.f32 %v1160, %v1200
      %v1234 = vadd.f32 %v1161, %v1202
      %v1235 = vadd.f32 %v1162, %v1205
      %v1236 = vadd.f32 %v1163, %v1207
      %v1237 = vadd.f32 %v1164, %v1210
      %v1238 = vadd.f32 %v1165, %v1212
      %v1239 = vadd.f32 %v1166, %v1215
      %v1240 = vadd.f32 %v1167, %v1217
      %v1241 = vadd.f32 %v1168, %v1220
      %v1242 = vadd.f32 %v1169, %v1222
      %v1243 = vadd.f32 %v1170, %v1225
      %v1244 = vadd.f32 %v1171, %v1227
      %v1245 = vshrl.u32 %v779, 16
      %v1247 = vshll.u32 %v779, 16
      %v1249 = vrot.slane %v1247, 1
      %v1250 = vor.u32 %v1245, %v1249
      %v1252 = vshll.u32 %v789, 16
      %v1254 = vrot.slane %v1252, 1
      %v1255 = vsel %vm792, %v1250, %v1254
      %s1256 = scalar_lea.vmem %s3, 16
      %v1257 = vld [vmem:[%s1256] sm:$0xf]
      %v1259 = vsel %vm891, %v1255, 0
      %v1262 = vsel %vm916, %v1257, 0
      %1264 = vmatpush.bf16.msra.mxu0 0
      %1265 = vmatpush.bf16.msra.mxu0 0
      %1266 = vmatpush.bf16.msra.mxu0 0
      %1267 = vmatpush.bf16.msra.mxu0 0
      %1268 = vmatpush.bf16.msra.mxu0 0
      %1269 = vmatpush.bf16.msra.mxu0 0
      %1270 = vmatpush.bf16.msra.mxu0 0
      %1271 = vmatpush.bf16.msra.mxu0 %v1262
      %1272 = vmatmul.bf16.gmra.mxu0 %v896
      %v1273 = vpop.f32.mrf.mxu0
      %v1274 = vadd.f32 0.0, %v1273
      %v1275 = vpop.f32.mrf.mxu0
      %v1276 = vadd.f32 0.0, %v1275
      %1277 = vmatmul.bf16.gmra.mxu0 %v899
      %v1278 = vpop.f32.mrf.mxu0
      %v1279 = vadd.f32 0.0, %v1278
      %v1280 = vpop.f32.mrf.mxu0
      %v1281 = vadd.f32 0.0, %v1280
      %1282 = vmatmul.bf16.gmra.mxu0 %v902
      %v1283 = vpop.f32.mrf.mxu0
      %v1284 = vadd.f32 0.0, %v1283
      %v1285 = vpop.f32.mrf.mxu0
      %v1286 = vadd.f32 0.0, %v1285
      %1287 = vmatmul.bf16.gmra.mxu0 %v905
      %v1288 = vpop.f32.mrf.mxu0
      %v1289 = vadd.f32 0.0, %v1288
      %v1290 = vpop.f32.mrf.mxu0
      %v1291 = vadd.f32 0.0, %v1290
      %1292 = vmatmul.bf16.gmra.mxu0 %v908
      %v1293 = vpop.f32.mrf.mxu0
      %v1294 = vadd.f32 0.0, %v1293
      %v1295 = vpop.f32.mrf.mxu0
      %v1296 = vadd.f32 0.0, %v1295
      %1297 = vmatmul.bf16.gmra.mxu0 %v911
      %v1298 = vpop.f32.mrf.mxu0
      %v1299 = vadd.f32 0.0, %v1298
      %v1300 = vpop.f32.mrf.mxu0
      %v1301 = vadd.f32 0.0, %v1300
      %1302 = vmatmul.bf16.gmra.mxu0 %v914
      %v1303 = vpop.f32.mrf.mxu0
      %v1304 = vadd.f32 0.0, %v1303
      %v1305 = vpop.f32.mrf.mxu0
      %v1306 = vadd.f32 0.0, %v1305
      %1307 = vmatmul.bf16.gmra.mxu0 %v1259
      %v1308 = vpop.f32.mrf.mxu0
      %v1309 = vadd.f32 0.0, %v1308
      %v1310 = vpop.f32.mrf.mxu0
      %v1311 = vadd.f32 0.0, %v1310
      %1312 = vdwg.mxu0
      %v1313 = vadd.f32 %v1229, %v1274
      %v1314 = vadd.f32 %v1230, %v1276
      %v1315 = vadd.f32 %v1231, %v1279
      %v1316 = vadd.f32 %v1232, %v1281
      %v1317 = vadd.f32 %v1233, %v1284
      %v1318 = vadd.f32 %v1234, %v1286
      %v1319 = vadd.f32 %v1235, %v1289
      %v1320 = vadd.f32 %v1236, %v1291
      %v1321 = vadd.f32 %v1237, %v1294
      %v1322 = vadd.f32 %v1238, %v1296
      %v1323 = vadd.f32 %v1239, %v1299
      %v1324 = vadd.f32 %v1240, %v1301
      %v1325 = vadd.f32 %v1241, %v1304
      %v1326 = vadd.f32 %v1242, %v1306
      %v1327 = vadd.f32 %v1243, %v1309
      %v1328 = vadd.f32 %v1244, %v1311
      %v1331 = vrot.slane %v779, 1
      %v1332 = vrot.slane %v789, 1
      %v1333 = vsel %vm1053, %v1331, %v1332
      %s1334 = scalar_lea.vmem %s3, 20
      %v1335 = vld [vmem:[%s1334] sm:$0xf]
      %v1337 = vsel %vm891, %v1333, 0
      %v1340 = vsel %vm916, %v1335, 0
      %1342 = vmatpush.bf16.msra.mxu0 0
      %1343 = vmatpush.bf16.msra.mxu0 0
      %1344 = vmatpush.bf16.msra.mxu0 0
      %1345 = vmatpush.bf16.msra.mxu0 0
      %1346 = vmatpush.bf16.msra.mxu0 0
      %1347 = vmatpush.bf16.msra.mxu0 0
      %1348 = vmatpush.bf16.msra.mxu0 0
      %1349 = vmatpush.bf16.msra.mxu0 %v1340
      %1350 = vmatmul.bf16.gmra.mxu0 %v1084
      %v1351 = vpop.f32.mrf.mxu0
      %v1352 = vadd.f32 0.0, %v1351
      %v1353 = vpop.f32.mrf.mxu0
      %v1354 = vadd.f32 0.0, %v1353
      %1355 = vmatmul.bf16.gmra.mxu0 %v1087
      %v1356 = vpop.f32.mrf.mxu0
      %v1357 = vadd.f32 0.0, %v1356
      %v1358 = vpop.f32.mrf.mxu0
      %v1359 = vadd.f32 0.0, %v1358
      %1360 = vmatmul.bf16.gmra.mxu0 %v1090
      %v1361 = vpop.f32.mrf.mxu0
      %v1362 = vadd.f32 0.0, %v1361
      %v1363 = vpop.f32.mrf.mxu0
      %v1364 = vadd.f32 0.0, %v1363
      %1365 = vmatmul.bf16.gmra.mxu0 %v1093
      %v1366 = vpop.f32.mrf.mxu0
      %v1367 = vadd.f32 0.0, %v1366
      %v1368 = vpop.f32.mrf.mxu0
      %v1369 = vadd.f32 0.0, %v1368
      %1370 = vmatmul.bf16.gmra.mxu0 %v1096
      %v1371 = vpop.f32.mrf.mxu0
      %v1372 = vadd.f32 0.0, %v1371
      %v1373 = vpop.f32.mrf.mxu0
      %v1374 = vadd.f32 0.0, %v1373
      %1375 = vmatmul.bf16.gmra.mxu0 %v1099
      %v1376 = vpop.f32.mrf.mxu0
      %v1377 = vadd.f32 0.0, %v1376
      %v1378 = vpop.f32.mrf.mxu0
      %v1379 = vadd.f32 0.0, %v1378
      %1380 = vmatmul.bf16.gmra.mxu0 %v1102
      %v1381 = vpop.f32.mrf.mxu0
      %v1382 = vadd.f32 0.0, %v1381
      %v1383 = vpop.f32.mrf.mxu0
      %v1384 = vadd.f32 0.0, %v1383
      %1385 = vmatmul.bf16.gmra.mxu0 %v1337
      %v1386 = vpop.f32.mrf.mxu0
      %v1387 = vadd.f32 0.0, %v1386
      %v1388 = vpop.f32.mrf.mxu0
      %v1389 = vadd.f32 0.0, %v1388
      %1390 = vdwg.mxu0
      %v1391 = vadd.f32 %v1313, %v1352
      %v1392 = vadd.f32 %v1314, %v1354
      %v1393 = vadd.f32 %v1315, %v1357
      %v1394 = vadd.f32 %v1316, %v1359
      %v1395 = vadd.f32 %v1317, %v1362
      %v1396 = vadd.f32 %v1318, %v1364
      %v1397 = vadd.f32 %v1319, %v1367
      %v1398 = vadd.f32 %v1320, %v1369
      %v1399 = vadd.f32 %v1321, %v1372
      %v1400 = vadd.f32 %v1322, %v1374
      %v1401 = vadd.f32 %v1323, %v1377
      %v1402 = vadd.f32 %v1324, %v1379
      %v1403 = vadd.f32 %v1325, %v1382
      %v1404 = vadd.f32 %v1326, %v1384
      %v1405 = vadd.f32 %v1327, %v1387
      %v1406 = vadd.f32 %v1328, %v1389
      %s1407 = scalar_lea.vmem %s3, 24
      %v1408 = vld [vmem:[%s1407] sm:$0xf]
      %v1410 = vsel %vm891, %v780, 0
      %v1413 = vsel %vm916, %v1408, 0
      %1415 = vmatpush.bf16.msra.mxu0 0
      %1416 = vmatpush.bf16.msra.mxu0 0
      %1417 = vmatpush.bf16.msra.mxu0 0
      %1418 = vmatpush.bf16.msra.mxu0 0
      %1419 = vmatpush.bf16.msra.mxu0 0
      %1420 = vmatpush.bf16.msra.mxu0 0
      %1421 = vmatpush.bf16.msra.mxu0 0
      %1422 = vmatpush.bf16.msra.mxu0 %v1413
      %1423 = vmatmul.bf16.gmra.mxu0 %v973
      %v1424 = vpop.f32.mrf.mxu0
      %v1425 = vadd.f32 0.0, %v1424
      %v1426 = vpop.f32.mrf.mxu0
      %v1427 = vadd.f32 0.0, %v1426
      %1428 = vmatmul.bf16.gmra.mxu0 %v975
      %v1429 = vpop.f32.mrf.mxu0
      %v1430 = vadd.f32 0.0, %v1429
      %v1431 = vpop.f32.mrf.mxu0
      %v1432 = vadd.f32 0.0, %v1431
      %1433 = vmatmul.bf16.gmra.mxu0 %v977
      %v1434 = vpop.f32.mrf.mxu0
      %v1435 = vadd.f32 0.0, %v1434
      %v1436 = vpop.f32.mrf.mxu0
      %v1437 = vadd.f32 0.0, %v1436
      %1438 = vmatmul.bf16.gmra.mxu0 %v979
      %v1439 = vpop.f32.mrf.mxu0
      %v1440 = vadd.f32 0.0, %v1439
      %v1441 = vpop.f32.mrf.mxu0
      %v1442 = vadd.f32 0.0, %v1441
      %1443 = vmatmul.bf16.gmra.mxu0 %v981
      %v1444 = vpop.f32.mrf.mxu0
      %v1445 = vadd.f32 0.0, %v1444
      %v1446 = vpop.f32.mrf.mxu0
      %v1447 = vadd.f32 0.0, %v1446
      %1448 = vmatmul.bf16.gmra.mxu0 %v983
      %v1449 = vpop.f32.mrf.mxu0
      %v1450 = vadd.f32 0.0, %v1449
      %v1451 = vpop.f32.mrf.mxu0
      %v1452 = vadd.f32 0.0, %v1451
      %1453 = vmatmul.bf16.gmra.mxu0 %v1175
      %v1454 = vpop.f32.mrf.mxu0
      %v1455 = vadd.f32 0.0, %v1454
      %v1456 = vpop.f32.mrf.mxu0
      %v1457 = vadd.f32 0.0, %v1456
      %1458 = vmatmul.bf16.gmra.mxu0 %v1410
      %v1459 = vpop.f32.mrf.mxu0
      %v1460 = vadd.f32 0.0, %v1459
      %v1461 = vpop.f32.mrf.mxu0
      %v1462 = vadd.f32 0.0, %v1461
      %1463 = vdwg.mxu0
      %v1464 = vadd.f32 %v1391, %v1425
      %v1465 = vadd.f32 %v1392, %v1427
      %v1466 = vadd.f32 %v1393, %v1430
      %v1467 = vadd.f32 %v1394, %v1432
      %v1468 = vadd.f32 %v1395, %v1435
      %v1469 = vadd.f32 %v1396, %v1437
      %v1470 = vadd.f32 %v1397, %v1440
      %v1471 = vadd.f32 %v1398, %v1442
      %v1472 = vadd.f32 %v1399, %v1445
      %v1473 = vadd.f32 %v1400, %v1447
      %v1474 = vadd.f32 %v1401, %v1450
      %v1475 = vadd.f32 %v1402, %v1452
      %v1476 = vadd.f32 %v1403, %v1455
      %v1477 = vadd.f32 %v1404, %v1457
      %v1478 = vadd.f32 %v1405, %v1460
      %v1479 = vadd.f32 %v1406, %v1462
      %v1480 = vshrl.u32 %v780, 16
      %v1482 = vshll.u32 %v780, 16
      %v1484 = vrot.slane %v1482, 1
      %v1485 = vor.u32 %v1480, %v1484
      %v1487 = vshll.u32 %v790, 16
      %v1489 = vrot.slane %v1487, 1
      %v1490 = vsel %vm792, %v1485, %v1489
      %s1491 = scalar_lea.vmem %s3, 28
      %v1492 = vld [vmem:[%s1491] sm:$0xf]
      %v1494 = vsel %vm891, %v1490, 0
      %v1497 = vsel %vm916, %v1492, 0
      %1499 = vmatpush.bf16.msra.mxu0 0
      %1500 = vmatpush.bf16.msra.mxu0 0
      %1501 = vmatpush.bf16.msra.mxu0 0
      %1502 = vmatpush.bf16.msra.mxu0 0
      %1503 = vmatpush.bf16.msra.mxu0 0
      %1504 = vmatpush.bf16.msra.mxu0 0
      %1505 = vmatpush.bf16.msra.mxu0 0
      %1506 = vmatpush.bf16.msra.mxu0 %v1497
      %1507 = vmatmul.bf16.gmra.mxu0 %v899
      %v1508 = vpop.f32.mrf.mxu0
      %v1509 = vadd.f32 0.0, %v1508
      %v1510 = vpop.f32.mrf.mxu0
      %v1511 = vadd.f32 0.0, %v1510
      %1512 = vmatmul.bf16.gmra.mxu0 %v902
      %v1513 = vpop.f32.mrf.mxu0
      %v1514 = vadd.f32 0.0, %v1513
      %v1515 = vpop.f32.mrf.mxu0
      %v1516 = vadd.f32 0.0, %v1515
      %1517 = vmatmul.bf16.gmra.mxu0 %v905
      %v1518 = vpop.f32.mrf.mxu0
      %v1519 = vadd.f32 0.0, %v1518
      %v1520 = vpop.f32.mrf.mxu0
      %v1521 = vadd.f32 0.0, %v1520
      %1522 = vmatmul.bf16.gmra.mxu0 %v908
      %v1523 = vpop.f32.mrf.mxu0
      %v1524 = vadd.f32 0.0, %v1523
      %v1525 = vpop.f32.mrf.mxu0
      %v1526 = vadd.f32 0.0, %v1525
      %1527 = vmatmul.bf16.gmra.mxu0 %v911
      %v1528 = vpop.f32.mrf.mxu0
      %v1529 = vadd.f32 0.0, %v1528
      %v1530 = vpop.f32.mrf.mxu0
      %v1531 = vadd.f32 0.0, %v1530
      %1532 = vmatmul.bf16.gmra.mxu0 %v914
      %v1533 = vpop.f32.mrf.mxu0
      %v1534 = vadd.f32 0.0, %v1533
      %v1535 = vpop.f32.mrf.mxu0
      %v1536 = vadd.f32 0.0, %v1535
      %1537 = vmatmul.bf16.gmra.mxu0 %v1259
      %v1538 = vpop.f32.mrf.mxu0
      %v1539 = vadd.f32 0.0, %v1538
      %v1540 = vpop.f32.mrf.mxu0
      %v1541 = vadd.f32 0.0, %v1540
      %1542 = vmatmul.bf16.gmra.mxu0 %v1494
      %v1543 = vpop.f32.mrf.mxu0
      %v1544 = vadd.f32 0.0, %v1543
      %v1545 = vpop.f32.mrf.mxu0
      %v1546 = vadd.f32 0.0, %v1545
      %1547 = vdwg.mxu0
      %v1548 = vadd.f32 %v1464, %v1509
      %v1549 = vadd.f32 %v1465, %v1511
      %v1550 = vadd.f32 %v1466, %v1514
      %v1551 = vadd.f32 %v1467, %v1516
      %v1552 = vadd.f32 %v1468, %v1519
      %v1553 = vadd.f32 %v1469, %v1521
      %v1554 = vadd.f32 %v1470, %v1524
      %v1555 = vadd.f32 %v1471, %v1526
      %v1556 = vadd.f32 %v1472, %v1529
      %v1557 = vadd.f32 %v1473, %v1531
      %v1558 = vadd.f32 %v1474, %v1534
      %v1559 = vadd.f32 %v1475, %v1536
      %v1560 = vadd.f32 %v1476, %v1539
      %v1561 = vadd.f32 %v1477, %v1541
      %v1562 = vadd.f32 %v1478, %v1544
      %v1563 = vadd.f32 %v1479, %v1546
      %v1566 = vrot.slane %v780, 1
      %v1567 = vrot.slane %v790, 1
      %v1568 = vsel %vm1053, %v1566, %v1567
      %s1569 = scalar_lea.vmem %s3, 32
      %v1570 = vld [vmem:[%s1569] sm:$0xf]
      %v1572 = vsel %vm891, %v1568, 0
      %v1575 = vsel %vm916, %v1570, 0
      %1577 = vmatpush.bf16.msra.mxu0 0
      %1578 = vmatpush.bf16.msra.mxu0 0
      %1579 = vmatpush.bf16.msra.mxu0 0
      %1580 = vmatpush.bf16.msra.mxu0 0
      %1581 = vmatpush.bf16.msra.mxu0 0
      %1582 = vmatpush.bf16.msra.mxu0 0
      %1583 = vmatpush.bf16.msra.mxu0 0
      %1584 = vmatpush.bf16.msra.mxu0 %v1575
      %1585 = vmatmul.bf16.gmra.mxu0 %v1087
      %v1586 = vpop.f32.mrf.mxu0
      %v1587 = vadd.f32 0.0, %v1586
      %v1588 = vpop.f32.mrf.mxu0
      %v1589 = vadd.f32 0.0, %v1588
      %1590 = vmatmul.bf16.gmra.mxu0 %v1090
      %v1591 = vpop.f32.mrf.mxu0
      %v1592 = vadd.f32 0.0, %v1591
      %v1593 = vpop.f32.mrf.mxu0
      %v1594 = vadd.f32 0.0, %v1593
      %1595 = vmatmul.bf16.gmra.mxu0 %v1093
      %v1596 = vpop.f32.mrf.mxu0
      %v1597 = vadd.f32 0.0, %v1596
      %v1598 = vpop.f32.mrf.mxu0
      %v1599 = vadd.f32 0.0, %v1598
      %1600 = vmatmul.bf16.gmra.mxu0 %v1096
      %v1601 = vpop.f32.mrf.mxu0
      %v1602 = vadd.f32 0.0, %v1601
      %v1603 = vpop.f32.mrf.mxu0
      %v1604 = vadd.f32 0.0, %v1603
      %1605 = vmatmul.bf16.gmra.mxu0 %v1099
      %v1606 = vpop.f32.mrf.mxu0
      %v1607 = vadd.f32 0.0, %v1606
      %v1608 = vpop.f32.mrf.mxu0
      %v1609 = vadd.f32 0.0, %v1608
      %1610 = vmatmul.bf16.gmra.mxu0 %v1102
      %v1611 = vpop.f32.mrf.mxu0
      %v1612 = vadd.f32 0.0, %v1611
      %v1613 = vpop.f32.mrf.mxu0
      %v1614 = vadd.f32 0.0, %v1613
      %1615 = vmatmul.bf16.gmra.mxu0 %v1337
      %v1616 = vpop.f32.mrf.mxu0
      %v1617 = vadd.f32 0.0, %v1616
      %v1618 = vpop.f32.mrf.mxu0
      %v1619 = vadd.f32 0.0, %v1618
      %1620 = vmatmul.bf16.gmra.mxu0 %v1572
      %v1621 = vpop.f32.mrf.mxu0
      %v1622 = vadd.f32 0.0, %v1621
      %v1623 = vpop.f32.mrf.mxu0
      %v1624 = vadd.f32 0.0, %v1623
      %1625 = vdwg.mxu0
      %v1626 = vadd.f32 %v1548, %v1587
      %v1627 = vadd.f32 %v1549, %v1589
      %v1628 = vadd.f32 %v1550, %v1592
      %v1629 = vadd.f32 %v1551, %v1594
      %v1630 = vadd.f32 %v1552, %v1597
      %v1631 = vadd.f32 %v1553, %v1599
      %v1632 = vadd.f32 %v1554, %v1602
      %v1633 = vadd.f32 %v1555, %v1604
      %v1634 = vadd.f32 %v1556, %v1607
      %v1635 = vadd.f32 %v1557, %v1609
      %v1636 = vadd.f32 %v1558, %v1612
      %v1637 = vadd.f32 %v1559, %v1614
      %v1638 = vadd.f32 %v1560, %v1617
      %v1639 = vadd.f32 %v1561, %v1619
      %v1640 = vadd.f32 %v1562, %v1622
      %v1641 = vadd.f32 %v1563, %v1624
      %v1642 = vld [vmem:[%s4] sm:$0x1]
      %v1644 = vperm.slane %v1642, 0
      %v1646 = vadd.f32 %v1626, %v1644
      %v1647 = vadd.f32 %v1627, %v1644
      %v1648 = vadd.f32 %v1628, %v1644
      %v1649 = vadd.f32 %v1629, %v1644
      %v1650 = vadd.f32 %v1630, %v1644
      %v1651 = vadd.f32 %v1631, %v1644
      %v1652 = vadd.f32 %v1632, %v1644
      %v1653 = vadd.f32 %v1633, %v1644
      %v1654 = vadd.f32 %v1634, %v1644
      %v1655 = vadd.f32 %v1635, %v1644
      %v1656 = vadd.f32 %v1636, %v1644
      %v1657 = vadd.f32 %v1637, %v1644
      %v1658 = vadd.f32 %v1638, %v1644
      %v1659 = vadd.f32 %v1639, %v1644
      %v1660 = vadd.f32 %v1640, %v1644
      %v1661 = vadd.f32 %v1641, %v1644
      %v1662 = vmul.f32 %v1646, %v1646
      %v1663 = vmul.f32 %v1647, %v1647
      %v1664 = vmul.f32 %v1648, %v1648
      %v1665 = vmul.f32 %v1649, %v1649
      %v1666 = vmul.f32 %v1650, %v1650
      %v1667 = vmul.f32 %v1651, %v1651
      %v1668 = vmul.f32 %v1652, %v1652
      %v1669 = vmul.f32 %v1653, %v1653
      %v1670 = vmul.f32 %v1654, %v1654
      %v1671 = vmul.f32 %v1655, %v1655
      %v1672 = vmul.f32 %v1656, %v1656
      %v1673 = vmul.f32 %v1657, %v1657
      %v1674 = vmul.f32 %v1658, %v1658
      %v1675 = vmul.f32 %v1659, %v1659
      %v1676 = vmul.f32 %v1660, %v1660
      %v1677 = vmul.f32 %v1661, %v1661
      %v1678 = vsel %vm891, %v1662, 0.0
      %1679 = vadd.xlane.f32.xlu0 %v1678
      %v1680 = vpop.xlane.xlu0 %1679
      %v1681 = vsel %vm891, %v1663, 0.0
      %1682 = vadd.xlane.f32.xlu0 %v1681
      %v1683 = vpop.xlane.xlu0 %1682
      %v1684 = vsel %vm891, %v1664, 0.0
      %1685 = vadd.xlane.f32.xlu0 %v1684
      %v1686 = vpop.xlane.xlu0 %1685
      %v1687 = vsel %vm891, %v1665, 0.0
      %1688 = vadd.xlane.f32.xlu0 %v1687
      %v1689 = vpop.xlane.xlu0 %1688
      %v1690 = vsel %vm891, %v1666, 0.0
      %1691 = vadd.xlane.f32.xlu0 %v1690
      %v1692 = vpop.xlane.xlu0 %1691
      %v1693 = vsel %vm891, %v1667, 0.0
      %1694 = vadd.xlane.f32.xlu0 %v1693
      %v1695 = vpop.xlane.xlu0 %1694
      %v1696 = vsel %vm891, %v1668, 0.0
      %1697 = vadd.xlane.f32.xlu0 %v1696
      %v1698 = vpop.xlane.xlu0 %1697
      %v1699 = vsel %vm891, %v1669, 0.0
      %1700 = vadd.xlane.f32.xlu0 %v1699
      %v1701 = vpop.xlane.xlu0 %1700
      %v1702 = vsel %vm891, %v1670, 0.0
      %1703 = vadd.xlane.f32.xlu0 %v1702
      %v1704 = vpop.xlane.xlu0 %1703
      %v1705 = vsel %vm891, %v1671, 0.0
      %1706 = vadd.xlane.f32.xlu0 %v1705
      %v1707 = vpop.xlane.xlu0 %1706
      %v1708 = vsel %vm891, %v1672, 0.0
      %1709 = vadd.xlane.f32.xlu0 %v1708
      %v1710 = vpop.xlane.xlu0 %1709
      %v1711 = vsel %vm891, %v1673, 0.0
      %1712 = vadd.xlane.f32.xlu0 %v1711
      %v1713 = vpop.xlane.xlu0 %1712
      %v1714 = vsel %vm891, %v1674, 0.0
      %1715 = vadd.xlane.f32.xlu0 %v1714
      %v1716 = vpop.xlane.xlu0 %1715
      %v1717 = vsel %vm891, %v1675, 0.0
      %1718 = vadd.xlane.f32.xlu0 %v1717
      %v1719 = vpop.xlane.xlu0 %1718
      %v1720 = vsel %vm891, %v1676, 0.0
      %1721 = vadd.xlane.f32.xlu0 %v1720
      %v1722 = vpop.xlane.xlu0 %1721
      %v1723 = vsel %vm891, %v1677, 0.0
      %1724 = vadd.xlane.f32.xlu0 %v1723
      %v1725 = vpop.xlane.xlu0 %1724
      %v1726 = vmax.f32 %v1680, 1e-24
      %v1727 = vmax.f32 %v1683, 1e-24
      %v1728 = vmax.f32 %v1686, 1e-24
      %v1729 = vmax.f32 %v1689, 1e-24
      %v1730 = vmax.f32 %v1692, 1e-24
      %v1731 = vmax.f32 %v1695, 1e-24
      %v1732 = vmax.f32 %v1698, 1e-24
      %v1733 = vmax.f32 %v1701, 1e-24
      %v1734 = vmax.f32 %v1704, 1e-24
      %v1735 = vmax.f32 %v1707, 1e-24
      %v1736 = vmax.f32 %v1710, 1e-24
      %v1737 = vmax.f32 %v1713, 1e-24
      %v1738 = vmax.f32 %v1716, 1e-24
      %v1739 = vmax.f32 %v1719, 1e-24
      %v1740 = vmax.f32 %v1722, 1e-24
      %v1741 = vmax.f32 %v1725, 1e-24
      %v1742 = vrsqrt.pop %v1726
      %v1743 = vmul.f32 %v1742, %v1726
      %v1744 = vmul.f32 %v1743, %v1742
      %v1745 = vmul.f32 0.5, %v1744
      %v1746 = vsub.f32 1.5, %v1745
      %v1747 = vmul.f32 %v1742, %v1746
      %vm1748 = vweird.f32 %v1726
      %vm1749 = vweird.f32 %v1742
      %vm1750 = vmor %vm1748, %vm1749
      %v1751 = vsel %vm1750, %v1742, %v1747
      %v1752 = vrsqrt.pop %v1727
      %v1753 = vmul.f32 %v1752, %v1727
      %v1754 = vmul.f32 %v1753, %v1752
      %v1755 = vmul.f32 0.5, %v1754
      %v1756 = vsub.f32 1.5, %v1755
      %v1757 = vmul.f32 %v1752, %v1756
      %vm1758 = vweird.f32 %v1727
      %vm1759 = vweird.f32 %v1752
      %vm1760 = vmor %vm1758, %vm1759
      %v1761 = vsel %vm1760, %v1752, %v1757
      %v1762 = vrsqrt.pop %v1728
      %v1763 = vmul.f32 %v1762, %v1728
      %v1764 = vmul.f32 %v1763, %v1762
      %v1765 = vmul.f32 0.5, %v1764
      %v1766 = vsub.f32 1.5, %v1765
      %v1767 = vmul.f32 %v1762, %v1766
      %vm1768 = vweird.f32 %v1728
      %vm1769 = vweird.f32 %v1762
      %vm1770 = vmor %vm1768, %vm1769
      %v1771 = vsel %vm1770, %v1762, %v1767
      %v1772 = vrsqrt.pop %v1729
      %v1773 = vmul.f32 %v1772, %v1729
      %v1774 = vmul.f32 %v1773, %v1772
      %v1775 = vmul.f32 0.5, %v1774
      %v1776 = vsub.f32 1.5, %v1775
      %v1777 = vmul.f32 %v1772, %v1776
      %vm1778 = vweird.f32 %v1729
      %vm1779 = vweird.f32 %v1772
      %vm1780 = vmor %vm1778, %vm1779
      %v1781 = vsel %vm1780, %v1772, %v1777
      %v1782 = vrsqrt.pop %v1730
      %v1783 = vmul.f32 %v1782, %v1730
      %v1784 = vmul.f32 %v1783, %v1782
      %v1785 = vmul.f32 0.5, %v1784
      %v1786 = vsub.f32 1.5, %v1785
      %v1787 = vmul.f32 %v1782, %v1786
      %vm1788 = vweird.f32 %v1730
      %vm1789 = vweird.f32 %v1782
      %vm1790 = vmor %vm1788, %vm1789
      %v1791 = vsel %vm1790, %v1782, %v1787
      %v1792 = vrsqrt.pop %v1731
      %v1793 = vmul.f32 %v1792, %v1731
      %v1794 = vmul.f32 %v1793, %v1792
      %v1795 = vmul.f32 0.5, %v1794
      %v1796 = vsub.f32 1.5, %v1795
      %v1797 = vmul.f32 %v1792, %v1796
      %vm1798 = vweird.f32 %v1731
      %vm1799 = vweird.f32 %v1792
      %vm1800 = vmor %vm1798, %vm1799
      %v1801 = vsel %vm1800, %v1792, %v1797
      %v1802 = vrsqrt.pop %v1732
      %v1803 = vmul.f32 %v1802, %v1732
      %v1804 = vmul.f32 %v1803, %v1802
      %v1805 = vmul.f32 0.5, %v1804
      %v1806 = vsub.f32 1.5, %v1805
      %v1807 = vmul.f32 %v1802, %v1806
      %vm1808 = vweird.f32 %v1732
      %vm1809 = vweird.f32 %v1802
      %vm1810 = vmor %vm1808, %vm1809
      %v1811 = vsel %vm1810, %v1802, %v1807
      %v1812 = vrsqrt.pop %v1733
      %v1813 = vmul.f32 %v1812, %v1733
      %v1814 = vmul.f32 %v1813, %v1812
      %v1815 = vmul.f32 0.5, %v1814
      %v1816 = vsub.f32 1.5, %v1815
      %v1817 = vmul.f32 %v1812, %v1816
      %vm1818 = vweird.f32 %v1733
      %vm1819 = vweird.f32 %v1812
      %vm1820 = vmor %vm1818, %vm1819
      %v1821 = vsel %vm1820, %v1812, %v1817
      %v1822 = vrsqrt.pop %v1734
      %v1823 = vmul.f32 %v1822, %v1734
      %v1824 = vmul.f32 %v1823, %v1822
      %v1825 = vmul.f32 0.5, %v1824
      %v1826 = vsub.f32 1.5, %v1825
      %v1827 = vmul.f32 %v1822, %v1826
      %vm1828 = vweird.f32 %v1734
      %vm1829 = vweird.f32 %v1822
      %vm1830 = vmor %vm1828, %vm1829
      %v1831 = vsel %vm1830, %v1822, %v1827
      %v1832 = vrsqrt.pop %v1735
      %v1833 = vmul.f32 %v1832, %v1735
      %v1834 = vmul.f32 %v1833, %v1832
      %v1835 = vmul.f32 0.5, %v1834
      %v1836 = vsub.f32 1.5, %v1835
      %v1837 = vmul.f32 %v1832, %v1836
      %vm1838 = vweird.f32 %v1735
      %vm1839 = vweird.f32 %v1832
      %vm1840 = vmor %vm1838, %vm1839
      %v1841 = vsel %vm1840, %v1832, %v1837
      %v1842 = vrsqrt.pop %v1736
      %v1843 = vmul.f32 %v1842, %v1736
      %v1844 = vmul.f32 %v1843, %v1842
      %v1845 = vmul.f32 0.5, %v1844
      %v1846 = vsub.f32 1.5, %v1845
      %v1847 = vmul.f32 %v1842, %v1846
      %vm1848 = vweird.f32 %v1736
      %vm1849 = vweird.f32 %v1842
      %vm1850 = vmor %vm1848, %vm1849
      %v1851 = vsel %vm1850, %v1842, %v1847
      %v1852 = vrsqrt.pop %v1737
      %v1853 = vmul.f32 %v1852, %v1737
      %v1854 = vmul.f32 %v1853, %v1852
      %v1855 = vmul.f32 0.5, %v1854
      %v1856 = vsub.f32 1.5, %v1855
      %v1857 = vmul.f32 %v1852, %v1856
      %vm1858 = vweird.f32 %v1737
      %vm1859 = vweird.f32 %v1852
      %vm1860 = vmor %vm1858, %vm1859
      %v1861 = vsel %vm1860, %v1852, %v1857
      %v1862 = vrsqrt.pop %v1738
      %v1863 = vmul.f32 %v1862, %v1738
      %v1864 = vmul.f32 %v1863, %v1862
      %v1865 = vmul.f32 0.5, %v1864
      %v1866 = vsub.f32 1.5, %v1865
      %v1867 = vmul.f32 %v1862, %v1866
      %vm1868 = vweird.f32 %v1738
      %vm1869 = vweird.f32 %v1862
      %vm1870 = vmor %vm1868, %vm1869
      %v1871 = vsel %vm1870, %v1862, %v1867
      %v1872 = vrsqrt.pop %v1739
      %v1873 = vmul.f32 %v1872, %v1739
      %v1874 = vmul.f32 %v1873, %v1872
      %v1875 = vmul.f32 0.5, %v1874
      %v1876 = vsub.f32 1.5, %v1875
      %v1877 = vmul.f32 %v1872, %v1876
      %vm1878 = vweird.f32 %v1739
      %vm1879 = vweird.f32 %v1872
      %vm1880 = vmor %vm1878, %vm1879
      %v1881 = vsel %vm1880, %v1872, %v1877
      %v1882 = vrsqrt.pop %v1740
      %v1883 = vmul.f32 %v1882, %v1740
      %v1884 = vmul.f32 %v1883, %v1882
      %v1885 = vmul.f32 0.5, %v1884
      %v1886 = vsub.f32 1.5, %v1885
      %v1887 = vmul.f32 %v1882, %v1886
      %vm1888 = vweird.f32 %v1740
      %vm1889 = vweird.f32 %v1882
      %vm1890 = vmor %vm1888, %vm1889
      %v1891 = vsel %vm1890, %v1882, %v1887
      %v1892 = vrsqrt.pop %v1741
      %v1893 = vmul.f32 %v1892, %v1741
      %v1894 = vmul.f32 %v1893, %v1892
      %v1895 = vmul.f32 0.5, %v1894
      %v1896 = vsub.f32 1.5, %v1895
      %v1897 = vmul.f32 %v1892, %v1896
      %vm1898 = vweird.f32 %v1741
      %vm1899 = vweird.f32 %v1892
      %vm1900 = vmor %vm1898, %vm1899
      %v1901 = vsel %vm1900, %v1892, %v1897
      %v1902 = vmul.f32 %v1646, %v1751
      %v1903 = vmul.f32 %v1647, %v1761
      %v1904 = vmul.f32 %v1648, %v1771
      %v1905 = vmul.f32 %v1649, %v1781
      %v1906 = vmul.f32 %v1650, %v1791
      %v1907 = vmul.f32 %v1651, %v1801
      %v1908 = vmul.f32 %v1652, %v1811
      %v1909 = vmul.f32 %v1653, %v1821
      %v1910 = vmul.f32 %v1654, %v1831
      %v1911 = vmul.f32 %v1655, %v1841
      %v1912 = vmul.f32 %v1656, %v1851
      %v1913 = vmul.f32 %v1657, %v1861
      %v1914 = vmul.f32 %v1658, %v1871
      %v1915 = vmul.f32 %v1659, %v1881
      %v1916 = vmul.f32 %v1660, %v1891
      %v1917 = vmul.f32 %v1661, %v1901
      %v1918 = vld [vmem:[%s569] sm:$0x1]
      %v1920 = vperm.slane %v1918, 0
      %v1922 = vmul.f32 %v1902, %v1920
      %v1923 = vmul.f32 %v1903, %v1920
      %v1924 = vmul.f32 %v1904, %v1920
      %v1925 = vmul.f32 %v1905, %v1920
      %v1926 = vmul.f32 %v1906, %v1920
      %v1927 = vmul.f32 %v1907, %v1920
      %v1928 = vmul.f32 %v1908, %v1920
      %v1929 = vmul.f32 %v1909, %v1920
      %v1930 = vmul.f32 %v1910, %v1920
      %v1931 = vmul.f32 %v1911, %v1920
      %v1932 = vmul.f32 %v1912, %v1920
      %v1933 = vmul.f32 %v1913, %v1920
      %v1934 = vmul.f32 %v1914, %v1920
      %v1935 = vmul.f32 %v1915, %v1920
      %v1936 = vmul.f32 %v1916, %v1920
      %v1937 = vmul.f32 %v1917, %v1920
      %v1938 = vld [vmem:[%s572] sm:$0x1]
      %v1940 = vperm.slane %v1938, 0
      %v1942 = vadd.f32 %v1922, %v1940
      %v1943 = vadd.f32 %v1923, %v1940
      %v1944 = vadd.f32 %v1924, %v1940
      %v1945 = vadd.f32 %v1925, %v1940
      %v1946 = vadd.f32 %v1926, %v1940
      %v1947 = vadd.f32 %v1927, %v1940
      %v1948 = vadd.f32 %v1928, %v1940
      %v1949 = vadd.f32 %v1929, %v1940
      %v1950 = vadd.f32 %v1930, %v1940
      %v1951 = vadd.f32 %v1931, %v1940
      %v1952 = vadd.f32 %v1932, %v1940
      %v1953 = vadd.f32 %v1933, %v1940
      %v1954 = vadd.f32 %v1934, %v1940
      %v1955 = vadd.f32 %v1935, %v1940
      %v1956 = vadd.f32 %v1936, %v1940
      %v1957 = vadd.f32 %v1937, %v1940
      %v1958 = vxor.u32 %v1942, 2147483648
      %v1959 = vxor.u32 %v1943, 2147483648
      %v1960 = vxor.u32 %v1944, 2147483648
      %v1961 = vxor.u32 %v1945, 2147483648
      %v1962 = vxor.u32 %v1946, 2147483648
      %v1963 = vxor.u32 %v1947, 2147483648
      %v1964 = vxor.u32 %v1948, 2147483648
      %v1965 = vxor.u32 %v1949, 2147483648
      %v1966 = vxor.u32 %v1950, 2147483648
      %v1967 = vxor.u32 %v1951, 2147483648
      %v1968 = vxor.u32 %v1952, 2147483648
      %v1969 = vxor.u32 %v1953, 2147483648
      %v1970 = vxor.u32 %v1954, 2147483648
      %v1971 = vxor.u32 %v1955, 2147483648
      %v1972 = vxor.u32 %v1956, 2147483648
      %v1973 = vxor.u32 %v1957, 2147483648
      %v1974 = vmul.f32 %v1958, 1.442695
      %v1975 = vpow.pop %v1974
      %v1976 = vmul.f32 %v1959, 1.442695
      %v1977 = vpow.pop %v1976
      %v1978 = vmul.f32 %v1960, 1.442695
      %v1979 = vpow.pop %v1978
      %v1980 = vmul.f32 %v1961, 1.442695
      %v1981 = vpow.pop %v1980
      %v1982 = vmul.f32 %v1962, 1.442695
      %v1983 = vpow.pop %v1982
      %v1984 = vmul.f32 %v1963, 1.442695
      %v1985 = vpow.pop %v1984
      %v1986 = vmul.f32 %v1964, 1.442695
      %v1987 = vpow.pop %v1986
      %v1988 = vmul.f32 %v1965, 1.442695
      %v1989 = vpow.pop %v1988
      %v1990 = vmul.f32 %v1966, 1.442695
      %v1991 = vpow.pop %v1990
      %v1992 = vmul.f32 %v1967, 1.442695
      %v1993 = vpow.pop %v1992
      %v1994 = vmul.f32 %v1968, 1.442695
      %v1995 = vpow.pop %v1994
      %v1996 = vmul.f32 %v1969, 1.442695
      %v1997 = vpow.pop %v1996
      %v1998 = vmul.f32 %v1970, 1.442695
      %v1999 = vpow.pop %v1998
      %v2000 = vmul.f32 %v1971, 1.442695
      %v2001 = vpow.pop %v2000
      %v2002 = vmul.f32 %v1972, 1.442695
      %v2003 = vpow.pop %v2002
      %v2004 = vmul.f32 %v1973, 1.442695
      %v2005 = vpow.pop %v2004
      %v2006 = vadd.f32 %v1975, 1.0
      %v2007 = vadd.f32 %v1977, 1.0
      %v2008 = vadd.f32 %v1979, 1.0
      %v2009 = vadd.f32 %v1981, 1.0
      %v2010 = vadd.f32 %v1983, 1.0
      %v2011 = vadd.f32 %v1985, 1.0
      %v2012 = vadd.f32 %v1987, 1.0
      %v2013 = vadd.f32 %v1989, 1.0
      %v2014 = vadd.f32 %v1991, 1.0
      %v2015 = vadd.f32 %v1993, 1.0
      %v2016 = vadd.f32 %v1995, 1.0
      %v2017 = vadd.f32 %v1997, 1.0
      %v2018 = vadd.f32 %v1999, 1.0
      %v2019 = vadd.f32 %v2001, 1.0
      %v2020 = vadd.f32 %v2003, 1.0
      %v2021 = vadd.f32 %v2005, 1.0
      %v2022 = vrcp.pop %v2006
      %v2023 = vmul.f32 %v2006, %v2022
      %v2024 = vsub.f32 1.0, %v2023
      %v2025 = vmul.f32 %v2022, %v2024
      %v2026 = vadd.f32 %v2022, %v2025
      %vm2027 = vweird.f32 %v2006
      %vm2028 = vweird.f32 %v2022
      %vm2029 = vmor %vm2027, %vm2028
      %v2030 = vsel %vm2029, %v2022, %v2026
      %v2031 = vand.u32 2147483647, %v2006
      %vm2032 = vcmp.eq.f32.partialorder %v2031, 8.507059e+37
      %v2033 = vand.u32 %v2006, 2147483648
      %v2034 = vor.u32 1.1754944e-38, %v2033
      %v2035 = vsel %vm2032, %v2034, %v2030
      %v2036 = vmul.f32 1.0, %v2035
      %v2037 = vrcp.pop %v2007
      %v2038 = vmul.f32 %v2007, %v2037
      %v2039 = vsub.f32 1.0, %v2038
      %v2040 = vmul.f32 %v2037, %v2039
      %v2041 = vadd.f32 %v2037, %v2040
      %vm2042 = vweird.f32 %v2007
      %vm2043 = vweird.f32 %v2037
      %vm2044 = vmor %vm2042, %vm2043
      %v2045 = vsel %vm2044, %v2037, %v2041
      %v2046 = vand.u32 2147483647, %v2007
      %vm2047 = vcmp.eq.f32.partialorder %v2046, 8.507059e+37
      %v2048 = vand.u32 %v2007, 2147483648
      %v2049 = vor.u32 1.1754944e-38, %v2048
      %v2050 = vsel %vm2047, %v2049, %v2045
      %v2051 = vmul.f32 1.0, %v2050
      %v2052 = vrcp.pop %v2008
      %v2053 = vmul.f32 %v2008, %v2052
      %v2054 = vsub.f32 1.0, %v2053
      %v2055 = vmul.f32 %v2052, %v2054
      %v2056 = vadd.f32 %v2052, %v2055
      %vm2057 = vweird.f32 %v2008
      %vm2058 = vweird.f32 %v2052
      %vm2059 = vmor %vm2057, %vm2058
      %v2060 = vsel %vm2059, %v2052, %v2056
      %v2061 = vand.u32 2147483647, %v2008
      %vm2062 = vcmp.eq.f32.partialorder %v2061, 8.507059e+37
      %v2063 = vand.u32 %v2008, 2147483648
      %v2064 = vor.u32 1.1754944e-38, %v2063
      %v2065 = vsel %vm2062, %v2064, %v2060
      %v2066 = vmul.f32 1.0, %v2065
      %v2067 = vrcp.pop %v2009
      %v2068 = vmul.f32 %v2009, %v2067
      %v2069 = vsub.f32 1.0, %v2068
      %v2070 = vmul.f32 %v2067, %v2069
      %v2071 = vadd.f32 %v2067, %v2070
      %vm2072 = vweird.f32 %v2009
      %vm2073 = vweird.f32 %v2067
      %vm2074 = vmor %vm2072, %vm2073
      %v2075 = vsel %vm2074, %v2067, %v2071
      %v2076 = vand.u32 2147483647, %v2009
      %vm2077 = vcmp.eq.f32.partialorder %v2076, 8.507059e+37
      %v2078 = vand.u32 %v2009, 2147483648
      %v2079 = vor.u32 1.1754944e-38, %v2078
      %v2080 = vsel %vm2077, %v2079, %v2075
      %v2081 = vmul.f32 1.0, %v2080
      %v2082 = vrcp.pop %v2010
      %v2083 = vmul.f32 %v2010, %v2082
      %v2084 = vsub.f32 1.0, %v2083
      %v2085 = vmul.f32 %v2082, %v2084
      %v2086 = vadd.f32 %v2082, %v2085
      %vm2087 = vweird.f32 %v2010
      %vm2088 = vweird.f32 %v2082
      %vm2089 = vmor %vm2087, %vm2088
      %v2090 = vsel %vm2089, %v2082, %v2086
      %v2091 = vand.u32 2147483647, %v2010
      %vm2092 = vcmp.eq.f32.partialorder %v2091, 8.507059e+37
      %v2093 = vand.u32 %v2010, 2147483648
      %v2094 = vor.u32 1.1754944e-38, %v2093
      %v2095 = vsel %vm2092, %v2094, %v2090
      %v2096 = vmul.f32 1.0, %v2095
      %v2097 = vrcp.pop %v2011
      %v2098 = vmul.f32 %v2011, %v2097
      %v2099 = vsub.f32 1.0, %v2098
      %v2100 = vmul.f32 %v2097, %v2099
      %v2101 = vadd.f32 %v2097, %v2100
      %vm2102 = vweird.f32 %v2011
      %vm2103 = vweird.f32 %v2097
      %vm2104 = vmor %vm2102, %vm2103
      %v2105 = vsel %vm2104, %v2097, %v2101
      %v2106 = vand.u32 2147483647, %v2011
      %vm2107 = vcmp.eq.f32.partialorder %v2106, 8.507059e+37
      %v2108 = vand.u32 %v2011, 2147483648
      %v2109 = vor.u32 1.1754944e-38, %v2108
      %v2110 = vsel %vm2107, %v2109, %v2105
      %v2111 = vmul.f32 1.0, %v2110
      %v2112 = vrcp.pop %v2012
      %v2113 = vmul.f32 %v2012, %v2112
      %v2114 = vsub.f32 1.0, %v2113
      %v2115 = vmul.f32 %v2112, %v2114
      %v2116 = vadd.f32 %v2112, %v2115
      %vm2117 = vweird.f32 %v2012
      %vm2118 = vweird.f32 %v2112
      %vm2119 = vmor %vm2117, %vm2118
      %v2120 = vsel %vm2119, %v2112, %v2116
      %v2121 = vand.u32 2147483647, %v2012
      %vm2122 = vcmp.eq.f32.partialorder %v2121, 8.507059e+37
      %v2123 = vand.u32 %v2012, 2147483648
      %v2124 = vor.u32 1.1754944e-38, %v2123
      %v2125 = vsel %vm2122, %v2124, %v2120
      %v2126 = vmul.f32 1.0, %v2125
      %v2127 = vrcp.pop %v2013
      %v2128 = vmul.f32 %v2013, %v2127
      %v2129 = vsub.f32 1.0, %v2128
      %v2130 = vmul.f32 %v2127, %v2129
      %v2131 = vadd.f32 %v2127, %v2130
      %vm2132 = vweird.f32 %v2013
      %vm2133 = vweird.f32 %v2127
      %vm2134 = vmor %vm2132, %vm2133
      %v2135 = vsel %vm2134, %v2127, %v2131
      %v2136 = vand.u32 2147483647, %v2013
      %vm2137 = vcmp.eq.f32.partialorder %v2136, 8.507059e+37
      %v2138 = vand.u32 %v2013, 2147483648
      %v2139 = vor.u32 1.1754944e-38, %v2138
      %v2140 = vsel %vm2137, %v2139, %v2135
      %v2141 = vmul.f32 1.0, %v2140
      %v2142 = vrcp.pop %v2014
      %v2143 = vmul.f32 %v2014, %v2142
      %v2144 = vsub.f32 1.0, %v2143
      %v2145 = vmul.f32 %v2142, %v2144
      %v2146 = vadd.f32 %v2142, %v2145
      %vm2147 = vweird.f32 %v2014
      %vm2148 = vweird.f32 %v2142
      %vm2149 = vmor %vm2147, %vm2148
      %v2150 = vsel %vm2149, %v2142, %v2146
      %v2151 = vand.u32 2147483647, %v2014
      %vm2152 = vcmp.eq.f32.partialorder %v2151, 8.507059e+37
      %v2153 = vand.u32 %v2014, 2147483648
      %v2154 = vor.u32 1.1754944e-38, %v2153
      %v2155 = vsel %vm2152, %v2154, %v2150
      %v2156 = vmul.f32 1.0, %v2155
      %v2157 = vrcp.pop %v2015
      %v2158 = vmul.f32 %v2015, %v2157
      %v2159 = vsub.f32 1.0, %v2158
      %v2160 = vmul.f32 %v2157, %v2159
      %v2161 = vadd.f32 %v2157, %v2160
      %vm2162 = vweird.f32 %v2015
      %vm2163 = vweird.f32 %v2157
      %vm2164 = vmor %vm2162, %vm2163
      %v2165 = vsel %vm2164, %v2157, %v2161
      %v2166 = vand.u32 2147483647, %v2015
      %vm2167 = vcmp.eq.f32.partialorder %v2166, 8.507059e+37
      %v2168 = vand.u32 %v2015, 2147483648
      %v2169 = vor.u32 1.1754944e-38, %v2168
      %v2170 = vsel %vm2167, %v2169, %v2165
      %v2171 = vmul.f32 1.0, %v2170
      %v2172 = vrcp.pop %v2016
      %v2173 = vmul.f32 %v2016, %v2172
      %v2174 = vsub.f32 1.0, %v2173
      %v2175 = vmul.f32 %v2172, %v2174
      %v2176 = vadd.f32 %v2172, %v2175
      %vm2177 = vweird.f32 %v2016
      %vm2178 = vweird.f32 %v2172
      %vm2179 = vmor %vm2177, %vm2178
      %v2180 = vsel %vm2179, %v2172, %v2176
      %v2181 = vand.u32 2147483647, %v2016
      %vm2182 = vcmp.eq.f32.partialorder %v2181, 8.507059e+37
      %v2183 = vand.u32 %v2016, 2147483648
      %v2184 = vor.u32 1.1754944e-38, %v2183
      %v2185 = vsel %vm2182, %v2184, %v2180
      %v2186 = vmul.f32 1.0, %v2185
      %v2187 = vrcp.pop %v2017
      %v2188 = vmul.f32 %v2017, %v2187
      %v2189 = vsub.f32 1.0, %v2188
      %v2190 = vmul.f32 %v2187, %v2189
      %v2191 = vadd.f32 %v2187, %v2190
      %vm2192 = vweird.f32 %v2017
      %vm2193 = vweird.f32 %v2187
      %vm2194 = vmor %vm2192, %vm2193
      %v2195 = vsel %vm2194, %v2187, %v2191
      %v2196 = vand.u32 2147483647, %v2017
      %vm2197 = vcmp.eq.f32.partialorder %v2196, 8.507059e+37
      %v2198 = vand.u32 %v2017, 2147483648
      %v2199 = vor.u32 1.1754944e-38, %v2198
      %v2200 = vsel %vm2197, %v2199, %v2195
      %v2201 = vmul.f32 1.0, %v2200
      %v2202 = vrcp.pop %v2018
      %v2203 = vmul.f32 %v2018, %v2202
      %v2204 = vsub.f32 1.0, %v2203
      %v2205 = vmul.f32 %v2202, %v2204
      %v2206 = vadd.f32 %v2202, %v2205
      %vm2207 = vweird.f32 %v2018
      %vm2208 = vweird.f32 %v2202
      %vm2209 = vmor %vm2207, %vm2208
      %v2210 = vsel %vm2209, %v2202, %v2206
      %v2211 = vand.u32 2147483647, %v2018
      %vm2212 = vcmp.eq.f32.partialorder %v2211, 8.507059e+37
      %v2213 = vand.u32 %v2018, 2147483648
      %v2214 = vor.u32 1.1754944e-38, %v2213
      %v2215 = vsel %vm2212, %v2214, %v2210
      %v2216 = vmul.f32 1.0, %v2215
      %v2217 = vrcp.pop %v2019
      %v2218 = vmul.f32 %v2019, %v2217
      %v2219 = vsub.f32 1.0, %v2218
      %v2220 = vmul.f32 %v2217, %v2219
      %v2221 = vadd.f32 %v2217, %v2220
      %vm2222 = vweird.f32 %v2019
      %vm2223 = vweird.f32 %v2217
      %vm2224 = vmor %vm2222, %vm2223
      %v2225 = vsel %vm2224, %v2217, %v2221
      %v2226 = vand.u32 2147483647, %v2019
      %vm2227 = vcmp.eq.f32.partialorder %v2226, 8.507059e+37
      %v2228 = vand.u32 %v2019, 2147483648
      %v2229 = vor.u32 1.1754944e-38, %v2228
      %v2230 = vsel %vm2227, %v2229, %v2225
      %v2231 = vmul.f32 1.0, %v2230
      %v2232 = vrcp.pop %v2020
      %v2233 = vmul.f32 %v2020, %v2232
      %v2234 = vsub.f32 1.0, %v2233
      %v2235 = vmul.f32 %v2232, %v2234
      %v2236 = vadd.f32 %v2232, %v2235
      %vm2237 = vweird.f32 %v2020
      %vm2238 = vweird.f32 %v2232
      %vm2239 = vmor %vm2237, %vm2238
      %v2240 = vsel %vm2239, %v2232, %v2236
      %v2241 = vand.u32 2147483647, %v2020
      %vm2242 = vcmp.eq.f32.partialorder %v2241, 8.507059e+37
      %v2243 = vand.u32 %v2020, 2147483648
      %v2244 = vor.u32 1.1754944e-38, %v2243
      %v2245 = vsel %vm2242, %v2244, %v2240
      %v2246 = vmul.f32 1.0, %v2245
      %v2247 = vrcp.pop %v2021
      %v2248 = vmul.f32 %v2021, %v2247
      %v2249 = vsub.f32 1.0, %v2248
      %v2250 = vmul.f32 %v2247, %v2249
      %v2251 = vadd.f32 %v2247, %v2250
      %vm2252 = vweird.f32 %v2021
      %vm2253 = vweird.f32 %v2247
      %vm2254 = vmor %vm2252, %vm2253
      %v2255 = vsel %vm2254, %v2247, %v2251
      %v2256 = vand.u32 2147483647, %v2021
      %vm2257 = vcmp.eq.f32.partialorder %v2256, 8.507059e+37
      %v2258 = vand.u32 %v2021, 2147483648
      %v2259 = vor.u32 1.1754944e-38, %v2258
      %v2260 = vsel %vm2257, %v2259, %v2255
      %v2261 = vmul.f32 1.0, %v2260
      %v2262 = vmul.f32 %v1942, %v2036
      %v2263 = vmul.f32 %v1943, %v2051
      %v2264 = vmul.f32 %v1944, %v2066
      %v2265 = vmul.f32 %v1945, %v2081
      %v2266 = vmul.f32 %v1946, %v2096
      %v2267 = vmul.f32 %v1947, %v2111
      %v2268 = vmul.f32 %v1948, %v2126
      %v2269 = vmul.f32 %v1949, %v2141
      %v2270 = vmul.f32 %v1950, %v2156
      %v2271 = vmul.f32 %v1951, %v2171
      %v2272 = vmul.f32 %v1952, %v2186
      %v2273 = vmul.f32 %v1953, %v2201
      %v2274 = vmul.f32 %v1954, %v2216
      %v2275 = vmul.f32 %v1955, %v2231
      %v2276 = vmul.f32 %v1956, %v2246
      %v2277 = vmul.f32 %v1957, %v2261
      %v2278 = vld [vmem:[%s582] sm:$0xf]
      %v2279 = vld [vmem:[%s582 + $0x4] sm:$0xf]
      %v2280 = vld [vmem:[%s582 + $0x8] sm:$0xf]
      %v2281 = vld [vmem:[%s582 + $0xc] sm:$0xf]
      %v2282 = vld [vmem:[%s582 + $0x10] sm:$0xf]
      %v2283 = vld [vmem:[%s582 + $0x14] sm:$0xf]
      %v2284 = vld [vmem:[%s582 + $0x18] sm:$0xf]
      %v2285 = vld [vmem:[%s582 + $0x1c] sm:$0xf]
      %v2286 = vld [vmem:[%s582 + $0x20] sm:$0xf]
      %v2287 = vld [vmem:[%s582 + $0x24] sm:$0xf]
      %v2288 = vld [vmem:[%s582 + $0x28] sm:$0xf]
      %v2289 = vld [vmem:[%s582 + $0x2c] sm:$0xf]
      %v2290 = vld [vmem:[%s582 + $0x30] sm:$0xf]
      %v2291 = vld [vmem:[%s582 + $0x34] sm:$0xf]
      %v2292 = vld [vmem:[%s582 + $0x38] sm:$0xf]
      %v2293 = vld [vmem:[%s582 + $0x3c] sm:$0xf]
      %v2294 = vld [vmem:[%s8] sm:$0x3]
      %v2311 = vunpack.c.l.b16 %v2278
      %v2312 = vunpack.c.l.b16 %v2279
      %v2313 = vunpack.c.l.b16 %v2280
      %v2314 = vunpack.c.l.b16 %v2281
      %v2315 = vunpack.c.l.b16 %v2282
      %v2316 = vunpack.c.l.b16 %v2283
      %v2317 = vunpack.c.l.b16 %v2284
      %v2318 = vunpack.c.l.b16 %v2285
      %v2319 = vunpack.c.l.b16 %v2286
      %v2320 = vunpack.c.l.b16 %v2287
      %v2321 = vunpack.c.l.b16 %v2288
      %v2322 = vunpack.c.l.b16 %v2289
      %v2323 = vunpack.c.l.b16 %v2290
      %v2324 = vunpack.c.l.b16 %v2291
      %v2325 = vunpack.c.l.b16 %v2292
      %v2326 = vunpack.c.l.b16 %v2293
      %v2327 = vpack.c.b16 %v2312, %v2311
      %v2328 = vpack.c.b16 %v2314, %v2313
      %v2329 = vpack.c.b16 %v2316, %v2315
      %v2330 = vpack.c.b16 %v2318, %v2317
      %v2331 = vpack.c.b16 %v2320, %v2319
      %v2332 = vpack.c.b16 %v2322, %v2321
      %v2333 = vpack.c.b16 %v2324, %v2323
      %v2334 = vpack.c.b16 %v2326, %v2325
      %vm2335 = vcmask 31744
      %v2337 = vsel %vm2335, %v2327, 0
      %v2340 = vsel %vm2335, %v2328, 0
      %v2343 = vsel %vm2335, %v2329, 0
      %v2346 = vsel %vm2335, %v2330, 0
      %v2349 = vsel %vm2335, %v2331, 0
      %v2352 = vsel %vm2335, %v2332, 0
      %v2355 = vsel %vm2335, %v2333, 0
      %v2358 = vsel %vm2335, %v2334, 0
      %vm2360 = vcmask 1041408
      %v2362 = vsel %vm2360, %v2294, 0
      %2364 = vmatpush.bf16.msra.mxu0 0
      %2365 = vmatpush.bf16.msra.mxu0 0
      %2366 = vmatpush.bf16.msra.mxu0 0
      %2367 = vmatpush.bf16.msra.mxu0 0
      %2368 = vmatpush.bf16.msra.mxu0 0
      %2369 = vmatpush.bf16.msra.mxu0 0
      %2370 = vmatpush.bf16.msra.mxu0 0
      %2371 = vmatpush.bf16.msra.mxu0 %v2362
      %2372 = vmatmul.bf16.gmra.mxu0 %v2337
      %v2373 = vpop.f32.mrf.mxu0
      %v2374 = vadd.f32 0.0, %v2373
      %v2375 = vpop.f32.mrf.mxu0
      %v2376 = vadd.f32 0.0, %v2375
      %2377 = vmatmul.bf16.gmra.mxu0 %v2340
      %v2378 = vpop.f32.mrf.mxu0
      %v2379 = vadd.f32 0.0, %v2378
      %v2380 = vpop.f32.mrf.mxu0
      %v2381 = vadd.f32 0.0, %v2380
      %2382 = vmatmul.bf16.gmra.mxu0 %v2343
      %v2383 = vpop.f32.mrf.mxu0
      %v2384 = vadd.f32 0.0, %v2383
      %v2385 = vpop.f32.mrf.mxu0
      %v2386 = vadd.f32 0.0, %v2385
      %2387 = vmatmul.bf16.gmra.mxu0 %v2346
      %v2388 = vpop.f32.mrf.mxu0
      %v2389 = vadd.f32 0.0, %v2388
      %v2390 = vpop.f32.mrf.mxu0
      %v2391 = vadd.f32 0.0, %v2390
      %2392 = vmatmul.bf16.gmra.mxu0 %v2349
      %v2393 = vpop.f32.mrf.mxu0
      %v2394 = vadd.f32 0.0, %v2393
      %v2395 = vpop.f32.mrf.mxu0
      %v2396 = vadd.f32 0.0, %v2395
      %2397 = vmatmul.bf16.gmra.mxu0 %v2352
      %v2398 = vpop.f32.mrf.mxu0
      %v2399 = vadd.f32 0.0, %v2398
      %v2400 = vpop.f32.mrf.mxu0
      %v2401 = vadd.f32 0.0, %v2400
      %2402 = vmatmul.bf16.gmra.mxu0 %v2355
      %v2403 = vpop.f32.mrf.mxu0
      %v2404 = vadd.f32 0.0, %v2403
      %v2405 = vpop.f32.mrf.mxu0
      %v2406 = vadd.f32 0.0, %v2405
      %2407 = vmatmul.bf16.gmra.mxu0 %v2358
      %v2408 = vpop.f32.mrf.mxu0
      %v2409 = vadd.f32 0.0, %v2408
      %v2410 = vpop.f32.mrf.mxu0
      %v2411 = vadd.f32 0.0, %v2410
      %2412 = vdwg.mxu0
      %v2413 = vadd.f32 %v2262, %v2374
      %v2414 = vadd.f32 %v2263, %v2376
      %v2415 = vadd.f32 %v2264, %v2379
      %v2416 = vadd.f32 %v2265, %v2381
      %v2417 = vadd.f32 %v2266, %v2384
      %v2418 = vadd.f32 %v2267, %v2386
      %v2419 = vadd.f32 %v2268, %v2389
      %v2420 = vadd.f32 %v2269, %v2391
      %v2421 = vadd.f32 %v2270, %v2394
      %v2422 = vadd.f32 %v2271, %v2396
      %v2423 = vadd.f32 %v2272, %v2399
      %v2424 = vadd.f32 %v2273, %v2401
      %v2425 = vadd.f32 %v2274, %v2404
      %v2426 = vadd.f32 %v2275, %v2406
      %v2427 = vadd.f32 %v2276, %v2409
      %v2428 = vadd.f32 %v2277, %v2411
      %v2429 = vld [vmem:[%s9] sm:$0x1]
      %v2431 = vperm.slane %v2429, 0
      %v2433 = vadd.f32 %v2413, %v2431
      %v2434 = vadd.f32 %v2414, %v2431
      %v2435 = vadd.f32 %v2415, %v2431
      %v2436 = vadd.f32 %v2416, %v2431
      %v2437 = vadd.f32 %v2417, %v2431
      %v2438 = vadd.f32 %v2418, %v2431
      %v2439 = vadd.f32 %v2419, %v2431
      %v2440 = vadd.f32 %v2420, %v2431
      %v2441 = vadd.f32 %v2421, %v2431
      %v2442 = vadd.f32 %v2422, %v2431
      %v2443 = vadd.f32 %v2423, %v2431
      %v2444 = vadd.f32 %v2424, %v2431
      %v2445 = vadd.f32 %v2425, %v2431
      %v2446 = vadd.f32 %v2426, %v2431
      %v2447 = vadd.f32 %v2427, %v2431
      %v2448 = vadd.f32 %v2428, %v2431
      %v2449 = vpack.c.bf16 %v2433, %v2433
      %v2450 = vpack.c.bf16 %v2434, %v2434
      %v2451 = vpack.c.bf16 %v2435, %v2435
      %v2452 = vpack.c.bf16 %v2436, %v2436
      %v2453 = vpack.c.bf16 %v2437, %v2437
      %v2454 = vpack.c.bf16 %v2438, %v2438
      %v2455 = vpack.c.bf16 %v2439, %v2439
      %v2456 = vpack.c.bf16 %v2440, %v2440
      %v2457 = vpack.c.bf16 %v2441, %v2441
      %v2458 = vpack.c.bf16 %v2442, %v2442
      %v2459 = vpack.c.bf16 %v2443, %v2443
      %v2460 = vpack.c.bf16 %v2444, %v2444
      %v2461 = vpack.c.bf16 %v2445, %v2445
      %v2462 = vpack.c.bf16 %v2446, %v2446
      %v2463 = vpack.c.bf16 %v2447, %v2447
      %v2464 = vpack.c.bf16 %v2448, %v2448
      %vm2465 = vcmask 60416
      %2466 = vst.msk [vmem:[%s593] sm:$0xf] %vm2465, %v2449
      %2467 = vst.msk [vmem:[%s593 + $0x4] sm:$0xf] %vm2465, %v2450
      %2468 = vst.msk [vmem:[%s593 + $0x8] sm:$0xf] %vm2465, %v2451
      %2469 = vst.msk [vmem:[%s593 + $0xc] sm:$0xf] %vm2465, %v2452
      %2470 = vst.msk [vmem:[%s593 + $0x10] sm:$0xf] %vm2465, %v2453
      %2471 = vst.msk [vmem:[%s593 + $0x14] sm:$0xf] %vm2465, %v2454
      %2472 = vst.msk [vmem:[%s593 + $0x18] sm:$0xf] %vm2465, %v2455
      %2473 = vst.msk [vmem:[%s593 + $0x1c] sm:$0xf] %vm2465, %v2456
      %2474 = vst.msk [vmem:[%s593 + $0x20] sm:$0xf] %vm2465, %v2457
      %2475 = vst.msk [vmem:[%s593 + $0x24] sm:$0xf] %vm2465, %v2458
      %2476 = vst.msk [vmem:[%s593 + $0x28] sm:$0xf] %vm2465, %v2459
      %2477 = vst.msk [vmem:[%s593 + $0x2c] sm:$0xf] %vm2465, %v2460
      %2478 = vst.msk [vmem:[%s593 + $0x30] sm:$0xf] %vm2465, %v2461
      %2479 = vst.msk [vmem:[%s593 + $0x34] sm:$0xf] %vm2465, %v2462
      %2480 = vst.msk [vmem:[%s593 + $0x38] sm:$0xf] %vm2465, %v2463
      %2481 = vst.msk [vmem:[%s593 + $0x3c] sm:$0xf] %vm2465, %v2464
      %s2482 = smul.u32 8, %s26
      %p2483 = scmp.lt.s32.totalorder %s25, 1
      %s2484 = scalar_select %p2483, %s25, 1
      %p2485 = scmp.lt.s32.totalorder %s2482, 15
      %s2486 = scalar_select %p2485, %s2482, 15
      %s2487 = smul.addr %s2486, 2
      %s2488 = smul.addr %s2484, 32
      %s2489 = sadd.s32 %s2487, %s2488
      %s2490 = smul.addr %s2489, 4
      %s2491 = scalar_lea.vmem %s10, %s2490
      // Predicated region
      $region61: #{resnet_block_forward.5} parent=59 // pred_check
        %p2492 = pneg %p317
      $region62: #{resnet_block_forward.5} parent=59 // pred_check_branch
        %2494 = sbr.rel (%p2492) target = $region64
      $region63: #{resnet_block_forward.5} parent=59 // pred_region
        %s2495 = smul.u32 8, %s26
      $region64: #{resnet_block_forward.5} parent=59 // pred_fallthru
        _
    $region60: #{resnet_block_forward.5} parent=5 // pred_fallthru
      _
    %p2496 = scmp.le.s32.totalorder 2, %s16
    // Predicated region
    $region65: #{resnet_block_forward.5} parent=5 // pred_check
      %p2497 = pneg %p2496
    $region66: #{resnet_block_forward.5} parent=5 // pred_check_branch
      %2499 = sbr.rel (%p2497) target = $region68
    $region67: #{resnet_block_forward.5} parent=5 // pred_region
      %s2500 = ssub.s32 %s16, 2
      // Predicated region
      $region69: #{resnet_block_forward.5} parent=67 // pred_check
        %p2501 = pneg %p323
      $region70: #{resnet_block_forward.5} parent=67 // pred_check_branch
        %2503 = sbr.rel (%p2501) target = $region72
      $region71: #{resnet_block_forward.5} parent=67 // pred_region
        %s2504 = smul.u32 8, %s28
        %p2505 = scmp.lt.s32.totalorder %s27, 1
        %s2506 = scalar_select %p2505, %s27, 1
        %p2507 = scmp.lt.s32.totalorder %s2504, 15
        %s2508 = scalar_select %p2507, %s2504, 15
        %s2509 = smul.addr %s2508, 2
        %s2510 = smul.addr %s2506, 32
        %s2511 = sadd.s32 %s2509, %s2510
        %s2512 = smul.addr %s2511, 4
        %s2513 = scalar_lea.vmem %s10, %s2512
      $region72: #{resnet_block_forward.5} parent=67 // pred_fallthru
        _
    $region68: #{resnet_block_forward.5} parent=5 // pred_fallthru
      _
  $region6: #{resnet_block_forward.5} parent=0 // loop_footer
    %s20 = sadd.s32 1, %s16
  $region7: #{resnet_block_forward.5} parent=0 // loop_footer_branch
    %15 = sbr.rel target = $region3
  $region8: #{resnet_block_forward.5} parent=0 // loop_exit
    _

</llo_original>
